<compile_context>
chip_gen: v5e
topology: v5e:2x2
jax: 0.10.0
libtpu: 0.0.40
codegen_flags: <defaults>
</compile_context>

<pallas_src>
import functools

import jax
import jax.numpy as jnp
from jax.experimental import pallas as pl
from jax.experimental.pallas import tpu as pltpu


def autopad(k, p=None, d=1):
    if d > 1:
        k = d * (k - 1) + 1 if isinstance(k, int) else [d * (x - 1) + 1 for x in k]
    if p is None:
        p = k // 2 if isinstance(k, int) else [x // 2 for x in k]
    return p


def _round_up(x, m):
    return (x + m - 1) // m * m


def _conv_bn_silu_kernel(x_ref, w_ref, b_ref, o_ref, *, tap_shifts, window):
    """Compute one (C2s, TILE) channel-major output tile of conv + folded BN + SiLU.

    x_ref: (FLAT_IN, C1)  padded image, row-major flattened over (Hp, Wp); resident per image
    w_ref: (K*K, C1, C2p) BN-scale-folded conv weights (one slab per tap)
    b_ref: (1, C2p)       folded BN bias (f32)
    o_ref: (C2s, TILE)    output tile, channel-major, lane-dense spatial dim
    """
    c2s, tile = o_ref.shape
    base = pl.multiple_of(pl.program_id(1) * tile, tile)     # tile-aligned dynamic offset
    # One aligned dynamic window load; per-tap shifts are then *static* slices of the value.
    x_win = x_ref[pl.ds(base, window), :]                    # (WINDOW, C1)

    acc = jnp.zeros((tile, w_ref.shape[2]), jnp.float32)
    for idx, shift in enumerate(tap_shifts):                 # static unrolled K*K tap loop
        x_tap = x_win[shift:shift + tile, :]                 # (TILE, C1) shifted view
        acc = acc + jnp.dot(x_tap, w_ref[idx],
                            preferred_element_type=jnp.float32)   # MXU, f32 accumulate

    y = acc + b_ref[...]                                     # folded BatchNorm2d bias (f32)
    y = y * jax.nn.sigmoid(y)                                # SiLU (default_act), f32 epilogue
    yt = jnp.transpose(y.astype(o_ref.dtype))                # (C2p, TILE) on the XLU
    o_ref[...] = yt[:c2s, :]                                 # store only valid channel rows


def conv_forward(x_nchw, weight_oihw, bn_gamma, bn_beta, bn_mean, bn_var,
                 *, k=3, s=1, p=None, d=1, eps=1e-5,
                 compute_dtype=jnp.bfloat16, tile_hw=512):
    """Pallas implementation of Conv.forward for s=1, d=1, g=1 (eval-mode BN)."""
    assert s == 1 and d == 1, "only stride=1, dilation=1, groups=1 implemented"
    # TODO(synk): PyTorch .train()-mode BN would use batch statistics instead of running stats.
    p = autopad(k, p, d)
    N, C1, H, W = x_nchw.shape
    C2 = weight_oihw.shape[0]
    Hp, Wp = H + 2 * p, W + 2 * p
    Ho, Wo = Hp - k + 1, Wp - k + 1          # stride-1 output size (== H, W for "same" autopad)
    KK = k * k

    C2p = _round_up(C2, 128)                 # MXU / epilogue lane width (compute only)
    C2s = _round_up(C2, 8)                   # channel rows actually written to HBM

    # spatial tiling over the flattened (Ho * Wp) output grid (garbage cols sliced off later);
    # tile is a multiple of 128 so the channel-major output's lane dim gets unmasked stores.
    L_out = Ho * Wp
    tile = min(_round_up(tile_hw, 128), _round_up(L_out, 128))
    L_out_p = _round_up(L_out, tile)
    num_tiles = L_out_p // tile
    max_shift = (k - 1) * Wp + (k - 1)
    window = _round_up(tile + max_shift, 8)  # per-tile halo window in flat rows
    flat_in = L_out_p - tile + window        # padded-flat input length (multiple of 8)

    # ---- glue: NCHW -> NHWC, pad, flatten (pure JAX, ~1x activation traffic; no im2col) ----
    x_nhwc = jnp.transpose(x_nchw, (0, 2, 3, 1))
    x_pad = jnp.pad(x_nhwc, ((0, 0), (p, p), (p, p), (0, 0)))
    x_flat = x_pad.reshape(N, Hp * Wp, C1)
    x_flat = jnp.pad(x_flat, ((0, 0), (0, flat_in - Hp * Wp), (0, 0)))
    x_flat = x_flat.astype(compute_dtype)

    # fold BatchNorm2d (inference / running-stats form) into the conv weights + a bias
    scale = bn_gamma / jnp.sqrt(bn_var + eps)                     # (C2,)
    bias = bn_beta - bn_mean * scale                              # (C2,)
    w_taps = jnp.transpose(weight_oihw, (2, 3, 1, 0))             # (k, k, C1, C2)
    w_taps = (w_taps * scale).reshape(KK, C1, C2)                 # BN scale folded into weights
    w_taps = jnp.pad(w_taps, ((0, 0), (0, 0), (0, C2p - C2))).astype(compute_dtype)
    bias_p = jnp.pad(bias, (0, C2p - C2)).reshape(1, C2p).astype(jnp.float32)

    # tap (kh, kw) -> row shift in the flattened padded image
    tap_shifts = tuple(kh * Wp + kw for kh in range(k) for kw in range(k))

    # explicit VMEM budget: image + weights + double-buffered output tile + epilogue headroom
    isz = jnp.dtype(compute_dtype).itemsize
    vmem_bytes = (2 * flat_in * C1 * isz          # padded image (double-buffered input)
                  + 2 * KK * C1 * C2p * isz       # folded weights
                  + 2 * C2p * 4                   # bias
                  + 2 * C2s * tile * 4            # output tile (f32, double-buffered)
                  + 6 * tile * C2p * 4            # accumulator / epilogue / transpose headroom
                  + 2 * window * C1 * isz         # in-kernel halo window
                  + (2 << 20))
    vmem_bytes = int(min(max(vmem_bytes, 8 << 20), 48 << 20))     # stays safe on v7x (64 MiB)

    kernel = functools.partial(_conv_bn_silu_kernel,
                               tap_shifts=tap_shifts, window=window)

    out = pl.pallas_call(
        kernel,
        out_shape=jax.ShapeDtypeStruct((N, C2s, L_out_p), jnp.float32),
        grid=(N, num_tiles),
        in_specs=[
            # whole padded image per n, resident across the tile axis (fetched once per image)
            pl.BlockSpec((None, flat_in, C1), lambda n, t: (n, 0, 0)),
            pl.BlockSpec((KK, C1, C2p), lambda n, t: (0, 0, 0)),
            pl.BlockSpec((1, C2p), lambda n, t: (0, 0)),
        ],
        out_specs=pl.BlockSpec((None, C2s, tile), lambda n, t: (n, 0, t)),
        compiler_params=pltpu.CompilerParams(
            dimension_semantics=("parallel", "parallel"),
            vmem_limit_bytes=vmem_bytes),
    )(x_flat, w_taps, bias_p)

    # channel-major output is already NCHW-ordered: drop pad channels / pad tiles / pad-width cols
    out = out[:, :C2, :L_out].reshape(N, C2, Ho, Wp)[:, :, :, :Wo]
    return out


def conv_forward_ref(x, w, gamma, beta, mean, var, *, k=3, eps=1e-5):
    """Pure-JAX reference (same semantics) for correctness checking."""
    p = autopad(k)
    y = jax.lax.conv_general_dilated(
        x, w, window_strides=(1, 1), padding=[(p, p), (p, p)],
        dimension_numbers=('NCHW', 'OIHW', 'NCHW'))
    scale = (gamma / jnp.sqrt(var + eps)).reshape(1, -1, 1, 1)
    bias = (beta - mean * gamma / jnp.sqrt(var + eps)).reshape(1, -1, 1, 1)
    y = y * scale + bias
    return y * jax.nn.sigmoid(y)


if __name__ == "__main__":
    key = jax.random.PRNGKey(0)
    kx, kw_, kg, kb, km, kv = jax.random.split(key, 6)

    # Conv(c1=4, c2=8, k=3): deterministic synthetic parameters
    N, C1, H, W = 2, 4, 16, 16
    C2, K = 8, 3

    x = jax.random.normal(kx, (N, C1, H, W), dtype=jnp.float32)
    weight = 0.1 * jax.random.normal(kw_, (C2, C1, K, K), dtype=jnp.float32)  # Conv2d (bias=False)
    gamma = 1.0 + 0.1 * jax.random.normal(kg, (C2,), dtype=jnp.float32)       # bn.weight
    beta = 0.1 * jax.random.normal(kb, (C2,), dtype=jnp.float32)              # bn.bias
    mean = 0.1 * jax.random.normal(km, (C2,), dtype=jnp.float32)              # bn.running_mean
    var = jnp.abs(jax.random.normal(kv, (C2,), dtype=jnp.float32)) + 0.5      # bn.running_var

    ref = conv_forward_ref(x, weight, gamma, beta, mean, var, k=K)

    # f32-operand path: exact check (single spatial tile at this size)
    out_f32 = jax.block_until_ready(
        conv_forward(x, weight, gamma, beta, mean, var, k=K,
                     compute_dtype=jnp.float32))
    assert out_f32.shape == (N, C2, H, W), out_f32.shape
    assert jnp.allclose(out_f32, ref, rtol=2e-4, atol=2e-4), \
        float(jnp.max(jnp.abs(out_f32 - ref)))

    # bf16-operand path (recommended for v5e/v6e/v7x MXU), small tile to exercise multi-tile grid
    out_bf16 = jax.block_until_ready(
        conv_forward(x, weight, gamma, beta, mean, var, k=K,
                     compute_dtype=jnp.bfloat16, tile_hw=128))
    assert out_bf16.shape == (N, C2, H, W), out_bf16.shape
    assert jnp.allclose(out_bf16, ref, rtol=5e-2, atol=5e-2), \
        float(jnp.max(jnp.abs(out_bf16 - ref)))

    print("KERNEL_OK")
</pallas_src>

<mosaic_0001>
module attributes {stable_mosaic.version = 11 : i64} {
  func.func @_conv_bn_silu_kernel(%arg0: i32, %arg1: i32, %arg2: memref<1x424x4xf32, #tpu.memory_space<vmem>>, %arg3: memref<9x4x128xf32, #tpu.memory_space<vmem>>, %arg4: memref<1x128xf32, #tpu.memory_space<vmem>>, %arg5: memref<1x8x384xf32, #tpu.memory_space<vmem>>) attributes {dimension_semantics = [#tpu.dimension_semantics<parallel>, #tpu.dimension_semantics<parallel>], iteration_bounds = array<i64: 2, 1>, scalar_prefetch = 0 : i64, scratch_operands = 0 : i64, tpu.core_type = #tpu.core_type<tc>, window_params = [{transform_indices = @transform_0, window_bounds = array<i64: 1, 424, 4>}, {pipeline_mode = #tpu.pipeline_mode<synchronous>, transform_indices = @transform_1, window_bounds = array<i64: 9, 4, 128>}, {pipeline_mode = #tpu.pipeline_mode<synchronous>, transform_indices = @transform_2, window_bounds = array<i64: 1, 128>}, {transform_indices = @transform_3, window_bounds = array<i64: 1, 8, 384>}]} {
    %c384_i32 = arith.constant 384 : i32
    %0 = arith.muli %arg1, %c384_i32 : i32
    %1 = tpu.assume_multiple %0, 384 : i32
    %c0 = arith.constant 0 : index
    %2 = arith.index_cast %1 : i32 to index
    %c0_0 = arith.constant 0 : index
    %3 = vector.load %arg2[%c0, %2, %c0_0] : memref<1x424x4xf32, #tpu.memory_space<vmem>>, vector<1x424x4xf32>
    %4 = vector.shape_cast %3 : vector<1x424x4xf32> to vector<424x4xf32>
    %cst = arith.constant 0.000000e+00 : f32
    %5 = vector.broadcast %cst : f32 to vector<384x128xf32>
    %6 = vector.extract_strided_slice %4 {offsets = [0, 0], sizes = [384, 4], strides = [1, 1]} : vector<424x4xf32> to vector<384x4xf32>
    %c0_1 = arith.constant 0 : index
    %c0_2 = arith.constant 0 : index
    %c0_3 = arith.constant 0 : index
    %7 = vector.load %arg3[%c0_1, %c0_2, %c0_3] : memref<9x4x128xf32, #tpu.memory_space<vmem>>, vector<1x4x128xf32>
    %8 = vector.shape_cast %7 : vector<1x4x128xf32> to vector<4x128xf32>
    %cst_4 = arith.constant dense<0.000000e+00> : vector<384x128xf32>
    %9 = tpu.matmul %6, %8, %cst_4 {dimension_numbers = #tpu.dot_dimension_numbers<[1], [0], [0], [1], [0, 0, 1, 1], [], []>} : vector<384x4xf32>, vector<4x128xf32>, vector<384x128xf32> -> vector<384x128xf32>
    %10 = arith.addf %5, %9 : vector<384x128xf32>
    %11 = vector.extract_strided_slice %4 {offsets = [1, 0], sizes = [384, 4], strides = [1, 1]} : vector<424x4xf32> to vector<384x4xf32>
    %c1 = arith.constant 1 : index
    %c0_5 = arith.constant 0 : index
    %c0_6 = arith.constant 0 : index
    %12 = vector.load %arg3[%c1, %c0_5, %c0_6] : memref<9x4x128xf32, #tpu.memory_space<vmem>>, vector<1x4x128xf32>
    %13 = vector.shape_cast %12 : vector<1x4x128xf32> to vector<4x128xf32>
    %cst_7 = arith.constant dense<0.000000e+00> : vector<384x128xf32>
    %14 = tpu.matmul %11, %13, %cst_7 {dimension_numbers = #tpu.dot_dimension_numbers<[1], [0], [0], [1], [0, 0, 1, 1], [], []>} : vector<384x4xf32>, vector<4x128xf32>, vector<384x128xf32> -> vector<384x128xf32>
    %15 = arith.addf %10, %14 : vector<384x128xf32>
    %16 = vector.extract_strided_slice %4 {offsets = [2, 0], sizes = [384, 4], strides = [1, 1]} : vector<424x4xf32> to vector<384x4xf32>
    %c2 = arith.constant 2 : index
    %c0_8 = arith.constant 0 : index
    %c0_9 = arith.constant 0 : index
    %17 = vector.load %arg3[%c2, %c0_8, %c0_9] : memref<9x4x128xf32, #tpu.memory_space<vmem>>, vector<1x4x128xf32>
    %18 = vector.shape_cast %17 : vector<1x4x128xf32> to vector<4x128xf32>
    %cst_10 = arith.constant dense<0.000000e+00> : vector<384x128xf32>
    %19 = tpu.matmul %16, %18, %cst_10 {dimension_numbers = #tpu.dot_dimension_numbers<[1], [0], [0], [1], [0, 0, 1, 1], [], []>} : vector<384x4xf32>, vector<4x128xf32>, vector<384x128xf32> -> vector<384x128xf32>
    %20 = arith.addf %15, %19 : vector<384x128xf32>
    %21 = vector.extract_strided_slice %4 {offsets = [18, 0], sizes = [384, 4], strides = [1, 1]} : vector<424x4xf32> to vector<384x4xf32>
    %c3 = arith.constant 3 : index
    %c0_11 = arith.constant 0 : index
    %c0_12 = arith.constant 0 : index
    %22 = vector.load %arg3[%c3, %c0_11, %c0_12] : memref<9x4x128xf32, #tpu.memory_space<vmem>>, vector<1x4x128xf32>
    %23 = vector.shape_cast %22 : vector<1x4x128xf32> to vector<4x128xf32>
    %cst_13 = arith.constant dense<0.000000e+00> : vector<384x128xf32>
    %24 = tpu.matmul %21, %23, %cst_13 {dimension_numbers = #tpu.dot_dimension_numbers<[1], [0], [0], [1], [0, 0, 1, 1], [], []>} : vector<384x4xf32>, vector<4x128xf32>, vector<384x128xf32> -> vector<384x128xf32>
    %25 = arith.addf %20, %24 : vector<384x128xf32>
    %26 = vector.extract_strided_slice %4 {offsets = [19, 0], sizes = [384, 4], strides = [1, 1]} : vector<424x4xf32> to vector<384x4xf32>
    %c4 = arith.constant 4 : index
    %c0_14 = arith.constant 0 : index
    %c0_15 = arith.constant 0 : index
    %27 = vector.load %arg3[%c4, %c0_14, %c0_15] : memref<9x4x128xf32, #tpu.memory_space<vmem>>, vector<1x4x128xf32>
    %28 = vector.shape_cast %27 : vector<1x4x128xf32> to vector<4x128xf32>
    %cst_16 = arith.constant dense<0.000000e+00> : vector<384x128xf32>
    %29 = tpu.matmul %26, %28, %cst_16 {dimension_numbers = #tpu.dot_dimension_numbers<[1], [0], [0], [1], [0, 0, 1, 1], [], []>} : vector<384x4xf32>, vector<4x128xf32>, vector<384x128xf32> -> vector<384x128xf32>
    %30 = arith.addf %25, %29 : vector<384x128xf32>
    %31 = vector.extract_strided_slice %4 {offsets = [20, 0], sizes = [384, 4], strides = [1, 1]} : vector<424x4xf32> to vector<384x4xf32>
    %c5 = arith.constant 5 : index
    %c0_17 = arith.constant 0 : index
    %c0_18 = arith.constant 0 : index
    %32 = vector.load %arg3[%c5, %c0_17, %c0_18] : memref<9x4x128xf32, #tpu.memory_space<vmem>>, vector<1x4x128xf32>
    %33 = vector.shape_cast %32 : vector<1x4x128xf32> to vector<4x128xf32>
    %cst_19 = arith.constant dense<0.000000e+00> : vector<384x128xf32>
    %34 = tpu.matmul %31, %33, %cst_19 {dimension_numbers = #tpu.dot_dimension_numbers<[1], [0], [0], [1], [0, 0, 1, 1], [], []>} : vector<384x4xf32>, vector<4x128xf32>, vector<384x128xf32> -> vector<384x128xf32>
    %35 = arith.addf %30, %34 : vector<384x128xf32>
    %36 = vector.extract_strided_slice %4 {offsets = [36, 0], sizes = [384, 4], strides = [1, 1]} : vector<424x4xf32> to vector<384x4xf32>
    %c6 = arith.constant 6 : index
    %c0_20 = arith.constant 0 : index
    %c0_21 = arith.constant 0 : index
    %37 = vector.load %arg3[%c6, %c0_20, %c0_21] : memref<9x4x128xf32, #tpu.memory_space<vmem>>, vector<1x4x128xf32>
    %38 = vector.shape_cast %37 : vector<1x4x128xf32> to vector<4x128xf32>
    %cst_22 = arith.constant dense<0.000000e+00> : vector<384x128xf32>
    %39 = tpu.matmul %36, %38, %cst_22 {dimension_numbers = #tpu.dot_dimension_numbers<[1], [0], [0], [1], [0, 0, 1, 1], [], []>} : vector<384x4xf32>, vector<4x128xf32>, vector<384x128xf32> -> vector<384x128xf32>
    %40 = arith.addf %35, %39 : vector<384x128xf32>
    %41 = vector.extract_strided_slice %4 {offsets = [37, 0], sizes = [384, 4], strides = [1, 1]} : vector<424x4xf32> to vector<384x4xf32>
    %c7 = arith.constant 7 : index
    %c0_23 = arith.constant 0 : index
    %c0_24 = arith.constant 0 : index
    %42 = vector.load %arg3[%c7, %c0_23, %c0_24] : memref<9x4x128xf32, #tpu.memory_space<vmem>>, vector<1x4x128xf32>
    %43 = vector.shape_cast %42 : vector<1x4x128xf32> to vector<4x128xf32>
    %cst_25 = arith.constant dense<0.000000e+00> : vector<384x128xf32>
    %44 = tpu.matmul %41, %43, %cst_25 {dimension_numbers = #tpu.dot_dimension_numbers<[1], [0], [0], [1], [0, 0, 1, 1], [], []>} : vector<384x4xf32>, vector<4x128xf32>, vector<384x128xf32> -> vector<384x128xf32>
    %45 = arith.addf %40, %44 : vector<384x128xf32>
    %46 = vector.extract_strided_slice %4 {offsets = [38, 0], sizes = [384, 4], strides = [1, 1]} : vector<424x4xf32> to vector<384x4xf32>
    %c8 = arith.constant 8 : index
    %c0_26 = arith.constant 0 : index
    %c0_27 = arith.constant 0 : index
    %47 = vector.load %arg3[%c8, %c0_26, %c0_27] : memref<9x4x128xf32, #tpu.memory_space<vmem>>, vector<1x4x128xf32>
    %48 = vector.shape_cast %47 : vector<1x4x128xf32> to vector<4x128xf32>
    %cst_28 = arith.constant dense<0.000000e+00> : vector<384x128xf32>
    %49 = tpu.matmul %46, %48, %cst_28 {dimension_numbers = #tpu.dot_dimension_numbers<[1], [0], [0], [1], [0, 0, 1, 1], [], []>} : vector<384x4xf32>, vector<4x128xf32>, vector<384x128xf32> -> vector<384x128xf32>
    %50 = arith.addf %45, %49 : vector<384x128xf32>
    %c0_29 = arith.constant 0 : index
    %c0_30 = arith.constant 0 : index
    %51 = vector.load %arg4[%c0_29, %c0_30] : memref<1x128xf32, #tpu.memory_space<vmem>>, vector<1x128xf32>
    %52 = vector.broadcast %51 : vector<1x128xf32> to vector<384x128xf32>
    %53 = arith.addf %50, %52 : vector<384x128xf32>
    %54 = arith.negf %53 : vector<384x128xf32>
    %55 = math.exp %54 : vector<384x128xf32>
    %cst_31 = arith.constant 1.000000e+00 : f32
    %56 = vector.broadcast %cst_31 : f32 to vector<384x128xf32>
    %57 = arith.addf %56, %55 : vector<384x128xf32>
    %58 = arith.divf %56, %57 : vector<384x128xf32>
    %59 = arith.mulf %53, %58 : vector<384x128xf32>
    %60 = tpu.transpose %59, [1, 0] : vector<384x128xf32> -> vector<128x384xf32>
    %61 = vector.extract_strided_slice %60 {offsets = [0, 0], sizes = [8, 384], strides = [1, 1]} : vector<128x384xf32> to vector<8x384xf32>
    %c0_32 = arith.constant 0 : index
    %c0_33 = arith.constant 0 : index
    %c0_34 = arith.constant 0 : index
    %62 = vector.load %arg5[%c0_32, %c0_33, %c0_34] : memref<1x8x384xf32, #tpu.memory_space<vmem>>, vector<1x8x384xf32>
    %63 = vector.shape_cast %62 : vector<1x8x384xf32> to vector<8x384xf32>
    %64 = vector.shape_cast %61 : vector<8x384xf32> to vector<1x8x384xf32>
    tpu.vector_store %arg5[%c0_32, %c0_33, %c0_34], %64 {strides = array<i32>} : memref<1x8x384xf32, #tpu.memory_space<vmem>>, vector<1x8x384xf32>,
    return
  }
  func.func @transform_0(%arg0: i32, %arg1: i32) -> (i32, i32, i32) {
    %c0_i32 = arith.constant 0 : i32
    %c0_i32_0 = arith.constant 0 : i32
    %c0_i32_1 = arith.constant 0 : i32
    return %arg0, %c0_i32, %c0_i32_0 : i32, i32, i32
  }
  func.func @transform_1(%arg0: i32, %arg1: i32) -> (i32, i32, i32) {
    %c0_i32 = arith.constant 0 : i32
    %c0_i32_0 = arith.constant 0 : i32
    %c0_i32_1 = arith.constant 0 : i32
    %c0_i32_2 = arith.constant 0 : i32
    return %c0_i32, %c0_i32_0, %c0_i32_1 : i32, i32, i32
  }
  func.func @transform_2(%arg0: i32, %arg1: i32) -> (i32, i32) {
    %c0_i32 = arith.constant 0 : i32
    %c0_i32_0 = arith.constant 0 : i32
    %c0_i32_1 = arith.constant 0 : i32
    return %c0_i32, %c0_i32_0 : i32, i32
  }
  func.func @transform_3(%arg0: i32, %arg1: i32) -> (i32, i32, i32) {
    %c0_i32 = arith.constant 0 : i32
    %c0_i32_0 = arith.constant 0 : i32
    return %arg0, %c0_i32, %arg1 : i32, i32, i32
  }
}

</mosaic_0001>

<llo_original>
// kernel: tpu_custom_call.1
$region0: #{tpu_custom_call.1}
  #allocation0 [shape = 'u32[]', space=smem, size = 0x4, offset = 0x4, fixed_abs, tag = 'smem constant byte address 0x4 - core index']
  #allocation1 [shape = 'u32[72,128]{1,0:T(1,128)}', space=vmem, size = 0x9000, scoped, tag = 'internal scratch']
  %s0 = inlined_call_operand.vmem [shape: f32[2,424,4], index: 0, kind: input, shape index: {}]
  %s1 = inlined_call_operand.vmem [shape: f32[9,4,128], index: 1, kind: input, shape index: {}]
  %s2 = inlined_call_operand.vmem [shape: f32[1,128], index: 2, kind: input, shape index: {}]
  %s3 = inlined_call_operand.hbm [shape: f32[2,8,384], index: 3, kind: output, shape index: {}]
  %s4 = sld [smem:[#allocation0]]
  $region45: #{tpu_custom_call.1} parent=0
    _
  %s6 = ssub.s32 1, %s4
  %s7 = scalar_select 0, %s6, %s4
  $region1: #{tpu_custom_call.1} parent=0
    #allocation2 [shape = 'u8[24576]{0}', space=vmem, size = 0x6000, scoped, tag = 'output window, operand 0']
    #allocation3 [shape = 's32[2]{0}', space=sflag, size = 0x8, scoped, tag = 'scoped memory for tpu_custom_call.1']
    %8 = vsyncpa [#allocation3], 0
    %s9 = scalar_lea.sflag [#allocation3], 1
    %10 = vsyncpa %s9, 0
    loop: start=0, step=1, limit=4
    $region2: #{tpu_custom_call.1} parent=1 // loop_pre_header
      _
    $region3: #{tpu_custom_call.1} parent=1 // loop_header
      %s12 = sphi 0, %s16
      %p13 = scmp.ge.s32.totalorder %s12, 4
      %s19 = sphi 0, %s31
      %s20 = sphi 0, %s27
      %s21 = sphi 0, %s19
      %s22 = sphi 0, %s20
      %s23 = sphi 0, %s21
      %s24 = sphi 0, %s22
      %s34 = sphi 0, %s36
      %s37 = sphi 0, %s34
      %s38 = sphi 0, %s37
      %s54 = sphi 0, %s38
      %s58 = sphi 0, %s58
      %s60 = sphi 0, %s58
      %s61 = sphi 0, %s60
      %s75 = sphi 0, %s61
      %s79 = sphi 0, %s79
      %s81 = sphi 0, %s79
      %s82 = sphi 0, %s81
      %s96 = sphi 0, %s82
      %s104 = sphi 0, %s106
      %s107 = sphi 0, %s104
      %s108 = sphi 0, %s107
      %s124 = sphi 0, %s108
    $region4: #{tpu_custom_call.1} parent=1 // loop_header_branch
      %15 = sbr.rel (%p13) target = $region8
    $region5: #{tpu_custom_call.1} parent=1 // loop_body
      %s17 = ssub.s32 %s12, 1
      %s18 = ssub.s32 %s12, 2
      %s25 = sadd.s32 1, %s20
      %p26 = scmp.ge.s32.totalorder %s25, 1
      %s27 = scalar_select %p26, 0, %s25
      %s28 = sadd.s32 1, %s19
      %s29 = scalar_select %p26, %s28, %s19
      %p30 = scmp.ge.s32.totalorder %s29, 2
      %s31 = scalar_select %p30, 0, %s29
      %s32 = ssub.s32 %s19, %s31
      %p33 = scmp.eq.s32.totalorder %s32, 0
      %s35 = sadd.s32 %s34, 1
      %s36 = scalar_select %p33, %s34, %s35
      %p39 = pneg %p33
      %p40 = scmp.eq.s32.totalorder %s12, 1
      %p41 = por %p39, %p40
      %p42 = scmp.ne.s32.totalorder %s34, %s37
      %p43 = scmp.eq.s32.totalorder %s12, 0
      %p44 = por %p42, %p43
      %p45 = scmp.ne.s32.totalorder %s34, %s37
      %p46 = scmp.eq.s32.totalorder %s17, 1
      %p47 = por %p45, %p46
      %p48 = scmp.ne.s32.totalorder %s37, %s38
      %p49 = scmp.eq.s32.totalorder %s17, 0
      %p50 = por %p48, %p49
      %p51 = scmp.ne.s32.totalorder %s37, %s38
      %p52 = scmp.eq.s32.totalorder %s18, 1
      %p53 = por %p51, %p52
      %p55 = scmp.ne.s32.totalorder %s38, %s54
      %p56 = scmp.eq.s32.totalorder %s18, 0
      %p57 = por %p55, %p56
      %s59 = sadd.s32 %s58, 1
      %p62 = scmp.eq.s32.totalorder %s12, 1
      %p63 = scmp.ne.s32.totalorder %s58, %s60
      %p64 = scmp.eq.s32.totalorder %s12, 0
      %p65 = por %p63, %p64
      %p66 = scmp.ne.s32.totalorder %s58, %s60
      %p67 = scmp.eq.s32.totalorder %s17, 1
      %p68 = por %p66, %p67
      %p69 = scmp.ne.s32.totalorder %s60, %s61
      %p70 = scmp.eq.s32.totalorder %s17, 0
      %p71 = por %p69, %p70
      %p72 = scmp.ne.s32.totalorder %s60, %s61
      %p73 = scmp.eq.s32.totalorder %s18, 1
      %p74 = por %p72, %p73
      %p76 = scmp.ne.s32.totalorder %s61, %s75
      %p77 = scmp.eq.s32.totalorder %s18, 0
      %p78 = por %p76, %p77
      %s80 = sadd.s32 %s79, 1
      %p83 = scmp.eq.s32.totalorder %s12, 1
      %p84 = scmp.ne.s32.totalorder %s79, %s81
      %p85 = scmp.eq.s32.totalorder %s12, 0
      %p86 = por %p84, %p85
      %p87 = scmp.ne.s32.totalorder %s79, %s81
      %p88 = scmp.eq.s32.totalorder %s17, 1
      %p89 = por %p87, %p88
      %p90 = scmp.ne.s32.totalorder %s81, %s82
      %p91 = scmp.eq.s32.totalorder %s17, 0
      %p92 = por %p90, %p91
      %p93 = scmp.ne.s32.totalorder %s81, %s82
      %p94 = scmp.eq.s32.totalorder %s18, 1
      %p95 = por %p93, %p94
      %p97 = scmp.ne.s32.totalorder %s82, %s96
      %p98 = scmp.eq.s32.totalorder %s18, 0
      %p99 = por %p97, %p98
      %s100 = ssub.s32 %s19, %s31
      %s101 = ssub.s32 %s20, %s27
      %s102 = sor.u32 %s100, %s101
      %p103 = scmp.eq.s32.totalorder %s102, 0
      %s105 = sadd.s32 %s104, 1
      %s106 = scalar_select %p103, %s104, %s105
      %p109 = pneg %p103
      %p110 = scmp.eq.s32.totalorder %s12, 1
      %p111 = por %p109, %p110
      %p112 = scmp.ne.s32.totalorder %s104, %s107
      %p113 = scmp.eq.s32.totalorder %s12, 0
      %p114 = por %p112, %p113
      %p115 = scmp.ne.s32.totalorder %s104, %s107
      %p116 = scmp.eq.s32.totalorder %s17, 1
      %p117 = por %p115, %p116
      %p118 = scmp.ne.s32.totalorder %s107, %s108
      %p119 = scmp.eq.s32.totalorder %s17, 0
      %p120 = por %p118, %p119
      %p121 = scmp.ne.s32.totalorder %s107, %s108
      %p122 = scmp.eq.s32.totalorder %s18, 1
      %p123 = por %p121, %p122
      %p125 = scmp.ne.s32.totalorder %s108, %s124
      %p126 = scmp.eq.s32.totalorder %s18, 0
      %p127 = por %p125, %p126
      %p128 = scmp.le.s32.totalorder 1, %s12
      %p129 = scmp.lt.s32.totalorder %s12, 3
      %p130 = pnand %p128, %p129
      %p131 = pneg %p130
      // Predicated region
      $region9: #{tpu_custom_call.1} parent=5 // pred_check
        _
      $region10: #{tpu_custom_call.1} parent=5 // pred_check_branch
        %133 = sbr.rel (%p130) target = $region12
      $region11: #{tpu_custom_call.1} parent=5 // pred_region
        %s134 = ssub.s32 %s12, 1
        // Predicated region
        $region13: #{tpu_custom_call.1} parent=11 // pred_check
          %p135 = pneg %p71
        $region14: #{tpu_custom_call.1} parent=11 // pred_check_branch
          %137 = sbr.rel (%p135) target = $region16
        $region15: #{tpu_custom_call.1} parent=11 // pred_region
          _
        $region16: #{tpu_custom_call.1} parent=11 // pred_fallthru
          _
        // Predicated region
        $region17: #{tpu_custom_call.1} parent=11 // pred_check
          %p138 = pneg %p92
        $region18: #{tpu_custom_call.1} parent=11 // pred_check_branch
          %140 = sbr.rel (%p138) target = $region20
        $region19: #{tpu_custom_call.1} parent=11 // pred_region
          _
        $region20: #{tpu_custom_call.1} parent=11 // pred_fallthru
          _
      $region12: #{tpu_custom_call.1} parent=5 // pred_fallthru
        _
      %p141 = scmp.lt.s32.totalorder %s12, 2
      // Predicated region
      $region21: #{tpu_custom_call.1} parent=5 // pred_check
        %p142 = pneg %p141
      $region22: #{tpu_custom_call.1} parent=5 // pred_check_branch
        %144 = sbr.rel (%p142) target = $region24
      $region23: #{tpu_custom_call.1} parent=5 // pred_region
        // Predicated region
        $region25: #{tpu_custom_call.1} parent=23 // pred_check
          %p145 = pneg %p44
        $region26: #{tpu_custom_call.1} parent=23 // pred_check_branch
          %147 = sbr.rel (%p145) target = $region28
        $region27: #{tpu_custom_call.1} parent=23 // pred_region
          %p148 = scmp.lt.s32.totalorder %s19, 1
          %s149 = scalar_select %p148, %s19, 1
          %s150 = smul.addr %s149, 53
          %s151 = smul.addr %s150, 8
          %s152 = scalar_lea.vmem %s0, %s151
        $region28: #{tpu_custom_call.1} parent=23 // pred_fallthru
          _
      $region24: #{tpu_custom_call.1} parent=5 // pred_fallthru
        _
      %p153 = scmp.le.s32.totalorder 1, %s12
      %p154 = scmp.lt.s32.totalorder %s12, 3
      %p155 = pnand %p153, %p154
      %p156 = pneg %p155
      // Predicated region
      $region29: #{tpu_custom_call.1} parent=5 // pred_check
        _
      $region30: #{tpu_custom_call.1} parent=5 // pred_check_branch
        %158 = sbr.rel (%p155) target = $region32
      $region31: #{tpu_custom_call.1} parent=5 // pred_region
        %s159 = ssub.s32 %s12, 1
        %p160 = scmp.lt.s32.totalorder %s21, 1
        %s161 = scalar_select %p160, %s21, 1
        %s162 = smul.addr %s161, 53
        %s163 = smul.addr %s162, 8
        %s164 = scalar_lea.vmem %s0, %s163
        %p165 = pneg %p50
        %p166 = pneg %p47
        %p167 = pneg %p71
        %p168 = pneg %p68
        %p169 = pneg %p92
        %p170 = pneg %p89
        %p171 = pneg %p120
        %p172 = pneg %p117
        %s173 = sand.u32 %s107, 1
        %s174 = scalar_lea.sflag [#allocation3], %s173
        %s175 = sand.u32 %s107, 1
        %s176 = smul.addr %s175, 24
        %s177 = scalar_lea.vmem [#allocation2], %s176
        %p178 = scmp.lt.s32.totalorder %s21, 1
        %s179 = scalar_select %p178, %s21, 1
        %s180 = smul.addr %s179, 53
        %s181 = smul.addr %s180, 8
        %s182 = scalar_lea.vmem %s0, %s181
        %s183 = smul.u32 3, %s22
        %s184 = smul.u32 %s22, 384
        %s185 = scalar_lea.vmem %s182, %s184
        %v186 = vld [vmem:[%s185] sm:$0xff]
        %v187 = vld [vmem:[%s185 + $0x8] sm:$0xff]
        %v188 = vld [vmem:[%s185 + $0x10] sm:$0xff]
        %v189 = vld [vmem:[%s185 + $0x18] sm:$0xff]
        %v190 = vld [vmem:[%s185 + $0x20] sm:$0xff]
        %v191 = vld [vmem:[%s185 + $0x28] sm:$0xff]
        %v192 = vld [vmem:[%s185 + $0x30] sm:$0xff]
        %v193 = vld [vmem:[%s185 + $0x38] sm:$0xff]
        %v194 = vld [vmem:[%s185 + $0x40] sm:$0xff]
        %v195 = vld [vmem:[%s185 + $0x48] sm:$0xff]
        %v196 = vld [vmem:[%s185 + $0x50] sm:$0xff]
        %v197 = vld [vmem:[%s185 + $0x58] sm:$0xff]
        %v198 = vld [vmem:[%s185 + $0x60] sm:$0xff]
        %v199 = vld [vmem:[%s185 + $0x68] sm:$0xff]
        %v200 = vld [vmem:[%s185 + $0x70] sm:$0xff]
        %v201 = vld [vmem:[%s185 + $0x78] sm:$0xff]
        %v202 = vld [vmem:[%s185 + $0x80] sm:$0xff]
        %v203 = vld [vmem:[%s185 + $0x88] sm:$0xff]
        %v204 = vld [vmem:[%s185 + $0x90] sm:$0xff]
        %v205 = vld [vmem:[%s185 + $0x98] sm:$0xff]
        %v206 = vld [vmem:[%s185 + $0xa0] sm:$0xff]
        %v207 = vld [vmem:[%s185 + $0xa8] sm:$0xff]
        %v208 = vld [vmem:[%s185 + $0xb0] sm:$0xff]
        %v209 = vld [vmem:[%s185 + $0xb8] sm:$0xff]
        %v210 = vld [vmem:[%s185 + $0xc0] sm:$0xff]
        %v211 = vld [vmem:[%s185 + $0xc8] sm:$0xff]
        %v212 = vld [vmem:[%s185 + $0xd0] sm:$0xff]
        %v213 = vld [vmem:[%s185 + $0xd8] sm:$0xff]
        %v214 = vld [vmem:[%s185 + $0xe0] sm:$0xff]
        %v215 = vld [vmem:[%s185 + $0xe8] sm:$0xff]
        %v216 = vld [vmem:[%s185 + $0xf0] sm:$0xff]
        %v217 = vld [vmem:[%s185 + $0xf8] sm:$0xff]
        %v218 = vld [vmem:[%s185 + $0x100] sm:$0xff]
        %v219 = vld [vmem:[%s185 + $0x108] sm:$0xff]
        %v220 = vld [vmem:[%s185 + $0x110] sm:$0xff]
        %v221 = vld [vmem:[%s185 + $0x118] sm:$0xff]
        %v222 = vld [vmem:[%s185 + $0x120] sm:$0xff]
        %v223 = vld [vmem:[%s185 + $0x128] sm:$0xff]
        %v224 = vld [vmem:[%s185 + $0x130] sm:$0xff]
        %v225 = vld [vmem:[%s185 + $0x138] sm:$0xff]
        %v226 = vld [vmem:[%s185 + $0x140] sm:$0xff]
        %v227 = vld [vmem:[%s185 + $0x148] sm:$0xff]
        %v228 = vld [vmem:[%s185 + $0x150] sm:$0xff]
        %v229 = vld [vmem:[%s185 + $0x158] sm:$0xff]
        %v230 = vld [vmem:[%s185 + $0x160] sm:$0xff]
        %v231 = vld [vmem:[%s185 + $0x168] sm:$0xff]
        %v232 = vld [vmem:[%s185 + $0x170] sm:$0xff]
        %v233 = vld [vmem:[%s185 + $0x178] sm:$0xff]
        %v234 = vld [vmem:[%s185 + $0x180] sm:$0xff]
        %v235 = vld [vmem:[%s185 + $0x188] sm:$0xff]
        %v236 = vld [vmem:[%s185 + $0x190] sm:$0xff]
        %v237 = vld [vmem:[%s185 + $0x198] sm:$0xff]
        %v238 = vld [vmem:[%s185 + $0x1a0] sm:$0xff]
        %v239 = vld [vmem:[%s1] sm:$0xf]
        %s240 = scalar_lea.vmem %s1, 4
        %v241 = vld [vmem:[%s240] sm:$0xf]
        %vm291 = vcmask 1046528
        %v292 = vrot.slane %v186, 1
        %v293 = vrot.slane %v187, 1
        %v294 = vsel %vm291, %v292, %v293
        %v295 = vrot.slane %v188, 1
        %v296 = vsel %vm291, %v293, %v295
        %v297 = vrot.slane %v189, 1
        %v298 = vsel %vm291, %v295, %v297
        %v299 = vrot.slane %v190, 1
        %v300 = vsel %vm291, %v297, %v299
        %v301 = vrot.slane %v191, 1
        %v302 = vsel %vm291, %v299, %v301
        %v303 = vrot.slane %v192, 1
        %v304 = vsel %vm291, %v301, %v303
        %v305 = vrot.slane %v193, 1
        %v306 = vsel %vm291, %v303, %v305
        %v307 = vrot.slane %v194, 1
        %v308 = vsel %vm291, %v305, %v307
        %v309 = vrot.slane %v195, 1
        %v310 = vsel %vm291, %v307, %v309
        %v311 = vrot.slane %v196, 1
        %v312 = vsel %vm291, %v309, %v311
        %v313 = vrot.slane %v197, 1
        %v314 = vsel %vm291, %v311, %v313
        %v315 = vrot.slane %v198, 1
        %v316 = vsel %vm291, %v313, %v315
        %v317 = vrot.slane %v199, 1
        %v318 = vsel %vm291, %v315, %v317
        %v319 = vrot.slane %v200, 1
        %v320 = vsel %vm291, %v317, %v319
        %v321 = vrot.slane %v201, 1
        %v322 = vsel %vm291, %v319, %v321
        %v323 = vrot.slane %v202, 1
        %v324 = vsel %vm291, %v321, %v323
        %v325 = vrot.slane %v203, 1
        %v326 = vsel %vm291, %v323, %v325
        %v327 = vrot.slane %v204, 1
        %v328 = vsel %vm291, %v325, %v327
        %v329 = vrot.slane %v205, 1
        %v330 = vsel %vm291, %v327, %v329
        %v331 = vrot.slane %v206, 1
        %v332 = vsel %vm291, %v329, %v331
        %v333 = vrot.slane %v207, 1
        %v334 = vsel %vm291, %v331, %v333
        %v335 = vrot.slane %v208, 1
        %v336 = vsel %vm291, %v333, %v335
        %v337 = vrot.slane %v209, 1
        %v338 = vsel %vm291, %v335, %v337
        %v339 = vrot.slane %v210, 1
        %v340 = vsel %vm291, %v337, %v339
        %v341 = vrot.slane %v211, 1
        %v342 = vsel %vm291, %v339, %v341
        %v343 = vrot.slane %v212, 1
        %v344 = vsel %vm291, %v341, %v343
        %v345 = vrot.slane %v213, 1
        %v346 = vsel %vm291, %v343, %v345
        %v347 = vrot.slane %v214, 1
        %v348 = vsel %vm291, %v345, %v347
        %v349 = vrot.slane %v215, 1
        %v350 = vsel %vm291, %v347, %v349
        %v351 = vrot.slane %v216, 1
        %v352 = vsel %vm291, %v349, %v351
        %v353 = vrot.slane %v217, 1
        %v354 = vsel %vm291, %v351, %v353
        %v355 = vrot.slane %v218, 1
        %v356 = vsel %vm291, %v353, %v355
        %v357 = vrot.slane %v219, 1
        %v358 = vsel %vm291, %v355, %v357
        %v359 = vrot.slane %v220, 1
        %v360 = vsel %vm291, %v357, %v359
        %v361 = vrot.slane %v221, 1
        %v362 = vsel %vm291, %v359, %v361
        %v363 = vrot.slane %v222, 1
        %v364 = vsel %vm291, %v361, %v363
        %v365 = vrot.slane %v223, 1
        %v366 = vsel %vm291, %v363, %v365
        %v367 = vrot.slane %v224, 1
        %v368 = vsel %vm291, %v365, %v367
        %v369 = vrot.slane %v225, 1
        %v370 = vsel %vm291, %v367, %v369
        %v371 = vrot.slane %v226, 1
        %v372 = vsel %vm291, %v369, %v371
        %v373 = vrot.slane %v227, 1
        %v374 = vsel %vm291, %v371, %v373
        %v375 = vrot.slane %v228, 1
        %v376 = vsel %vm291, %v373, %v375
        %v377 = vrot.slane %v229, 1
        %v378 = vsel %vm291, %v375, %v377
        %v379 = vrot.slane %v230, 1
        %v380 = vsel %vm291, %v377, %v379
        %v381 = vrot.slane %v231, 1
        %v382 = vsel %vm291, %v379, %v381
        %v383 = vrot.slane %v232, 1
        %v384 = vsel %vm291, %v381, %v383
        %v385 = vrot.slane %v233, 1
        %v386 = vsel %vm291, %v383, %v385
        %v387 = vrot.slane %v234, 1
        %v388 = vsel %vm291, %v385, %v387
        %vm389 = vcmask 31744
        %v390 = vsel %vm389, %v294, 0
        %v392 = vsel %vm389, %v296, 0
        %v394 = vsel %vm389, %v298, 0
        %v396 = vsel %vm389, %v300, 0
        %v398 = vsel %vm389, %v302, 0
        %v400 = vsel %vm389, %v304, 0
        %v402 = vsel %vm389, %v306, 0
        %v404 = vsel %vm389, %v308, 0
        %v406 = vsel %vm389, %v310, 0
        %v408 = vsel %vm389, %v312, 0
        %v410 = vsel %vm389, %v314, 0
        %v412 = vsel %vm389, %v316, 0
        %v414 = vsel %vm389, %v318, 0
        %v416 = vsel %vm389, %v320, 0
        %v418 = vsel %vm389, %v322, 0
        %v420 = vsel %vm389, %v324, 0
        %v422 = vsel %vm389, %v326, 0
        %v424 = vsel %vm389, %v328, 0
        %v426 = vsel %vm389, %v330, 0
        %v428 = vsel %vm389, %v332, 0
        %v430 = vsel %vm389, %v334, 0
        %v432 = vsel %vm389, %v336, 0
        %v434 = vsel %vm389, %v338, 0
        %v436 = vsel %vm389, %v340, 0
        %v438 = vsel %vm389, %v342, 0
        %v440 = vsel %vm389, %v344, 0
        %v442 = vsel %vm389, %v346, 0
        %v444 = vsel %vm389, %v348, 0
        %v446 = vsel %vm389, %v350, 0
        %v448 = vsel %vm389, %v352, 0
        %v450 = vsel %vm389, %v354, 0
        %v452 = vsel %vm389, %v356, 0
        %v454 = vsel %vm389, %v358, 0
        %v456 = vsel %vm389, %v360, 0
        %v458 = vsel %vm389, %v362, 0
        %v460 = vsel %vm389, %v364, 0
        %v462 = vsel %vm389, %v366, 0
        %v464 = vsel %vm389, %v368, 0
        %v466 = vsel %vm389, %v370, 0
        %v468 = vsel %vm389, %v372, 0
        %v470 = vsel %vm389, %v374, 0
        %v472 = vsel %vm389, %v376, 0
        %v474 = vsel %vm389, %v378, 0
        %v476 = vsel %vm389, %v380, 0
        %v478 = vsel %vm389, %v382, 0
        %v480 = vsel %vm389, %v384, 0
        %v482 = vsel %vm389, %v386, 0
        %v484 = vsel %vm389, %v388, 0
        %vm486 = vcmask 1043456
        %v488 = vsel %vm486, %v241, 0
        %490 = vmatpush.msra.mxu0 0.0
        %491 = vmatpush.msra.mxu0 0.0
        %492 = vmatpush.msra.mxu0 0.0
        %493 = vmatpush.msra.mxu0 0.0
        %494 = vmatpush.msra.mxu0 0.0
        %495 = vmatpush.msra.mxu0 0.0
        %496 = vmatpush.msra.mxu0 0.0
        %497 = vmatpush.msra.mxu0 0.0
        %498 = vmatpush.msra.mxu0 0.0
        %499 = vmatpush.msra.mxu0 0.0
        %500 = vmatpush.msra.mxu0 0.0
        %501 = vmatpush.msra.mxu0 0.0
        %502 = vmatpush.msra.mxu0 0.0
        %503 = vmatpush.msra.mxu0 0.0
        %504 = vmatpush.msra.mxu0 0.0
        %505 = vmatpush.msra.mxu0 %v488
        %506 = vmatmul.f32.gmra.mxu0 %v390
        %v507 = vpop.f32.mrf.mxu0
        %v508 = vadd.f32 0.0, %v507
        %509 = vmatmul.f32.gmra.mxu0 %v392
        %v510 = vpop.f32.mrf.mxu0
        %v511 = vadd.f32 0.0, %v510
        %512 = vmatmul.f32.gmra.mxu0 %v394
        %v513 = vpop.f32.mrf.mxu0
        %v514 = vadd.f32 0.0, %v513
        %515 = vmatmul.f32.gmra.mxu0 %v396
        %v516 = vpop.f32.mrf.mxu0
        %v517 = vadd.f32 0.0, %v516
        %518 = vmatmul.f32.gmra.mxu0 %v398
        %v519 = vpop.f32.mrf.mxu0
        %v520 = vadd.f32 0.0, %v519
        %521 = vmatmul.f32.gmra.mxu0 %v400
        %v522 = vpop.f32.mrf.mxu0
        %v523 = vadd.f32 0.0, %v522
        %524 = vmatmul.f32.gmra.mxu0 %v402
        %v525 = vpop.f32.mrf.mxu0
        %v526 = vadd.f32 0.0, %v525
        %527 = vmatmul.f32.gmra.mxu0 %v404
        %v528 = vpop.f32.mrf.mxu0
        %v529 = vadd.f32 0.0, %v528
        %530 = vmatmul.f32.gmra.mxu0 %v406
        %v531 = vpop.f32.mrf.mxu0
        %v532 = vadd.f32 0.0, %v531
        %533 = vmatmul.f32.gmra.mxu0 %v408
        %v534 = vpop.f32.mrf.mxu0
        %v535 = vadd.f32 0.0, %v534
        %536 = vmatmul.f32.gmra.mxu0 %v410
        %v537 = vpop.f32.mrf.mxu0
        %v538 = vadd.f32 0.0, %v537
        %539 = vmatmul.f32.gmra.mxu0 %v412
        %v540 = vpop.f32.mrf.mxu0
        %v541 = vadd.f32 0.0, %v540
        %542 = vmatmul.f32.gmra.mxu0 %v414
        %v543 = vpop.f32.mrf.mxu0
        %v544 = vadd.f32 0.0, %v543
        %545 = vmatmul.f32.gmra.mxu0 %v416
        %v546 = vpop.f32.mrf.mxu0
        %v547 = vadd.f32 0.0, %v546
        %548 = vmatmul.f32.gmra.mxu0 %v418
        %v549 = vpop.f32.mrf.mxu0
        %v550 = vadd.f32 0.0, %v549
        %551 = vmatmul.f32.gmra.mxu0 %v420
        %v552 = vpop.f32.mrf.mxu0
        %v553 = vadd.f32 0.0, %v552
        %554 = vmatmul.f32.gmra.mxu0 %v422
        %v555 = vpop.f32.mrf.mxu0
        %v556 = vadd.f32 0.0, %v555
        %557 = vmatmul.f32.gmra.mxu0 %v424
        %v558 = vpop.f32.mrf.mxu0
        %v559 = vadd.f32 0.0, %v558
        %560 = vmatmul.f32.gmra.mxu0 %v426
        %v561 = vpop.f32.mrf.mxu0
        %v562 = vadd.f32 0.0, %v561
        %563 = vmatmul.f32.gmra.mxu0 %v428
        %v564 = vpop.f32.mrf.mxu0
        %v565 = vadd.f32 0.0, %v564
        %566 = vmatmul.f32.gmra.mxu0 %v430
        %v567 = vpop.f32.mrf.mxu0
        %v568 = vadd.f32 0.0, %v567
        %569 = vmatmul.f32.gmra.mxu0 %v432
        %v570 = vpop.f32.mrf.mxu0
        %v571 = vadd.f32 0.0, %v570
        %572 = vmatmul.f32.gmra.mxu0 %v434
        %v573 = vpop.f32.mrf.mxu0
        %v574 = vadd.f32 0.0, %v573
        %575 = vmatmul.f32.gmra.mxu0 %v436
        %v576 = vpop.f32.mrf.mxu0
        %v577 = vadd.f32 0.0, %v576
        %578 = vmatmul.f32.gmra.mxu0 %v438
        %v579 = vpop.f32.mrf.mxu0
        %v580 = vadd.f32 0.0, %v579
        %581 = vmatmul.f32.gmra.mxu0 %v440
        %v582 = vpop.f32.mrf.mxu0
        %v583 = vadd.f32 0.0, %v582
        %584 = vmatmul.f32.gmra.mxu0 %v442
        %v585 = vpop.f32.mrf.mxu0
        %v586 = vadd.f32 0.0, %v585
        %587 = vmatmul.f32.gmra.mxu0 %v444
        %v588 = vpop.f32.mrf.mxu0
        %v589 = vadd.f32 0.0, %v588
        %590 = vmatmul.f32.gmra.mxu0 %v446
        %v591 = vpop.f32.mrf.mxu0
        %v592 = vadd.f32 0.0, %v591
        %593 = vmatmul.f32.gmra.mxu0 %v448
        %v594 = vpop.f32.mrf.mxu0
        %v595 = vadd.f32 0.0, %v594
        %596 = vmatmul.f32.gmra.mxu0 %v450
        %v597 = vpop.f32.mrf.mxu0
        %v598 = vadd.f32 0.0, %v597
        %599 = vmatmul.f32.gmra.mxu0 %v452
        %v600 = vpop.f32.mrf.mxu0
        %v601 = vadd.f32 0.0, %v600
        %602 = vmatmul.f32.gmra.mxu0 %v454
        %v603 = vpop.f32.mrf.mxu0
        %v604 = vadd.f32 0.0, %v603
        %605 = vmatmul.f32.gmra.mxu0 %v456
        %v606 = vpop.f32.mrf.mxu0
        %v607 = vadd.f32 0.0, %v606
        %608 = vmatmul.f32.gmra.mxu0 %v458
        %v609 = vpop.f32.mrf.mxu0
        %v610 = vadd.f32 0.0, %v609
        %611 = vmatmul.f32.gmra.mxu0 %v460
        %v612 = vpop.f32.mrf.mxu0
        %v613 = vadd.f32 0.0, %v612
        %614 = vmatmul.f32.gmra.mxu0 %v462
        %v615 = vpop.f32.mrf.mxu0
        %v616 = vadd.f32 0.0, %v615
        %617 = vmatmul.f32.gmra.mxu0 %v464
        %v618 = vpop.f32.mrf.mxu0
        %v619 = vadd.f32 0.0, %v618
        %620 = vmatmul.f32.gmra.mxu0 %v466
        %v621 = vpop.f32.mrf.mxu0
        %v622 = vadd.f32 0.0, %v621
        %623 = vmatmul.f32.gmra.mxu0 %v468
        %v624 = vpop.f32.mrf.mxu0
        %v625 = vadd.f32 0.0, %v624
        %626 = vmatmul.f32.gmra.mxu0 %v470
        %v627 = vpop.f32.mrf.mxu0
        %v628 = vadd.f32 0.0, %v627
        %629 = vmatmul.f32.gmra.mxu0 %v472
        %v630 = vpop.f32.mrf.mxu0
        %v631 = vadd.f32 0.0, %v630
        %632 = vmatmul.f32.gmra.mxu0 %v474
        %v633 = vpop.f32.mrf.mxu0
        %v634 = vadd.f32 0.0, %v633
        %635 = vmatmul.f32.gmra.mxu0 %v476
        %v636 = vpop.f32.mrf.mxu0
        %v637 = vadd.f32 0.0, %v636
        %638 = vmatmul.f32.gmra.mxu0 %v478
        %v639 = vpop.f32.mrf.mxu0
        %v640 = vadd.f32 0.0, %v639
        %641 = vmatmul.f32.gmra.mxu0 %v480
        %v642 = vpop.f32.mrf.mxu0
        %v643 = vadd.f32 0.0, %v642
        %644 = vmatmul.f32.gmra.mxu0 %v482
        %v645 = vpop.f32.mrf.mxu0
        %v646 = vadd.f32 0.0, %v645
        %647 = vmatmul.f32.gmra.mxu0 %v484
        %v648 = vpop.f32.mrf.mxu0
        %v649 = vadd.f32 0.0, %v648
        %650 = vdwg.mxu0
        %v651 = vsel %vm389, %v186, 0
        %v653 = vsel %vm389, %v187, 0
        %v655 = vsel %vm389, %v188, 0
        %v657 = vsel %vm389, %v189, 0
        %v659 = vsel %vm389, %v190, 0
        %v661 = vsel %vm389, %v191, 0
        %v663 = vsel %vm389, %v192, 0
        %v665 = vsel %vm389, %v193, 0
        %v667 = vsel %vm389, %v194, 0
        %v669 = vsel %vm389, %v195, 0
        %v671 = vsel %vm389, %v196, 0
        %v673 = vsel %vm389, %v197, 0
        %v675 = vsel %vm389, %v198, 0
        %v677 = vsel %vm389, %v199, 0
        %v679 = vsel %vm389, %v200, 0
        %v681 = vsel %vm389, %v201, 0
        %v683 = vsel %vm389, %v202, 0
        %v685 = vsel %vm389, %v203, 0
        %v687 = vsel %vm389, %v204, 0
        %v689 = vsel %vm389, %v205, 0
        %v691 = vsel %vm389, %v206, 0
        %v693 = vsel %vm389, %v207, 0
        %v695 = vsel %vm389, %v208, 0
        %v697 = vsel %vm389, %v209, 0
        %v699 = vsel %vm389, %v210, 0
        %v701 = vsel %vm389, %v211, 0
        %v703 = vsel %vm389, %v212, 0
        %v705 = vsel %vm389, %v213, 0
        %v707 = vsel %vm389, %v214, 0
        %v709 = vsel %vm389, %v215, 0
        %v711 = vsel %vm389, %v216, 0
        %v713 = vsel %vm389, %v217, 0
        %v715 = vsel %vm389, %v218, 0
        %v717 = vsel %vm389, %v219, 0
        %v719 = vsel %vm389, %v220, 0
        %v721 = vsel %vm389, %v221, 0
        %v723 = vsel %vm389, %v222, 0
        %v725 = vsel %vm389, %v223, 0
        %v727 = vsel %vm389, %v224, 0
        %v729 = vsel %vm389, %v225, 0
        %v731 = vsel %vm389, %v226, 0
        %v733 = vsel %vm389, %v227, 0
        %v735 = vsel %vm389, %v228, 0
        %v737 = vsel %vm389, %v229, 0
        %v739 = vsel %vm389, %v230, 0
        %v741 = vsel %vm389, %v231, 0
        %v743 = vsel %vm389, %v232, 0
        %v745 = vsel %vm389, %v233, 0
        %v748 = vsel %vm486, %v239, 0
        %750 = vmatpush.msra.mxu0 0.0
        %751 = vmatpush.msra.mxu0 0.0
        %752 = vmatpush.msra.mxu0 0.0
        %753 = vmatpush.msra.mxu0 0.0
        %754 = vmatpush.msra.mxu0 0.0
        %755 = vmatpush.msra.mxu0 0.0
        %756 = vmatpush.msra.mxu0 0.0
        %757 = vmatpush.msra.mxu0 0.0
        %758 = vmatpush.msra.mxu0 0.0
        %759 = vmatpush.msra.mxu0 0.0
        %760 = vmatpush.msra.mxu0 0.0
        %761 = vmatpush.msra.mxu0 0.0
        %762 = vmatpush.msra.mxu0 0.0
        %763 = vmatpush.msra.mxu0 0.0
        %764 = vmatpush.msra.mxu0 0.0
        %765 = vmatpush.msra.mxu0 %v748
        %766 = vmatmul.f32.gmra.mxu0 %v651
        %v767 = vpop.f32.mrf.mxu0
        %v768 = vadd.f32 %v508, %v767
        %769 = vmatmul.f32.gmra.mxu0 %v653
        %v770 = vpop.f32.mrf.mxu0
        %v771 = vadd.f32 %v511, %v770
        %772 = vmatmul.f32.gmra.mxu0 %v655
        %v773 = vpop.f32.mrf.mxu0
        %v774 = vadd.f32 %v514, %v773
        %775 = vmatmul.f32.gmra.mxu0 %v657
        %v776 = vpop.f32.mrf.mxu0
        %v777 = vadd.f32 %v517, %v776
        %778 = vmatmul.f32.gmra.mxu0 %v659
        %v779 = vpop.f32.mrf.mxu0
        %v780 = vadd.f32 %v520, %v779
        %781 = vmatmul.f32.gmra.mxu0 %v661
        %v782 = vpop.f32.mrf.mxu0
        %v783 = vadd.f32 %v523, %v782
        %784 = vmatmul.f32.gmra.mxu0 %v663
        %v785 = vpop.f32.mrf.mxu0
        %v786 = vadd.f32 %v526, %v785
        %787 = vmatmul.f32.gmra.mxu0 %v665
        %v788 = vpop.f32.mrf.mxu0
        %v789 = vadd.f32 %v529, %v788
        %790 = vmatmul.f32.gmra.mxu0 %v667
        %v791 = vpop.f32.mrf.mxu0
        %v792 = vadd.f32 %v532, %v791
        %793 = vmatmul.f32.gmra.mxu0 %v669
        %v794 = vpop.f32.mrf.mxu0
        %v795 = vadd.f32 %v535, %v794
        %796 = vmatmul.f32.gmra.mxu0 %v671
        %v797 = vpop.f32.mrf.mxu0
        %v798 = vadd.f32 %v538, %v797
        %799 = vmatmul.f32.gmra.mxu0 %v673
        %v800 = vpop.f32.mrf.mxu0
        %v801 = vadd.f32 %v541, %v800
        %802 = vmatmul.f32.gmra.mxu0 %v675
        %v803 = vpop.f32.mrf.mxu0
        %v804 = vadd.f32 %v544, %v803
        %805 = vmatmul.f32.gmra.mxu0 %v677
        %v806 = vpop.f32.mrf.mxu0
        %v807 = vadd.f32 %v547, %v806
        %808 = vmatmul.f32.gmra.mxu0 %v679
        %v809 = vpop.f32.mrf.mxu0
        %v810 = vadd.f32 %v550, %v809
        %811 = vmatmul.f32.gmra.mxu0 %v681
        %v812 = vpop.f32.mrf.mxu0
        %v813 = vadd.f32 %v553, %v812
        %814 = vmatmul.f32.gmra.mxu0 %v683
        %v815 = vpop.f32.mrf.mxu0
        %v816 = vadd.f32 %v556, %v815
        %817 = vmatmul.f32.gmra.mxu0 %v685
        %v818 = vpop.f32.mrf.mxu0
        %v819 = vadd.f32 %v559, %v818
        %820 = vmatmul.f32.gmra.mxu0 %v687
        %v821 = vpop.f32.mrf.mxu0
        %v822 = vadd.f32 %v562, %v821
        %823 = vmatmul.f32.gmra.mxu0 %v689
        %v824 = vpop.f32.mrf.mxu0
        %v825 = vadd.f32 %v565, %v824
        %826 = vmatmul.f32.gmra.mxu0 %v691
        %v827 = vpop.f32.mrf.mxu0
        %v828 = vadd.f32 %v568, %v827
        %829 = vmatmul.f32.gmra.mxu0 %v693
        %v830 = vpop.f32.mrf.mxu0
        %v831 = vadd.f32 %v571, %v830
        %832 = vmatmul.f32.gmra.mxu0 %v695
        %v833 = vpop.f32.mrf.mxu0
        %v834 = vadd.f32 %v574, %v833
        %835 = vmatmul.f32.gmra.mxu0 %v697
        %v836 = vpop.f32.mrf.mxu0
        %v837 = vadd.f32 %v577, %v836
        %838 = vmatmul.f32.gmra.mxu0 %v699
        %v839 = vpop.f32.mrf.mxu0
        %v840 = vadd.f32 %v580, %v839
        %841 = vmatmul.f32.gmra.mxu0 %v701
        %v842 = vpop.f32.mrf.mxu0
        %v843 = vadd.f32 %v583, %v842
        %844 = vmatmul.f32.gmra.mxu0 %v703
        %v845 = vpop.f32.mrf.mxu0
        %v846 = vadd.f32 %v586, %v845
        %847 = vmatmul.f32.gmra.mxu0 %v705
        %v848 = vpop.f32.mrf.mxu0
        %v849 = vadd.f32 %v589, %v848
        %850 = vmatmul.f32.gmra.mxu0 %v707
        %v851 = vpop.f32.mrf.mxu0
        %v852 = vadd.f32 %v592, %v851
        %853 = vmatmul.f32.gmra.mxu0 %v709
        %v854 = vpop.f32.mrf.mxu0
        %v855 = vadd.f32 %v595, %v854
        %856 = vmatmul.f32.gmra.mxu0 %v711
        %v857 = vpop.f32.mrf.mxu0
        %v858 = vadd.f32 %v598, %v857
        %859 = vmatmul.f32.gmra.mxu0 %v713
        %v860 = vpop.f32.mrf.mxu0
        %v861 = vadd.f32 %v601, %v860
        %862 = vmatmul.f32.gmra.mxu0 %v715
        %v863 = vpop.f32.mrf.mxu0
        %v864 = vadd.f32 %v604, %v863
        %865 = vmatmul.f32.gmra.mxu0 %v717
        %v866 = vpop.f32.mrf.mxu0
        %v867 = vadd.f32 %v607, %v866
        %868 = vmatmul.f32.gmra.mxu0 %v719
        %v869 = vpop.f32.mrf.mxu0
        %v870 = vadd.f32 %v610, %v869
        %871 = vmatmul.f32.gmra.mxu0 %v721
        %v872 = vpop.f32.mrf.mxu0
        %v873 = vadd.f32 %v613, %v872
        %874 = vmatmul.f32.gmra.mxu0 %v723
        %v875 = vpop.f32.mrf.mxu0
        %v876 = vadd.f32 %v616, %v875
        %877 = vmatmul.f32.gmra.mxu0 %v725
        %v878 = vpop.f32.mrf.mxu0
        %v879 = vadd.f32 %v619, %v878
        %880 = vmatmul.f32.gmra.mxu0 %v727
        %v881 = vpop.f32.mrf.mxu0
        %v882 = vadd.f32 %v622, %v881
        %883 = vmatmul.f32.gmra.mxu0 %v729
        %v884 = vpop.f32.mrf.mxu0
        %v885 = vadd.f32 %v625, %v884
        %886 = vmatmul.f32.gmra.mxu0 %v731
        %v887 = vpop.f32.mrf.mxu0
        %v888 = vadd.f32 %v628, %v887
        %889 = vmatmul.f32.gmra.mxu0 %v733
        %v890 = vpop.f32.mrf.mxu0
        %v891 = vadd.f32 %v631, %v890
        %892 = vmatmul.f32.gmra.mxu0 %v735
        %v893 = vpop.f32.mrf.mxu0
        %v894 = vadd.f32 %v634, %v893
        %895 = vmatmul.f32.gmra.mxu0 %v737
        %v896 = vpop.f32.mrf.mxu0
        %v897 = vadd.f32 %v637, %v896
        %898 = vmatmul.f32.gmra.mxu0 %v739
        %v899 = vpop.f32.mrf.mxu0
        %v900 = vadd.f32 %v640, %v899
        %901 = vmatmul.f32.gmra.mxu0 %v741
        %v902 = vpop.f32.mrf.mxu0
        %v903 = vadd.f32 %v643, %v902
        %904 = vmatmul.f32.gmra.mxu0 %v743
        %v905 = vpop.f32.mrf.mxu0
        %v906 = vadd.f32 %v646, %v905
        %907 = vmatmul.f32.gmra.mxu0 %v745
        %v908 = vpop.f32.mrf.mxu0
        %v909 = vadd.f32 %v649, %v908
        %910 = vdwg.mxu0
        %s911 = scalar_lea.vmem %s1, 8
        %v912 = vld [vmem:[%s911] sm:$0xf]
        %vm913 = vcmask 1045504
        %v914 = vrot.slane %v186, 2
        %v915 = vrot.slane %v187, 2
        %v916 = vsel %vm913, %v914, %v915
        %v917 = vrot.slane %v188, 2
        %v918 = vsel %vm913, %v915, %v917
        %v919 = vrot.slane %v189, 2
        %v920 = vsel %vm913, %v917, %v919
        %v921 = vrot.slane %v190, 2
        %v922 = vsel %vm913, %v919, %v921
        %v923 = vrot.slane %v191, 2
        %v924 = vsel %vm913, %v921, %v923
        %v925 = vrot.slane %v192, 2
        %v926 = vsel %vm913, %v923, %v925
        %v927 = vrot.slane %v193, 2
        %v928 = vsel %vm913, %v925, %v927
        %v929 = vrot.slane %v194, 2
        %v930 = vsel %vm913, %v927, %v929
        %v931 = vrot.slane %v195, 2
        %v932 = vsel %vm913, %v929, %v931
        %v933 = vrot.slane %v196, 2
        %v934 = vsel %vm913, %v931, %v933
        %v935 = vrot.slane %v197, 2
        %v936 = vsel %vm913, %v933, %v935
        %v937 = vrot.slane %v198, 2
        %v938 = vsel %vm913, %v935, %v937
        %v939 = vrot.slane %v199, 2
        %v940 = vsel %vm913, %v937, %v939
        %v941 = vrot.slane %v200, 2
        %v942 = vsel %vm913, %v939, %v941
        %v943 = vrot.slane %v201, 2
        %v944 = vsel %vm913, %v941, %v943
        %v945 = vrot.slane %v202, 2
        %v946 = vsel %vm913, %v943, %v945
        %v947 = vrot.slane %v203, 2
        %v948 = vsel %vm913, %v945, %v947
        %v949 = vrot.slane %v204, 2
        %v950 = vsel %vm913, %v947, %v949
        %v951 = vrot.slane %v205, 2
        %v952 = vsel %vm913, %v949, %v951
        %v953 = vrot.slane %v206, 2
        %v954 = vsel %vm913, %v951, %v953
        %v955 = vrot.slane %v207, 2
        %v956 = vsel %vm913, %v953, %v955
        %v957 = vrot.slane %v208, 2
        %v958 = vsel %vm913, %v955, %v957
        %v959 = vrot.slane %v209, 2
        %v960 = vsel %vm913, %v957, %v959
        %v961 = vrot.slane %v210, 2
        %v962 = vsel %vm913, %v959, %v961
        %v963 = vrot.slane %v211, 2
        %v964 = vsel %vm913, %v961, %v963
        %v965 = vrot.slane %v212, 2
        %v966 = vsel %vm913, %v963, %v965
        %v967 = vrot.slane %v213, 2
        %v968 = vsel %vm913, %v965, %v967
        %v969 = vrot.slane %v214, 2
        %v970 = vsel %vm913, %v967, %v969
        %v971 = vrot.slane %v215, 2
        %v972 = vsel %vm913, %v969, %v971
        %v973 = vrot.slane %v216, 2
        %v974 = vsel %vm913, %v971, %v973
        %v975 = vrot.slane %v217, 2
        %v976 = vsel %vm913, %v973, %v975
        %v977 = vrot.slane %v218, 2
        %v978 = vsel %vm913, %v975, %v977
        %v979 = vrot.slane %v219, 2
        %v980 = vsel %vm913, %v977, %v979
        %v981 = vrot.slane %v220, 2
        %v982 = vsel %vm913, %v979, %v981
        %v983 = vrot.slane %v221, 2
        %v984 = vsel %vm913, %v981, %v983
        %v985 = vrot.slane %v222, 2
        %v986 = vsel %vm913, %v983, %v985
        %v987 = vrot.slane %v223, 2
        %v988 = vsel %vm913, %v985, %v987
        %v989 = vrot.slane %v224, 2
        %v990 = vsel %vm913, %v987, %v989
        %v991 = vrot.slane %v225, 2
        %v992 = vsel %vm913, %v989, %v991
        %v993 = vrot.slane %v226, 2
        %v994 = vsel %vm913, %v991, %v993
        %v995 = vrot.slane %v227, 2
        %v996 = vsel %vm913, %v993, %v995
        %v997 = vrot.slane %v228, 2
        %v998 = vsel %vm913, %v995, %v997
        %v999 = vrot.slane %v229, 2
        %v1000 = vsel %vm913, %v997, %v999
        %v1001 = vrot.slane %v230, 2
        %v1002 = vsel %vm913, %v999, %v1001
        %v1003 = vrot.slane %v231, 2
        %v1004 = vsel %vm913, %v1001, %v1003
        %v1005 = vrot.slane %v232, 2
        %v1006 = vsel %vm913, %v1003, %v1005
        %v1007 = vrot.slane %v233, 2
        %v1008 = vsel %vm913, %v1005, %v1007
        %v1009 = vrot.slane %v234, 2
        %v1010 = vsel %vm913, %v1007, %v1009
        %v1011 = vsel %vm389, %v916, 0
        %v1013 = vsel %vm389, %v918, 0
        %v1015 = vsel %vm389, %v920, 0
        %v1017 = vsel %vm389, %v922, 0
        %v1019 = vsel %vm389, %v924, 0
        %v1021 = vsel %vm389, %v926, 0
        %v1023 = vsel %vm389, %v928, 0
        %v1025 = vsel %vm389, %v930, 0
        %v1027 = vsel %vm389, %v932, 0
        %v1029 = vsel %vm389, %v934, 0
        %v1031 = vsel %vm389, %v936, 0
        %v1033 = vsel %vm389, %v938, 0
        %v1035 = vsel %vm389, %v940, 0
        %v1037 = vsel %vm389, %v942, 0
        %v1039 = vsel %vm389, %v944, 0
        %v1041 = vsel %vm389, %v946, 0
        %v1043 = vsel %vm389, %v948, 0
        %v1045 = vsel %vm389, %v950, 0
        %v1047 = vsel %vm389, %v952, 0
        %v1049 = vsel %vm389, %v954, 0
        %v1051 = vsel %vm389, %v956, 0
        %v1053 = vsel %vm389, %v958, 0
        %v1055 = vsel %vm389, %v960, 0
        %v1057 = vsel %vm389, %v962, 0
        %v1059 = vsel %vm389, %v964, 0
        %v1061 = vsel %vm389, %v966, 0
        %v1063 = vsel %vm389, %v968, 0
        %v1065 = vsel %vm389, %v970, 0
        %v1067 = vsel %vm389, %v972, 0
        %v1069 = vsel %vm389, %v974, 0
        %v1071 = vsel %vm389, %v976, 0
        %v1073 = vsel %vm389, %v978, 0
        %v1075 = vsel %vm389, %v980, 0
        %v1077 = vsel %vm389, %v982, 0
        %v1079 = vsel %vm389, %v984, 0
        %v1081 = vsel %vm389, %v986, 0
        %v1083 = vsel %vm389, %v988, 0
        %v1085 = vsel %vm389, %v990, 0
        %v1087 = vsel %vm389, %v992, 0
        %v1089 = vsel %vm389, %v994, 0
        %v1091 = vsel %vm389, %v996, 0
        %v1093 = vsel %vm389, %v998, 0
        %v1095 = vsel %vm389, %v1000, 0
        %v1097 = vsel %vm389, %v1002, 0
        %v1099 = vsel %vm389, %v1004, 0
        %v1101 = vsel %vm389, %v1006, 0
        %v1103 = vsel %vm389, %v1008, 0
        %v1105 = vsel %vm389, %v1010, 0
        %v1108 = vsel %vm486, %v912, 0
        %1110 = vmatpush.msra.mxu0 0.0
        %1111 = vmatpush.msra.mxu0 0.0
        %1112 = vmatpush.msra.mxu0 0.0
        %1113 = vmatpush.msra.mxu0 0.0
        %1114 = vmatpush.msra.mxu0 0.0
        %1115 = vmatpush.msra.mxu0 0.0
        %1116 = vmatpush.msra.mxu0 0.0
        %1117 = vmatpush.msra.mxu0 0.0
        %1118 = vmatpush.msra.mxu0 0.0
        %1119 = vmatpush.msra.mxu0 0.0
        %1120 = vmatpush.msra.mxu0 0.0
        %1121 = vmatpush.msra.mxu0 0.0
        %1122 = vmatpush.msra.mxu0 0.0
        %1123 = vmatpush.msra.mxu0 0.0
        %1124 = vmatpush.msra.mxu0 0.0
        %1125 = vmatpush.msra.mxu0 %v1108
        %1126 = vmatmul.f32.gmra.mxu0 %v1011
        %v1127 = vpop.f32.mrf.mxu0
        %v1128 = vadd.f32 0.0, %v1127
        %1129 = vmatmul.f32.gmra.mxu0 %v1013
        %v1130 = vpop.f32.mrf.mxu0
        %v1131 = vadd.f32 0.0, %v1130
        %1132 = vmatmul.f32.gmra.mxu0 %v1015
        %v1133 = vpop.f32.mrf.mxu0
        %v1134 = vadd.f32 0.0, %v1133
        %1135 = vmatmul.f32.gmra.mxu0 %v1017
        %v1136 = vpop.f32.mrf.mxu0
        %v1137 = vadd.f32 0.0, %v1136
        %1138 = vmatmul.f32.gmra.mxu0 %v1019
        %v1139 = vpop.f32.mrf.mxu0
        %v1140 = vadd.f32 0.0, %v1139
        %1141 = vmatmul.f32.gmra.mxu0 %v1021
        %v1142 = vpop.f32.mrf.mxu0
        %v1143 = vadd.f32 0.0, %v1142
        %1144 = vmatmul.f32.gmra.mxu0 %v1023
        %v1145 = vpop.f32.mrf.mxu0
        %v1146 = vadd.f32 0.0, %v1145
        %1147 = vmatmul.f32.gmra.mxu0 %v1025
        %v1148 = vpop.f32.mrf.mxu0
        %v1149 = vadd.f32 0.0, %v1148
        %1150 = vmatmul.f32.gmra.mxu0 %v1027
        %v1151 = vpop.f32.mrf.mxu0
        %v1152 = vadd.f32 0.0, %v1151
        %1153 = vmatmul.f32.gmra.mxu0 %v1029
        %v1154 = vpop.f32.mrf.mxu0
        %v1155 = vadd.f32 0.0, %v1154
        %1156 = vmatmul.f32.gmra.mxu0 %v1031
        %v1157 = vpop.f32.mrf.mxu0
        %v1158 = vadd.f32 0.0, %v1157
        %1159 = vmatmul.f32.gmra.mxu0 %v1033
        %v1160 = vpop.f32.mrf.mxu0
        %v1161 = vadd.f32 0.0, %v1160
        %1162 = vmatmul.f32.gmra.mxu0 %v1035
        %v1163 = vpop.f32.mrf.mxu0
        %v1164 = vadd.f32 0.0, %v1163
        %1165 = vmatmul.f32.gmra.mxu0 %v1037
        %v1166 = vpop.f32.mrf.mxu0
        %v1167 = vadd.f32 0.0, %v1166
        %1168 = vmatmul.f32.gmra.mxu0 %v1039
        %v1169 = vpop.f32.mrf.mxu0
        %v1170 = vadd.f32 0.0, %v1169
        %1171 = vmatmul.f32.gmra.mxu0 %v1041
        %v1172 = vpop.f32.mrf.mxu0
        %v1173 = vadd.f32 0.0, %v1172
        %1174 = vmatmul.f32.gmra.mxu0 %v1043
        %v1175 = vpop.f32.mrf.mxu0
        %v1176 = vadd.f32 0.0, %v1175
        %1177 = vmatmul.f32.gmra.mxu0 %v1045
        %v1178 = vpop.f32.mrf.mxu0
        %v1179 = vadd.f32 0.0, %v1178
        %1180 = vmatmul.f32.gmra.mxu0 %v1047
        %v1181 = vpop.f32.mrf.mxu0
        %v1182 = vadd.f32 0.0, %v1181
        %1183 = vmatmul.f32.gmra.mxu0 %v1049
        %v1184 = vpop.f32.mrf.mxu0
        %v1185 = vadd.f32 0.0, %v1184
        %1186 = vmatmul.f32.gmra.mxu0 %v1051
        %v1187 = vpop.f32.mrf.mxu0
        %v1188 = vadd.f32 0.0, %v1187
        %1189 = vmatmul.f32.gmra.mxu0 %v1053
        %v1190 = vpop.f32.mrf.mxu0
        %v1191 = vadd.f32 0.0, %v1190
        %1192 = vmatmul.f32.gmra.mxu0 %v1055
        %v1193 = vpop.f32.mrf.mxu0
        %v1194 = vadd.f32 0.0, %v1193
        %1195 = vmatmul.f32.gmra.mxu0 %v1057
        %v1196 = vpop.f32.mrf.mxu0
        %v1197 = vadd.f32 0.0, %v1196
        %1198 = vmatmul.f32.gmra.mxu0 %v1059
        %v1199 = vpop.f32.mrf.mxu0
        %v1200 = vadd.f32 0.0, %v1199
        %1201 = vmatmul.f32.gmra.mxu0 %v1061
        %v1202 = vpop.f32.mrf.mxu0
        %v1203 = vadd.f32 0.0, %v1202
        %1204 = vmatmul.f32.gmra.mxu0 %v1063
        %v1205 = vpop.f32.mrf.mxu0
        %v1206 = vadd.f32 0.0, %v1205
        %1207 = vmatmul.f32.gmra.mxu0 %v1065
        %v1208 = vpop.f32.mrf.mxu0
        %v1209 = vadd.f32 0.0, %v1208
        %1210 = vmatmul.f32.gmra.mxu0 %v1067
        %v1211 = vpop.f32.mrf.mxu0
        %v1212 = vadd.f32 0.0, %v1211
        %1213 = vmatmul.f32.gmra.mxu0 %v1069
        %v1214 = vpop.f32.mrf.mxu0
        %v1215 = vadd.f32 0.0, %v1214
        %1216 = vmatmul.f32.gmra.mxu0 %v1071
        %v1217 = vpop.f32.mrf.mxu0
        %v1218 = vadd.f32 0.0, %v1217
        %1219 = vmatmul.f32.gmra.mxu0 %v1073
        %v1220 = vpop.f32.mrf.mxu0
        %v1221 = vadd.f32 0.0, %v1220
        %1222 = vmatmul.f32.gmra.mxu0 %v1075
        %v1223 = vpop.f32.mrf.mxu0
        %v1224 = vadd.f32 0.0, %v1223
        %1225 = vmatmul.f32.gmra.mxu0 %v1077
        %v1226 = vpop.f32.mrf.mxu0
        %v1227 = vadd.f32 0.0, %v1226
        %1228 = vmatmul.f32.gmra.mxu0 %v1079
        %v1229 = vpop.f32.mrf.mxu0
        %v1230 = vadd.f32 0.0, %v1229
        %1231 = vmatmul.f32.gmra.mxu0 %v1081
        %v1232 = vpop.f32.mrf.mxu0
        %v1233 = vadd.f32 0.0, %v1232
        %1234 = vmatmul.f32.gmra.mxu0 %v1083
        %v1235 = vpop.f32.mrf.mxu0
        %v1236 = vadd.f32 0.0, %v1235
        %1237 = vmatmul.f32.gmra.mxu0 %v1085
        %v1238 = vpop.f32.mrf.mxu0
        %v1239 = vadd.f32 0.0, %v1238
        %1240 = vmatmul.f32.gmra.mxu0 %v1087
        %v1241 = vpop.f32.mrf.mxu0
        %v1242 = vadd.f32 0.0, %v1241
        %1243 = vmatmul.f32.gmra.mxu0 %v1089
        %v1244 = vpop.f32.mrf.mxu0
        %v1245 = vadd.f32 0.0, %v1244
        %1246 = vmatmul.f32.gmra.mxu0 %v1091
        %v1247 = vpop.f32.mrf.mxu0
        %v1248 = vadd.f32 0.0, %v1247
        %1249 = vmatmul.f32.gmra.mxu0 %v1093
        %v1250 = vpop.f32.mrf.mxu0
        %v1251 = vadd.f32 0.0, %v1250
        %1252 = vmatmul.f32.gmra.mxu0 %v1095
        %v1253 = vpop.f32.mrf.mxu0
        %v1254 = vadd.f32 0.0, %v1253
        %1255 = vmatmul.f32.gmra.mxu0 %v1097
        %v1256 = vpop.f32.mrf.mxu0
        %v1257 = vadd.f32 0.0, %v1256
        %1258 = vmatmul.f32.gmra.mxu0 %v1099
        %v1259 = vpop.f32.mrf.mxu0
        %v1260 = vadd.f32 0.0, %v1259
        %1261 = vmatmul.f32.gmra.mxu0 %v1101
        %v1262 = vpop.f32.mrf.mxu0
        %v1263 = vadd.f32 0.0, %v1262
        %1264 = vmatmul.f32.gmra.mxu0 %v1103
        %v1265 = vpop.f32.mrf.mxu0
        %v1266 = vadd.f32 0.0, %v1265
        %1267 = vmatmul.f32.gmra.mxu0 %v1105
        %v1268 = vpop.f32.mrf.mxu0
        %v1269 = vadd.f32 0.0, %v1268
        %1270 = vdwg.mxu0
        %v1271 = vadd.f32 %v768, %v1128
        %v1272 = vadd.f32 %v771, %v1131
        %v1273 = vadd.f32 %v774, %v1134
        %v1274 = vadd.f32 %v777, %v1137
        %v1275 = vadd.f32 %v780, %v1140
        %v1276 = vadd.f32 %v783, %v1143
        %v1277 = vadd.f32 %v786, %v1146
        %v1278 = vadd.f32 %v789, %v1149
        %v1279 = vadd.f32 %v792, %v1152
        %v1280 = vadd.f32 %v795, %v1155
        %v1281 = vadd.f32 %v798, %v1158
        %v1282 = vadd.f32 %v801, %v1161
        %v1283 = vadd.f32 %v804, %v1164
        %v1284 = vadd.f32 %v807, %v1167
        %v1285 = vadd.f32 %v810, %v1170
        %v1286 = vadd.f32 %v813, %v1173
        %v1287 = vadd.f32 %v816, %v1176
        %v1288 = vadd.f32 %v819, %v1179
        %v1289 = vadd.f32 %v822, %v1182
        %v1290 = vadd.f32 %v825, %v1185
        %v1291 = vadd.f32 %v828, %v1188
        %v1292 = vadd.f32 %v831, %v1191
        %v1293 = vadd.f32 %v834, %v1194
        %v1294 = vadd.f32 %v837, %v1197
        %v1295 = vadd.f32 %v840, %v1200
        %v1296 = vadd.f32 %v843, %v1203
        %v1297 = vadd.f32 %v846, %v1206
        %v1298 = vadd.f32 %v849, %v1209
        %v1299 = vadd.f32 %v852, %v1212
        %v1300 = vadd.f32 %v855, %v1215
        %v1301 = vadd.f32 %v858, %v1218
        %v1302 = vadd.f32 %v861, %v1221
        %v1303 = vadd.f32 %v864, %v1224
        %v1304 = vadd.f32 %v867, %v1227
        %v1305 = vadd.f32 %v870, %v1230
        %v1306 = vadd.f32 %v873, %v1233
        %v1307 = vadd.f32 %v876, %v1236
        %v1308 = vadd.f32 %v879, %v1239
        %v1309 = vadd.f32 %v882, %v1242
        %v1310 = vadd.f32 %v885, %v1245
        %v1311 = vadd.f32 %v888, %v1248
        %v1312 = vadd.f32 %v891, %v1251
        %v1313 = vadd.f32 %v894, %v1254
        %v1314 = vadd.f32 %v897, %v1257
        %v1315 = vadd.f32 %v900, %v1260
        %v1316 = vadd.f32 %v903, %v1263
        %v1317 = vadd.f32 %v906, %v1266
        %v1318 = vadd.f32 %v909, %v1269
        %s1319 = scalar_lea.vmem %s1, 12
        %v1320 = vld [vmem:[%s1319] sm:$0xf]
        %v1323 = vrot.slane %v235, 2
        %v1324 = vsel %vm913, %v1009, %v1323
        %v1325 = vrot.slane %v236, 2
        %v1326 = vsel %vm913, %v1323, %v1325
        %v1327 = vsel %vm389, %v1324, 0
        %v1329 = vsel %vm389, %v1326, 0
        %v1332 = vsel %vm486, %v1320, 0
        %1334 = vmatpush.msra.mxu0 0.0
        %1335 = vmatpush.msra.mxu0 0.0
        %1336 = vmatpush.msra.mxu0 0.0
        %1337 = vmatpush.msra.mxu0 0.0
        %1338 = vmatpush.msra.mxu0 0.0
        %1339 = vmatpush.msra.mxu0 0.0
        %1340 = vmatpush.msra.mxu0 0.0
        %1341 = vmatpush.msra.mxu0 0.0
        %1342 = vmatpush.msra.mxu0 0.0
        %1343 = vmatpush.msra.mxu0 0.0
        %1344 = vmatpush.msra.mxu0 0.0
        %1345 = vmatpush.msra.mxu0 0.0
        %1346 = vmatpush.msra.mxu0 0.0
        %1347 = vmatpush.msra.mxu0 0.0
        %1348 = vmatpush.msra.mxu0 0.0
        %1349 = vmatpush.msra.mxu0 %v1332
        %1350 = vmatmul.f32.gmra.mxu0 %v1015
        %v1351 = vpop.f32.mrf.mxu0
        %v1352 = vadd.f32 0.0, %v1351
        %1353 = vmatmul.f32.gmra.mxu0 %v1017
        %v1354 = vpop.f32.mrf.mxu0
        %v1355 = vadd.f32 0.0, %v1354
        %1356 = vmatmul.f32.gmra.mxu0 %v1019
        %v1357 = vpop.f32.mrf.mxu0
        %v1358 = vadd.f32 0.0, %v1357
        %1359 = vmatmul.f32.gmra.mxu0 %v1021
        %v1360 = vpop.f32.mrf.mxu0
        %v1361 = vadd.f32 0.0, %v1360
        %1362 = vmatmul.f32.gmra.mxu0 %v1023
        %v1363 = vpop.f32.mrf.mxu0
        %v1364 = vadd.f32 0.0, %v1363
        %1365 = vmatmul.f32.gmra.mxu0 %v1025
        %v1366 = vpop.f32.mrf.mxu0
        %v1367 = vadd.f32 0.0, %v1366
        %1368 = vmatmul.f32.gmra.mxu0 %v1027
        %v1369 = vpop.f32.mrf.mxu0
        %v1370 = vadd.f32 0.0, %v1369
        %1371 = vmatmul.f32.gmra.mxu0 %v1029
        %v1372 = vpop.f32.mrf.mxu0
        %v1373 = vadd.f32 0.0, %v1372
        %1374 = vmatmul.f32.gmra.mxu0 %v1031
        %v1375 = vpop.f32.mrf.mxu0
        %v1376 = vadd.f32 0.0, %v1375
        %1377 = vmatmul.f32.gmra.mxu0 %v1033
        %v1378 = vpop.f32.mrf.mxu0
        %v1379 = vadd.f32 0.0, %v1378
        %1380 = vmatmul.f32.gmra.mxu0 %v1035
        %v1381 = vpop.f32.mrf.mxu0
        %v1382 = vadd.f32 0.0, %v1381
        %1383 = vmatmul.f32.gmra.mxu0 %v1037
        %v1384 = vpop.f32.mrf.mxu0
        %v1385 = vadd.f32 0.0, %v1384
        %1386 = vmatmul.f32.gmra.mxu0 %v1039
        %v1387 = vpop.f32.mrf.mxu0
        %v1388 = vadd.f32 0.0, %v1387
        %1389 = vmatmul.f32.gmra.mxu0 %v1041
        %v1390 = vpop.f32.mrf.mxu0
        %v1391 = vadd.f32 0.0, %v1390
        %1392 = vmatmul.f32.gmra.mxu0 %v1043
        %v1393 = vpop.f32.mrf.mxu0
        %v1394 = vadd.f32 0.0, %v1393
        %1395 = vmatmul.f32.gmra.mxu0 %v1045
        %v1396 = vpop.f32.mrf.mxu0
        %v1397 = vadd.f32 0.0, %v1396
        %1398 = vmatmul.f32.gmra.mxu0 %v1047
        %v1399 = vpop.f32.mrf.mxu0
        %v1400 = vadd.f32 0.0, %v1399
        %1401 = vmatmul.f32.gmra.mxu0 %v1049
        %v1402 = vpop.f32.mrf.mxu0
        %v1403 = vadd.f32 0.0, %v1402
        %1404 = vmatmul.f32.gmra.mxu0 %v1051
        %v1405 = vpop.f32.mrf.mxu0
        %v1406 = vadd.f32 0.0, %v1405
        %1407 = vmatmul.f32.gmra.mxu0 %v1053
        %v1408 = vpop.f32.mrf.mxu0
        %v1409 = vadd.f32 0.0, %v1408
        %1410 = vmatmul.f32.gmra.mxu0 %v1055
        %v1411 = vpop.f32.mrf.mxu0
        %v1412 = vadd.f32 0.0, %v1411
        %1413 = vmatmul.f32.gmra.mxu0 %v1057
        %v1414 = vpop.f32.mrf.mxu0
        %v1415 = vadd.f32 0.0, %v1414
        %1416 = vmatmul.f32.gmra.mxu0 %v1059
        %v1417 = vpop.f32.mrf.mxu0
        %v1418 = vadd.f32 0.0, %v1417
        %1419 = vmatmul.f32.gmra.mxu0 %v1061
        %v1420 = vpop.f32.mrf.mxu0
        %v1421 = vadd.f32 0.0, %v1420
        %1422 = vmatmul.f32.gmra.mxu0 %v1063
        %v1423 = vpop.f32.mrf.mxu0
        %v1424 = vadd.f32 0.0, %v1423
        %1425 = vmatmul.f32.gmra.mxu0 %v1065
        %v1426 = vpop.f32.mrf.mxu0
        %v1427 = vadd.f32 0.0, %v1426
        %1428 = vmatmul.f32.gmra.mxu0 %v1067
        %v1429 = vpop.f32.mrf.mxu0
        %v1430 = vadd.f32 0.0, %v1429
        %1431 = vmatmul.f32.gmra.mxu0 %v1069
        %v1432 = vpop.f32.mrf.mxu0
        %v1433 = vadd.f32 0.0, %v1432
        %1434 = vmatmul.f32.gmra.mxu0 %v1071
        %v1435 = vpop.f32.mrf.mxu0
        %v1436 = vadd.f32 0.0, %v1435
        %1437 = vmatmul.f32.gmra.mxu0 %v1073
        %v1438 = vpop.f32.mrf.mxu0
        %v1439 = vadd.f32 0.0, %v1438
        %1440 = vmatmul.f32.gmra.mxu0 %v1075
        %v1441 = vpop.f32.mrf.mxu0
        %v1442 = vadd.f32 0.0, %v1441
        %1443 = vmatmul.f32.gmra.mxu0 %v1077
        %v1444 = vpop.f32.mrf.mxu0
        %v1445 = vadd.f32 0.0, %v1444
        %1446 = vmatmul.f32.gmra.mxu0 %v1079
        %v1447 = vpop.f32.mrf.mxu0
        %v1448 = vadd.f32 0.0, %v1447
        %1449 = vmatmul.f32.gmra.mxu0 %v1081
        %v1450 = vpop.f32.mrf.mxu0
        %v1451 = vadd.f32 0.0, %v1450
        %1452 = vmatmul.f32.gmra.mxu0 %v1083
        %v1453 = vpop.f32.mrf.mxu0
        %v1454 = vadd.f32 0.0, %v1453
        %1455 = vmatmul.f32.gmra.mxu0 %v1085
        %v1456 = vpop.f32.mrf.mxu0
        %v1457 = vadd.f32 0.0, %v1456
        %1458 = vmatmul.f32.gmra.mxu0 %v1087
        %v1459 = vpop.f32.mrf.mxu0
        %v1460 = vadd.f32 0.0, %v1459
        %1461 = vmatmul.f32.gmra.mxu0 %v1089
        %v1462 = vpop.f32.mrf.mxu0
        %v1463 = vadd.f32 0.0, %v1462
        %1464 = vmatmul.f32.gmra.mxu0 %v1091
        %v1465 = vpop.f32.mrf.mxu0
        %v1466 = vadd.f32 0.0, %v1465
        %1467 = vmatmul.f32.gmra.mxu0 %v1093
        %v1468 = vpop.f32.mrf.mxu0
        %v1469 = vadd.f32 0.0, %v1468
        %1470 = vmatmul.f32.gmra.mxu0 %v1095
        %v1471 = vpop.f32.mrf.mxu0
        %v1472 = vadd.f32 0.0, %v1471
        %1473 = vmatmul.f32.gmra.mxu0 %v1097
        %v1474 = vpop.f32.mrf.mxu0
        %v1475 = vadd.f32 0.0, %v1474
        %1476 = vmatmul.f32.gmra.mxu0 %v1099
        %v1477 = vpop.f32.mrf.mxu0
        %v1478 = vadd.f32 0.0, %v1477
        %1479 = vmatmul.f32.gmra.mxu0 %v1101
        %v1480 = vpop.f32.mrf.mxu0
        %v1481 = vadd.f32 0.0, %v1480
        %1482 = vmatmul.f32.gmra.mxu0 %v1103
        %v1483 = vpop.f32.mrf.mxu0
        %v1484 = vadd.f32 0.0, %v1483
        %1485 = vmatmul.f32.gmra.mxu0 %v1105
        %v1486 = vpop.f32.mrf.mxu0
        %v1487 = vadd.f32 0.0, %v1486
        %1488 = vmatmul.f32.gmra.mxu0 %v1327
        %v1489 = vpop.f32.mrf.mxu0
        %v1490 = vadd.f32 0.0, %v1489
        %1491 = vmatmul.f32.gmra.mxu0 %v1329
        %v1492 = vpop.f32.mrf.mxu0
        %v1493 = vadd.f32 0.0, %v1492
        %1494 = vdwg.mxu0
        %v1495 = vadd.f32 %v1271, %v1352
        %v1496 = vadd.f32 %v1272, %v1355
        %v1497 = vadd.f32 %v1273, %v1358
        %v1498 = vadd.f32 %v1274, %v1361
        %v1499 = vadd.f32 %v1275, %v1364
        %v1500 = vadd.f32 %v1276, %v1367
        %v1501 = vadd.f32 %v1277, %v1370
        %v1502 = vadd.f32 %v1278, %v1373
        %v1503 = vadd.f32 %v1279, %v1376
        %v1504 = vadd.f32 %v1280, %v1379
        %v1505 = vadd.f32 %v1281, %v1382
        %v1506 = vadd.f32 %v1282, %v1385
        %v1507 = vadd.f32 %v1283, %v1388
        %v1508 = vadd.f32 %v1284, %v1391
        %v1509 = vadd.f32 %v1285, %v1394
        %v1510 = vadd.f32 %v1286, %v1397
        %v1511 = vadd.f32 %v1287, %v1400
        %v1512 = vadd.f32 %v1288, %v1403
        %v1513 = vadd.f32 %v1289, %v1406
        %v1514 = vadd.f32 %v1290, %v1409
        %v1515 = vadd.f32 %v1291, %v1412
        %v1516 = vadd.f32 %v1292, %v1415
        %v1517 = vadd.f32 %v1293, %v1418
        %v1518 = vadd.f32 %v1294, %v1421
        %v1519 = vadd.f32 %v1295, %v1424
        %v1520 = vadd.f32 %v1296, %v1427
        %v1521 = vadd.f32 %v1297, %v1430
        %v1522 = vadd.f32 %v1298, %v1433
        %v1523 = vadd.f32 %v1299, %v1436
        %v1524 = vadd.f32 %v1300, %v1439
        %v1525 = vadd.f32 %v1301, %v1442
        %v1526 = vadd.f32 %v1302, %v1445
        %v1527 = vadd.f32 %v1303, %v1448
        %v1528 = vadd.f32 %v1304, %v1451
        %v1529 = vadd.f32 %v1305, %v1454
        %v1530 = vadd.f32 %v1306, %v1457
        %v1531 = vadd.f32 %v1307, %v1460
        %v1532 = vadd.f32 %v1308, %v1463
        %v1533 = vadd.f32 %v1309, %v1466
        %v1534 = vadd.f32 %v1310, %v1469
        %v1535 = vadd.f32 %v1311, %v1472
        %v1536 = vadd.f32 %v1312, %v1475
        %v1537 = vadd.f32 %v1313, %v1478
        %v1538 = vadd.f32 %v1314, %v1481
        %v1539 = vadd.f32 %v1315, %v1484
        %v1540 = vadd.f32 %v1316, %v1487
        %v1541 = vadd.f32 %v1317, %v1490
        %v1542 = vadd.f32 %v1318, %v1493
        %s1543 = scalar_lea.vmem %s1, 16
        %v1544 = vld [vmem:[%s1543] sm:$0xf]
        %vm1545 = vcmask 1044480
        %v1546 = vrot.slane %v188, 3
        %v1547 = vrot.slane %v189, 3
        %v1548 = vsel %vm1545, %v1546, %v1547
        %v1549 = vrot.slane %v190, 3
        %v1550 = vsel %vm1545, %v1547, %v1549
        %v1551 = vrot.slane %v191, 3
        %v1552 = vsel %vm1545, %v1549, %v1551
        %v1553 = vrot.slane %v192, 3
        %v1554 = vsel %vm1545, %v1551, %v1553
        %v1555 = vrot.slane %v193, 3
        %v1556 = vsel %vm1545, %v1553, %v1555
        %v1557 = vrot.slane %v194, 3
        %v1558 = vsel %vm1545, %v1555, %v1557
        %v1559 = vrot.slane %v195, 3
        %v1560 = vsel %vm1545, %v1557, %v1559
        %v1561 = vrot.slane %v196, 3
        %v1562 = vsel %vm1545, %v1559, %v1561
        %v1563 = vrot.slane %v197, 3
        %v1564 = vsel %vm1545, %v1561, %v1563
        %v1565 = vrot.slane %v198, 3
        %v1566 = vsel %vm1545, %v1563, %v1565
        %v1567 = vrot.slane %v199, 3
        %v1568 = vsel %vm1545, %v1565, %v1567
        %v1569 = vrot.slane %v200, 3
        %v1570 = vsel %vm1545, %v1567, %v1569
        %v1571 = vrot.slane %v201, 3
        %v1572 = vsel %vm1545, %v1569, %v1571
        %v1573 = vrot.slane %v202, 3
        %v1574 = vsel %vm1545, %v1571, %v1573
        %v1575 = vrot.slane %v203, 3
        %v1576 = vsel %vm1545, %v1573, %v1575
        %v1577 = vrot.slane %v204, 3
        %v1578 = vsel %vm1545, %v1575, %v1577
        %v1579 = vrot.slane %v205, 3
        %v1580 = vsel %vm1545, %v1577, %v1579
        %v1581 = vrot.slane %v206, 3
        %v1582 = vsel %vm1545, %v1579, %v1581
        %v1583 = vrot.slane %v207, 3
        %v1584 = vsel %vm1545, %v1581, %v1583
        %v1585 = vrot.slane %v208, 3
        %v1586 = vsel %vm1545, %v1583, %v1585
        %v1587 = vrot.slane %v209, 3
        %v1588 = vsel %vm1545, %v1585, %v1587
        %v1589 = vrot.slane %v210, 3
        %v1590 = vsel %vm1545, %v1587, %v1589
        %v1591 = vrot.slane %v211, 3
        %v1592 = vsel %vm1545, %v1589, %v1591
        %v1593 = vrot.slane %v212, 3
        %v1594 = vsel %vm1545, %v1591, %v1593
        %v1595 = vrot.slane %v213, 3
        %v1596 = vsel %vm1545, %v1593, %v1595
        %v1597 = vrot.slane %v214, 3
        %v1598 = vsel %vm1545, %v1595, %v1597
        %v1599 = vrot.slane %v215, 3
        %v1600 = vsel %vm1545, %v1597, %v1599
        %v1601 = vrot.slane %v216, 3
        %v1602 = vsel %vm1545, %v1599, %v1601
        %v1603 = vrot.slane %v217, 3
        %v1604 = vsel %vm1545, %v1601, %v1603
        %v1605 = vrot.slane %v218, 3
        %v1606 = vsel %vm1545, %v1603, %v1605
        %v1607 = vrot.slane %v219, 3
        %v1608 = vsel %vm1545, %v1605, %v1607
        %v1609 = vrot.slane %v220, 3
        %v1610 = vsel %vm1545, %v1607, %v1609
        %v1611 = vrot.slane %v221, 3
        %v1612 = vsel %vm1545, %v1609, %v1611
        %v1613 = vrot.slane %v222, 3
        %v1614 = vsel %vm1545, %v1611, %v1613
        %v1615 = vrot.slane %v223, 3
        %v1616 = vsel %vm1545, %v1613, %v1615
        %v1617 = vrot.slane %v224, 3
        %v1618 = vsel %vm1545, %v1615, %v1617
        %v1619 = vrot.slane %v225, 3
        %v1620 = vsel %vm1545, %v1617, %v1619
        %v1621 = vrot.slane %v226, 3
        %v1622 = vsel %vm1545, %v1619, %v1621
        %v1623 = vrot.slane %v227, 3
        %v1624 = vsel %vm1545, %v1621, %v1623
        %v1625 = vrot.slane %v228, 3
        %v1626 = vsel %vm1545, %v1623, %v1625
        %v1627 = vrot.slane %v229, 3
        %v1628 = vsel %vm1545, %v1625, %v1627
        %v1629 = vrot.slane %v230, 3
        %v1630 = vsel %vm1545, %v1627, %v1629
        %v1631 = vrot.slane %v231, 3
        %v1632 = vsel %vm1545, %v1629, %v1631
        %v1633 = vrot.slane %v232, 3
        %v1634 = vsel %vm1545, %v1631, %v1633
        %v1635 = vrot.slane %v233, 3
        %v1636 = vsel %vm1545, %v1633, %v1635
        %v1637 = vrot.slane %v234, 3
        %v1638 = vsel %vm1545, %v1635, %v1637
        %v1639 = vrot.slane %v235, 3
        %v1640 = vsel %vm1545, %v1637, %v1639
        %v1641 = vrot.slane %v236, 3
        %v1642 = vsel %vm1545, %v1639, %v1641
        %v1643 = vsel %vm389, %v1548, 0
        %v1645 = vsel %vm389, %v1550, 0
        %v1647 = vsel %vm389, %v1552, 0
        %v1649 = vsel %vm389, %v1554, 0
        %v1651 = vsel %vm389, %v1556, 0
        %v1653 = vsel %vm389, %v1558, 0
        %v1655 = vsel %vm389, %v1560, 0
        %v1657 = vsel %vm389, %v1562, 0
        %v1659 = vsel %vm389, %v1564, 0
        %v1661 = vsel %vm389, %v1566, 0
        %v1663 = vsel %vm389, %v1568, 0
        %v1665 = vsel %vm389, %v1570, 0
        %v1667 = vsel %vm389, %v1572, 0
        %v1669 = vsel %vm389, %v1574, 0
        %v1671 = vsel %vm389, %v1576, 0
        %v1673 = vsel %vm389, %v1578, 0
        %v1675 = vsel %vm389, %v1580, 0
        %v1677 = vsel %vm389, %v1582, 0
        %v1679 = vsel %vm389, %v1584, 0
        %v1681 = vsel %vm389, %v1586, 0
        %v1683 = vsel %vm389, %v1588, 0
        %v1685 = vsel %vm389, %v1590, 0
        %v1687 = vsel %vm389, %v1592, 0
        %v1689 = vsel %vm389, %v1594, 0
        %v1691 = vsel %vm389, %v1596, 0
        %v1693 = vsel %vm389, %v1598, 0
        %v1695 = vsel %vm389, %v1600, 0
        %v1697 = vsel %vm389, %v1602, 0
        %v1699 = vsel %vm389, %v1604, 0
        %v1701 = vsel %vm389, %v1606, 0
        %v1703 = vsel %vm389, %v1608, 0
        %v1705 = vsel %vm389, %v1610, 0
        %v1707 = vsel %vm389, %v1612, 0
        %v1709 = vsel %vm389, %v1614, 0
        %v1711 = vsel %vm389, %v1616, 0
        %v1713 = vsel %vm389, %v1618, 0
        %v1715 = vsel %vm389, %v1620, 0
        %v1717 = vsel %vm389, %v1622, 0
        %v1719 = vsel %vm389, %v1624, 0
        %v1721 = vsel %vm389, %v1626, 0
        %v1723 = vsel %vm389, %v1628, 0
        %v1725 = vsel %vm389, %v1630, 0
        %v1727 = vsel %vm389, %v1632, 0
        %v1729 = vsel %vm389, %v1634, 0
        %v1731 = vsel %vm389, %v1636, 0
        %v1733 = vsel %vm389, %v1638, 0
        %v1735 = vsel %vm389, %v1640, 0
        %v1737 = vsel %vm389, %v1642, 0
        %v1740 = vsel %vm486, %v1544, 0
        %1742 = vmatpush.msra.mxu0 0.0
        %1743 = vmatpush.msra.mxu0 0.0
        %1744 = vmatpush.msra.mxu0 0.0
        %1745 = vmatpush.msra.mxu0 0.0
        %1746 = vmatpush.msra.mxu0 0.0
        %1747 = vmatpush.msra.mxu0 0.0
        %1748 = vmatpush.msra.mxu0 0.0
        %1749 = vmatpush.msra.mxu0 0.0
        %1750 = vmatpush.msra.mxu0 0.0
        %1751 = vmatpush.msra.mxu0 0.0
        %1752 = vmatpush.msra.mxu0 0.0
        %1753 = vmatpush.msra.mxu0 0.0
        %1754 = vmatpush.msra.mxu0 0.0
        %1755 = vmatpush.msra.mxu0 0.0
        %1756 = vmatpush.msra.mxu0 0.0
        %1757 = vmatpush.msra.mxu0 %v1740
        %1758 = vmatmul.f32.gmra.mxu0 %v1643
        %v1759 = vpop.f32.mrf.mxu0
        %v1760 = vadd.f32 0.0, %v1759
        %1761 = vmatmul.f32.gmra.mxu0 %v1645
        %v1762 = vpop.f32.mrf.mxu0
        %v1763 = vadd.f32 0.0, %v1762
        %1764 = vmatmul.f32.gmra.mxu0 %v1647
        %v1765 = vpop.f32.mrf.mxu0
        %v1766 = vadd.f32 0.0, %v1765
        %1767 = vmatmul.f32.gmra.mxu0 %v1649
        %v1768 = vpop.f32.mrf.mxu0
        %v1769 = vadd.f32 0.0, %v1768
        %1770 = vmatmul.f32.gmra.mxu0 %v1651
        %v1771 = vpop.f32.mrf.mxu0
        %v1772 = vadd.f32 0.0, %v1771
        %1773 = vmatmul.f32.gmra.mxu0 %v1653
        %v1774 = vpop.f32.mrf.mxu0
        %v1775 = vadd.f32 0.0, %v1774
        %1776 = vmatmul.f32.gmra.mxu0 %v1655
        %v1777 = vpop.f32.mrf.mxu0
        %v1778 = vadd.f32 0.0, %v1777
        %1779 = vmatmul.f32.gmra.mxu0 %v1657
        %v1780 = vpop.f32.mrf.mxu0
        %v1781 = vadd.f32 0.0, %v1780
        %1782 = vmatmul.f32.gmra.mxu0 %v1659
        %v1783 = vpop.f32.mrf.mxu0
        %v1784 = vadd.f32 0.0, %v1783
        %1785 = vmatmul.f32.gmra.mxu0 %v1661
        %v1786 = vpop.f32.mrf.mxu0
        %v1787 = vadd.f32 0.0, %v1786
        %1788 = vmatmul.f32.gmra.mxu0 %v1663
        %v1789 = vpop.f32.mrf.mxu0
        %v1790 = vadd.f32 0.0, %v1789
        %1791 = vmatmul.f32.gmra.mxu0 %v1665
        %v1792 = vpop.f32.mrf.mxu0
        %v1793 = vadd.f32 0.0, %v1792
        %1794 = vmatmul.f32.gmra.mxu0 %v1667
        %v1795 = vpop.f32.mrf.mxu0
        %v1796 = vadd.f32 0.0, %v1795
        %1797 = vmatmul.f32.gmra.mxu0 %v1669
        %v1798 = vpop.f32.mrf.mxu0
        %v1799 = vadd.f32 0.0, %v1798
        %1800 = vmatmul.f32.gmra.mxu0 %v1671
        %v1801 = vpop.f32.mrf.mxu0
        %v1802 = vadd.f32 0.0, %v1801
        %1803 = vmatmul.f32.gmra.mxu0 %v1673
        %v1804 = vpop.f32.mrf.mxu0
        %v1805 = vadd.f32 0.0, %v1804
        %1806 = vmatmul.f32.gmra.mxu0 %v1675
        %v1807 = vpop.f32.mrf.mxu0
        %v1808 = vadd.f32 0.0, %v1807
        %1809 = vmatmul.f32.gmra.mxu0 %v1677
        %v1810 = vpop.f32.mrf.mxu0
        %v1811 = vadd.f32 0.0, %v1810
        %1812 = vmatmul.f32.gmra.mxu0 %v1679
        %v1813 = vpop.f32.mrf.mxu0
        %v1814 = vadd.f32 0.0, %v1813
        %1815 = vmatmul.f32.gmra.mxu0 %v1681
        %v1816 = vpop.f32.mrf.mxu0
        %v1817 = vadd.f32 0.0, %v1816
        %1818 = vmatmul.f32.gmra.mxu0 %v1683
        %v1819 = vpop.f32.mrf.mxu0
        %v1820 = vadd.f32 0.0, %v1819
        %1821 = vmatmul.f32.gmra.mxu0 %v1685
        %v1822 = vpop.f32.mrf.mxu0
        %v1823 = vadd.f32 0.0, %v1822
        %1824 = vmatmul.f32.gmra.mxu0 %v1687
        %v1825 = vpop.f32.mrf.mxu0
        %v1826 = vadd.f32 0.0, %v1825
        %1827 = vmatmul.f32.gmra.mxu0 %v1689
        %v1828 = vpop.f32.mrf.mxu0
        %v1829 = vadd.f32 0.0, %v1828
        %1830 = vmatmul.f32.gmra.mxu0 %v1691
        %v1831 = vpop.f32.mrf.mxu0
        %v1832 = vadd.f32 0.0, %v1831
        %1833 = vmatmul.f32.gmra.mxu0 %v1693
        %v1834 = vpop.f32.mrf.mxu0
        %v1835 = vadd.f32 0.0, %v1834
        %1836 = vmatmul.f32.gmra.mxu0 %v1695
        %v1837 = vpop.f32.mrf.mxu0
        %v1838 = vadd.f32 0.0, %v1837
        %1839 = vmatmul.f32.gmra.mxu0 %v1697
        %v1840 = vpop.f32.mrf.mxu0
        %v1841 = vadd.f32 0.0, %v1840
        %1842 = vmatmul.f32.gmra.mxu0 %v1699
        %v1843 = vpop.f32.mrf.mxu0
        %v1844 = vadd.f32 0.0, %v1843
        %1845 = vmatmul.f32.gmra.mxu0 %v1701
        %v1846 = vpop.f32.mrf.mxu0
        %v1847 = vadd.f32 0.0, %v1846
        %1848 = vmatmul.f32.gmra.mxu0 %v1703
        %v1849 = vpop.f32.mrf.mxu0
        %v1850 = vadd.f32 0.0, %v1849
        %1851 = vmatmul.f32.gmra.mxu0 %v1705
        %v1852 = vpop.f32.mrf.mxu0
        %v1853 = vadd.f32 0.0, %v1852
        %1854 = vmatmul.f32.gmra.mxu0 %v1707
        %v1855 = vpop.f32.mrf.mxu0
        %v1856 = vadd.f32 0.0, %v1855
        %1857 = vmatmul.f32.gmra.mxu0 %v1709
        %v1858 = vpop.f32.mrf.mxu0
        %v1859 = vadd.f32 0.0, %v1858
        %1860 = vmatmul.f32.gmra.mxu0 %v1711
        %v1861 = vpop.f32.mrf.mxu0
        %v1862 = vadd.f32 0.0, %v1861
        %1863 = vmatmul.f32.gmra.mxu0 %v1713
        %v1864 = vpop.f32.mrf.mxu0
        %v1865 = vadd.f32 0.0, %v1864
        %1866 = vmatmul.f32.gmra.mxu0 %v1715
        %v1867 = vpop.f32.mrf.mxu0
        %v1868 = vadd.f32 0.0, %v1867
        %1869 = vmatmul.f32.gmra.mxu0 %v1717
        %v1870 = vpop.f32.mrf.mxu0
        %v1871 = vadd.f32 0.0, %v1870
        %1872 = vmatmul.f32.gmra.mxu0 %v1719
        %v1873 = vpop.f32.mrf.mxu0
        %v1874 = vadd.f32 0.0, %v1873
        %1875 = vmatmul.f32.gmra.mxu0 %v1721
        %v1876 = vpop.f32.mrf.mxu0
        %v1877 = vadd.f32 0.0, %v1876
        %1878 = vmatmul.f32.gmra.mxu0 %v1723
        %v1879 = vpop.f32.mrf.mxu0
        %v1880 = vadd.f32 0.0, %v1879
        %1881 = vmatmul.f32.gmra.mxu0 %v1725
        %v1882 = vpop.f32.mrf.mxu0
        %v1883 = vadd.f32 0.0, %v1882
        %1884 = vmatmul.f32.gmra.mxu0 %v1727
        %v1885 = vpop.f32.mrf.mxu0
        %v1886 = vadd.f32 0.0, %v1885
        %1887 = vmatmul.f32.gmra.mxu0 %v1729
        %v1888 = vpop.f32.mrf.mxu0
        %v1889 = vadd.f32 0.0, %v1888
        %1890 = vmatmul.f32.gmra.mxu0 %v1731
        %v1891 = vpop.f32.mrf.mxu0
        %v1892 = vadd.f32 0.0, %v1891
        %1893 = vmatmul.f32.gmra.mxu0 %v1733
        %v1894 = vpop.f32.mrf.mxu0
        %v1895 = vadd.f32 0.0, %v1894
        %1896 = vmatmul.f32.gmra.mxu0 %v1735
        %v1897 = vpop.f32.mrf.mxu0
        %v1898 = vadd.f32 0.0, %v1897
        %1899 = vmatmul.f32.gmra.mxu0 %v1737
        %v1900 = vpop.f32.mrf.mxu0
        %v1901 = vadd.f32 0.0, %v1900
        %1902 = vdwg.mxu0
        %v1903 = vadd.f32 %v1495, %v1760
        %v1904 = vadd.f32 %v1496, %v1763
        %v1905 = vadd.f32 %v1497, %v1766
        %v1906 = vadd.f32 %v1498, %v1769
        %v1907 = vadd.f32 %v1499, %v1772
        %v1908 = vadd.f32 %v1500, %v1775
        %v1909 = vadd.f32 %v1501, %v1778
        %v1910 = vadd.f32 %v1502, %v1781
        %v1911 = vadd.f32 %v1503, %v1784
        %v1912 = vadd.f32 %v1504, %v1787
        %v1913 = vadd.f32 %v1505, %v1790
        %v1914 = vadd.f32 %v1506, %v1793
        %v1915 = vadd.f32 %v1507, %v1796
        %v1916 = vadd.f32 %v1508, %v1799
        %v1917 = vadd.f32 %v1509, %v1802
        %v1918 = vadd.f32 %v1510, %v1805
        %v1919 = vadd.f32 %v1511, %v1808
        %v1920 = vadd.f32 %v1512, %v1811
        %v1921 = vadd.f32 %v1513, %v1814
        %v1922 = vadd.f32 %v1514, %v1817
        %v1923 = vadd.f32 %v1515, %v1820
        %v1924 = vadd.f32 %v1516, %v1823
        %v1925 = vadd.f32 %v1517, %v1826
        %v1926 = vadd.f32 %v1518, %v1829
        %v1927 = vadd.f32 %v1519, %v1832
        %v1928 = vadd.f32 %v1520, %v1835
        %v1929 = vadd.f32 %v1521, %v1838
        %v1930 = vadd.f32 %v1522, %v1841
        %v1931 = vadd.f32 %v1523, %v1844
        %v1932 = vadd.f32 %v1524, %v1847
        %v1933 = vadd.f32 %v1525, %v1850
        %v1934 = vadd.f32 %v1526, %v1853
        %v1935 = vadd.f32 %v1527, %v1856
        %v1936 = vadd.f32 %v1528, %v1859
        %v1937 = vadd.f32 %v1529, %v1862
        %v1938 = vadd.f32 %v1530, %v1865
        %v1939 = vadd.f32 %v1531, %v1868
        %v1940 = vadd.f32 %v1532, %v1871
        %v1941 = vadd.f32 %v1533, %v1874
        %v1942 = vadd.f32 %v1534, %v1877
        %v1943 = vadd.f32 %v1535, %v1880
        %v1944 = vadd.f32 %v1536, %v1883
        %v1945 = vadd.f32 %v1537, %v1886
        %v1946 = vadd.f32 %v1538, %v1889
        %v1947 = vadd.f32 %v1539, %v1892
        %v1948 = vadd.f32 %v1540, %v1895
        %v1949 = vadd.f32 %v1541, %v1898
        %v1950 = vadd.f32 %v1542, %v1901
        %s1951 = scalar_lea.vmem %s1, 20
        %v1952 = vld [vmem:[%s1951] sm:$0xf]
        %v1953 = vrot.slane %v188, 4
        %v1954 = vrot.slane %v189, 4
        %v1955 = vsel %vm486, %v1953, %v1954
        %v1956 = vrot.slane %v190, 4
        %v1957 = vsel %vm486, %v1954, %v1956
        %v1958 = vrot.slane %v191, 4
        %v1959 = vsel %vm486, %v1956, %v1958
        %v1960 = vrot.slane %v192, 4
        %v1961 = vsel %vm486, %v1958, %v1960
        %v1962 = vrot.slane %v193, 4
        %v1963 = vsel %vm486, %v1960, %v1962
        %v1964 = vrot.slane %v194, 4
        %v1965 = vsel %vm486, %v1962, %v1964
        %v1966 = vrot.slane %v195, 4
        %v1967 = vsel %vm486, %v1964, %v1966
        %v1968 = vrot.slane %v196, 4
        %v1969 = vsel %vm486, %v1966, %v1968
        %v1970 = vrot.slane %v197, 4
        %v1971 = vsel %vm486, %v1968, %v1970
        %v1972 = vrot.slane %v198, 4
        %v1973 = vsel %vm486, %v1970, %v1972
        %v1974 = vrot.slane %v199, 4
        %v1975 = vsel %vm486, %v1972, %v1974
        %v1976 = vrot.slane %v200, 4
        %v1977 = vsel %vm486, %v1974, %v1976
        %v1978 = vrot.slane %v201, 4
        %v1979 = vsel %vm486, %v1976, %v1978
        %v1980 = vrot.slane %v202, 4
        %v1981 = vsel %vm486, %v1978, %v1980
        %v1982 = vrot.slane %v203, 4
        %v1983 = vsel %vm486, %v1980, %v1982
        %v1984 = vrot.slane %v204, 4
        %v1985 = vsel %vm486, %v1982, %v1984
        %v1986 = vrot.slane %v205, 4
        %v1987 = vsel %vm486, %v1984, %v1986
        %v1988 = vrot.slane %v206, 4
        %v1989 = vsel %vm486, %v1986, %v1988
        %v1990 = vrot.slane %v207, 4
        %v1991 = vsel %vm486, %v1988, %v1990
        %v1992 = vrot.slane %v208, 4
        %v1993 = vsel %vm486, %v1990, %v1992
        %v1994 = vrot.slane %v209, 4
        %v1995 = vsel %vm486, %v1992, %v1994
        %v1996 = vrot.slane %v210, 4
        %v1997 = vsel %vm486, %v1994, %v1996
        %v1998 = vrot.slane %v211, 4
        %v1999 = vsel %vm486, %v1996, %v1998
        %v2000 = vrot.slane %v212, 4
        %v2001 = vsel %vm486, %v1998, %v2000
        %v2002 = vrot.slane %v213, 4
        %v2003 = vsel %vm486, %v2000, %v2002
        %v2004 = vrot.slane %v214, 4
        %v2005 = vsel %vm486, %v2002, %v2004
        %v2006 = vrot.slane %v215, 4
        %v2007 = vsel %vm486, %v2004, %v2006
        %v2008 = vrot.slane %v216, 4
        %v2009 = vsel %vm486, %v2006, %v2008
        %v2010 = vrot.slane %v217, 4
        %v2011 = vsel %vm486, %v2008, %v2010
        %v2012 = vrot.slane %v218, 4
        %v2013 = vsel %vm486, %v2010, %v2012
        %v2014 = vrot.slane %v219, 4
        %v2015 = vsel %vm486, %v2012, %v2014
        %v2016 = vrot.slane %v220, 4
        %v2017 = vsel %vm486, %v2014, %v2016
        %v2018 = vrot.slane %v221, 4
        %v2019 = vsel %vm486, %v2016, %v2018
        %v2020 = vrot.slane %v222, 4
        %v2021 = vsel %vm486, %v2018, %v2020
        %v2022 = vrot.slane %v223, 4
        %v2023 = vsel %vm486, %v2020, %v2022
        %v2024 = vrot.slane %v224, 4
        %v2025 = vsel %vm486, %v2022, %v2024
        %v2026 = vrot.slane %v225, 4
        %v2027 = vsel %vm486, %v2024, %v2026
        %v2028 = vrot.slane %v226, 4
        %v2029 = vsel %vm486, %v2026, %v2028
        %v2030 = vrot.slane %v227, 4
        %v2031 = vsel %vm486, %v2028, %v2030
        %v2032 = vrot.slane %v228, 4
        %v2033 = vsel %vm486, %v2030, %v2032
        %v2034 = vrot.slane %v229, 4
        %v2035 = vsel %vm486, %v2032, %v2034
        %v2036 = vrot.slane %v230, 4
        %v2037 = vsel %vm486, %v2034, %v2036
        %v2038 = vrot.slane %v231, 4
        %v2039 = vsel %vm486, %v2036, %v2038
        %v2040 = vrot.slane %v232, 4
        %v2041 = vsel %vm486, %v2038, %v2040
        %v2042 = vrot.slane %v233, 4
        %v2043 = vsel %vm486, %v2040, %v2042
        %v2044 = vrot.slane %v234, 4
        %v2045 = vsel %vm486, %v2042, %v2044
        %v2046 = vrot.slane %v235, 4
        %v2047 = vsel %vm486, %v2044, %v2046
        %v2048 = vrot.slane %v236, 4
        %v2049 = vsel %vm486, %v2046, %v2048
        %v2050 = vsel %vm389, %v1955, 0
        %v2052 = vsel %vm389, %v1957, 0
        %v2054 = vsel %vm389, %v1959, 0
        %v2056 = vsel %vm389, %v1961, 0
        %v2058 = vsel %vm389, %v1963, 0
        %v2060 = vsel %vm389, %v1965, 0
        %v2062 = vsel %vm389, %v1967, 0
        %v2064 = vsel %vm389, %v1969, 0
        %v2066 = vsel %vm389, %v1971, 0
        %v2068 = vsel %vm389, %v1973, 0
        %v2070 = vsel %vm389, %v1975, 0
        %v2072 = vsel %vm389, %v1977, 0
        %v2074 = vsel %vm389, %v1979, 0
        %v2076 = vsel %vm389, %v1981, 0
        %v2078 = vsel %vm389, %v1983, 0
        %v2080 = vsel %vm389, %v1985, 0
        %v2082 = vsel %vm389, %v1987, 0
        %v2084 = vsel %vm389, %v1989, 0
        %v2086 = vsel %vm389, %v1991, 0
        %v2088 = vsel %vm389, %v1993, 0
        %v2090 = vsel %vm389, %v1995, 0
        %v2092 = vsel %vm389, %v1997, 0
        %v2094 = vsel %vm389, %v1999, 0
        %v2096 = vsel %vm389, %v2001, 0
        %v2098 = vsel %vm389, %v2003, 0
        %v2100 = vsel %vm389, %v2005, 0
        %v2102 = vsel %vm389, %v2007, 0
        %v2104 = vsel %vm389, %v2009, 0
        %v2106 = vsel %vm389, %v2011, 0
        %v2108 = vsel %vm389, %v2013, 0
        %v2110 = vsel %vm389, %v2015, 0
        %v2112 = vsel %vm389, %v2017, 0
        %v2114 = vsel %vm389, %v2019, 0
        %v2116 = vsel %vm389, %v2021, 0
        %v2118 = vsel %vm389, %v2023, 0
        %v2120 = vsel %vm389, %v2025, 0
        %v2122 = vsel %vm389, %v2027, 0
        %v2124 = vsel %vm389, %v2029, 0
        %v2126 = vsel %vm389, %v2031, 0
        %v2128 = vsel %vm389, %v2033, 0
        %v2130 = vsel %vm389, %v2035, 0
        %v2132 = vsel %vm389, %v2037, 0
        %v2134 = vsel %vm389, %v2039, 0
        %v2136 = vsel %vm389, %v2041, 0
        %v2138 = vsel %vm389, %v2043, 0
        %v2140 = vsel %vm389, %v2045, 0
        %v2142 = vsel %vm389, %v2047, 0
        %v2144 = vsel %vm389, %v2049, 0
        %v2147 = vsel %vm486, %v1952, 0
        %2149 = vmatpush.msra.mxu0 0.0
        %2150 = vmatpush.msra.mxu0 0.0
        %2151 = vmatpush.msra.mxu0 0.0
        %2152 = vmatpush.msra.mxu0 0.0
        %2153 = vmatpush.msra.mxu0 0.0
        %2154 = vmatpush.msra.mxu0 0.0
        %2155 = vmatpush.msra.mxu0 0.0
        %2156 = vmatpush.msra.mxu0 0.0
        %2157 = vmatpush.msra.mxu0 0.0
        %2158 = vmatpush.msra.mxu0 0.0
        %2159 = vmatpush.msra.mxu0 0.0
        %2160 = vmatpush.msra.mxu0 0.0
        %2161 = vmatpush.msra.mxu0 0.0
        %2162 = vmatpush.msra.mxu0 0.0
        %2163 = vmatpush.msra.mxu0 0.0
        %2164 = vmatpush.msra.mxu0 %v2147
        %2165 = vmatmul.f32.gmra.mxu0 %v2050
        %v2166 = vpop.f32.mrf.mxu0
        %v2167 = vadd.f32 0.0, %v2166
        %2168 = vmatmul.f32.gmra.mxu0 %v2052
        %v2169 = vpop.f32.mrf.mxu0
        %v2170 = vadd.f32 0.0, %v2169
        %2171 = vmatmul.f32.gmra.mxu0 %v2054
        %v2172 = vpop.f32.mrf.mxu0
        %v2173 = vadd.f32 0.0, %v2172
        %2174 = vmatmul.f32.gmra.mxu0 %v2056
        %v2175 = vpop.f32.mrf.mxu0
        %v2176 = vadd.f32 0.0, %v2175
        %2177 = vmatmul.f32.gmra.mxu0 %v2058
        %v2178 = vpop.f32.mrf.mxu0
        %v2179 = vadd.f32 0.0, %v2178
        %2180 = vmatmul.f32.gmra.mxu0 %v2060
        %v2181 = vpop.f32.mrf.mxu0
        %v2182 = vadd.f32 0.0, %v2181
        %2183 = vmatmul.f32.gmra.mxu0 %v2062
        %v2184 = vpop.f32.mrf.mxu0
        %v2185 = vadd.f32 0.0, %v2184
        %2186 = vmatmul.f32.gmra.mxu0 %v2064
        %v2187 = vpop.f32.mrf.mxu0
        %v2188 = vadd.f32 0.0, %v2187
        %2189 = vmatmul.f32.gmra.mxu0 %v2066
        %v2190 = vpop.f32.mrf.mxu0
        %v2191 = vadd.f32 0.0, %v2190
        %2192 = vmatmul.f32.gmra.mxu0 %v2068
        %v2193 = vpop.f32.mrf.mxu0
        %v2194 = vadd.f32 0.0, %v2193
        %2195 = vmatmul.f32.gmra.mxu0 %v2070
        %v2196 = vpop.f32.mrf.mxu0
        %v2197 = vadd.f32 0.0, %v2196
        %2198 = vmatmul.f32.gmra.mxu0 %v2072
        %v2199 = vpop.f32.mrf.mxu0
        %v2200 = vadd.f32 0.0, %v2199
        %2201 = vmatmul.f32.gmra.mxu0 %v2074
        %v2202 = vpop.f32.mrf.mxu0
        %v2203 = vadd.f32 0.0, %v2202
        %2204 = vmatmul.f32.gmra.mxu0 %v2076
        %v2205 = vpop.f32.mrf.mxu0
        %v2206 = vadd.f32 0.0, %v2205
        %2207 = vmatmul.f32.gmra.mxu0 %v2078
        %v2208 = vpop.f32.mrf.mxu0
        %v2209 = vadd.f32 0.0, %v2208
        %2210 = vmatmul.f32.gmra.mxu0 %v2080
        %v2211 = vpop.f32.mrf.mxu0
        %v2212 = vadd.f32 0.0, %v2211
        %2213 = vmatmul.f32.gmra.mxu0 %v2082
        %v2214 = vpop.f32.mrf.mxu0
        %v2215 = vadd.f32 0.0, %v2214
        %2216 = vmatmul.f32.gmra.mxu0 %v2084
        %v2217 = vpop.f32.mrf.mxu0
        %v2218 = vadd.f32 0.0, %v2217
        %2219 = vmatmul.f32.gmra.mxu0 %v2086
        %v2220 = vpop.f32.mrf.mxu0
        %v2221 = vadd.f32 0.0, %v2220
        %2222 = vmatmul.f32.gmra.mxu0 %v2088
        %v2223 = vpop.f32.mrf.mxu0
        %v2224 = vadd.f32 0.0, %v2223
        %2225 = vmatmul.f32.gmra.mxu0 %v2090
        %v2226 = vpop.f32.mrf.mxu0
        %v2227 = vadd.f32 0.0, %v2226
        %2228 = vmatmul.f32.gmra.mxu0 %v2092
        %v2229 = vpop.f32.mrf.mxu0
        %v2230 = vadd.f32 0.0, %v2229
        %2231 = vmatmul.f32.gmra.mxu0 %v2094
        %v2232 = vpop.f32.mrf.mxu0
        %v2233 = vadd.f32 0.0, %v2232
        %2234 = vmatmul.f32.gmra.mxu0 %v2096
        %v2235 = vpop.f32.mrf.mxu0
        %v2236 = vadd.f32 0.0, %v2235
        %2237 = vmatmul.f32.gmra.mxu0 %v2098
        %v2238 = vpop.f32.mrf.mxu0
        %v2239 = vadd.f32 0.0, %v2238
        %2240 = vmatmul.f32.gmra.mxu0 %v2100
        %v2241 = vpop.f32.mrf.mxu0
        %v2242 = vadd.f32 0.0, %v2241
        %2243 = vmatmul.f32.gmra.mxu0 %v2102
        %v2244 = vpop.f32.mrf.mxu0
        %v2245 = vadd.f32 0.0, %v2244
        %2246 = vmatmul.f32.gmra.mxu0 %v2104
        %v2247 = vpop.f32.mrf.mxu0
        %v2248 = vadd.f32 0.0, %v2247
        %2249 = vmatmul.f32.gmra.mxu0 %v2106
        %v2250 = vpop.f32.mrf.mxu0
        %v2251 = vadd.f32 0.0, %v2250
        %2252 = vmatmul.f32.gmra.mxu0 %v2108
        %v2253 = vpop.f32.mrf.mxu0
        %v2254 = vadd.f32 0.0, %v2253
        %2255 = vmatmul.f32.gmra.mxu0 %v2110
        %v2256 = vpop.f32.mrf.mxu0
        %v2257 = vadd.f32 0.0, %v2256
        %2258 = vmatmul.f32.gmra.mxu0 %v2112
        %v2259 = vpop.f32.mrf.mxu0
        %v2260 = vadd.f32 0.0, %v2259
        %2261 = vmatmul.f32.gmra.mxu0 %v2114
        %v2262 = vpop.f32.mrf.mxu0
        %v2263 = vadd.f32 0.0, %v2262
        %2264 = vmatmul.f32.gmra.mxu0 %v2116
        %v2265 = vpop.f32.mrf.mxu0
        %v2266 = vadd.f32 0.0, %v2265
        %2267 = vmatmul.f32.gmra.mxu0 %v2118
        %v2268 = vpop.f32.mrf.mxu0
        %v2269 = vadd.f32 0.0, %v2268
        %2270 = vmatmul.f32.gmra.mxu0 %v2120
        %v2271 = vpop.f32.mrf.mxu0
        %v2272 = vadd.f32 0.0, %v2271
        %2273 = vmatmul.f32.gmra.mxu0 %v2122
        %v2274 = vpop.f32.mrf.mxu0
        %v2275 = vadd.f32 0.0, %v2274
        %2276 = vmatmul.f32.gmra.mxu0 %v2124
        %v2277 = vpop.f32.mrf.mxu0
        %v2278 = vadd.f32 0.0, %v2277
        %2279 = vmatmul.f32.gmra.mxu0 %v2126
        %v2280 = vpop.f32.mrf.mxu0
        %v2281 = vadd.f32 0.0, %v2280
        %2282 = vmatmul.f32.gmra.mxu0 %v2128
        %v2283 = vpop.f32.mrf.mxu0
        %v2284 = vadd.f32 0.0, %v2283
        %2285 = vmatmul.f32.gmra.mxu0 %v2130
        %v2286 = vpop.f32.mrf.mxu0
        %v2287 = vadd.f32 0.0, %v2286
        %2288 = vmatmul.f32.gmra.mxu0 %v2132
        %v2289 = vpop.f32.mrf.mxu0
        %v2290 = vadd.f32 0.0, %v2289
        %2291 = vmatmul.f32.gmra.mxu0 %v2134
        %v2292 = vpop.f32.mrf.mxu0
        %v2293 = vadd.f32 0.0, %v2292
        %2294 = vmatmul.f32.gmra.mxu0 %v2136
        %v2295 = vpop.f32.mrf.mxu0
        %v2296 = vadd.f32 0.0, %v2295
        %2297 = vmatmul.f32.gmra.mxu0 %v2138
        %v2298 = vpop.f32.mrf.mxu0
        %v2299 = vadd.f32 0.0, %v2298
        %2300 = vmatmul.f32.gmra.mxu0 %v2140
        %v2301 = vpop.f32.mrf.mxu0
        %v2302 = vadd.f32 0.0, %v2301
        %2303 = vmatmul.f32.gmra.mxu0 %v2142
        %v2304 = vpop.f32.mrf.mxu0
        %v2305 = vadd.f32 0.0, %v2304
        %2306 = vmatmul.f32.gmra.mxu0 %v2144
        %v2307 = vpop.f32.mrf.mxu0
        %v2308 = vadd.f32 0.0, %v2307
        %2309 = vdwg.mxu0
        %v2310 = vadd.f32 %v1903, %v2167
        %v2311 = vadd.f32 %v1904, %v2170
        %v2312 = vadd.f32 %v1905, %v2173
        %v2313 = vadd.f32 %v1906, %v2176
        %v2314 = vadd.f32 %v1907, %v2179
        %v2315 = vadd.f32 %v1908, %v2182
        %v2316 = vadd.f32 %v1909, %v2185
        %v2317 = vadd.f32 %v1910, %v2188
        %v2318 = vadd.f32 %v1911, %v2191
        %v2319 = vadd.f32 %v1912, %v2194
        %v2320 = vadd.f32 %v1913, %v2197
        %v2321 = vadd.f32 %v1914, %v2200
        %v2322 = vadd.f32 %v1915, %v2203
        %v2323 = vadd.f32 %v1916, %v2206
        %v2324 = vadd.f32 %v1917, %v2209
        %v2325 = vadd.f32 %v1918, %v2212
        %v2326 = vadd.f32 %v1919, %v2215
        %v2327 = vadd.f32 %v1920, %v2218
        %v2328 = vadd.f32 %v1921, %v2221
        %v2329 = vadd.f32 %v1922, %v2224
        %v2330 = vadd.f32 %v1923, %v2227
        %v2331 = vadd.f32 %v1924, %v2230
        %v2332 = vadd.f32 %v1925, %v2233
        %v2333 = vadd.f32 %v1926, %v2236
        %v2334 = vadd.f32 %v1927, %v2239
        %v2335 = vadd.f32 %v1928, %v2242
        %v2336 = vadd.f32 %v1929, %v2245
        %v2337 = vadd.f32 %v1930, %v2248
        %v2338 = vadd.f32 %v1931, %v2251
        %v2339 = vadd.f32 %v1932, %v2254
        %v2340 = vadd.f32 %v1933, %v2257
        %v2341 = vadd.f32 %v1934, %v2260
        %v2342 = vadd.f32 %v1935, %v2263
        %v2343 = vadd.f32 %v1936, %v2266
        %v2344 = vadd.f32 %v1937, %v2269
        %v2345 = vadd.f32 %v1938, %v2272
        %v2346 = vadd.f32 %v1939, %v2275
        %v2347 = vadd.f32 %v1940, %v2278
        %v2348 = vadd.f32 %v1941, %v2281
        %v2349 = vadd.f32 %v1942, %v2284
        %v2350 = vadd.f32 %v1943, %v2287
        %v2351 = vadd.f32 %v1944, %v2290
        %v2352 = vadd.f32 %v1945, %v2293
        %v2353 = vadd.f32 %v1946, %v2296
        %v2354 = vadd.f32 %v1947, %v2299
        %v2355 = vadd.f32 %v1948, %v2302
        %v2356 = vadd.f32 %v1949, %v2305
        %v2357 = vadd.f32 %v1950, %v2308
        %s2358 = scalar_lea.vmem %s1, 24
        %v2359 = vld [vmem:[%s2358] sm:$0xf]
        %v2362 = vrot.slane %v237, 4
        %v2363 = vsel %vm486, %v2048, %v2362
        %v2364 = vrot.slane %v238, 4
        %v2365 = vsel %vm486, %v2362, %v2364
        %v2366 = vsel %vm389, %v2363, 0
        %v2368 = vsel %vm389, %v2365, 0
        %v2371 = vsel %vm486, %v2359, 0
        %2373 = vmatpush.msra.mxu0 0.0
        %2374 = vmatpush.msra.mxu0 0.0
        %2375 = vmatpush.msra.mxu0 0.0
        %2376 = vmatpush.msra.mxu0 0.0
        %2377 = vmatpush.msra.mxu0 0.0
        %2378 = vmatpush.msra.mxu0 0.0
        %2379 = vmatpush.msra.mxu0 0.0
        %2380 = vmatpush.msra.mxu0 0.0
        %2381 = vmatpush.msra.mxu0 0.0
        %2382 = vmatpush.msra.mxu0 0.0
        %2383 = vmatpush.msra.mxu0 0.0
        %2384 = vmatpush.msra.mxu0 0.0
        %2385 = vmatpush.msra.mxu0 0.0
        %2386 = vmatpush.msra.mxu0 0.0
        %2387 = vmatpush.msra.mxu0 0.0
        %2388 = vmatpush.msra.mxu0 %v2371
        %2389 = vmatmul.f32.gmra.mxu0 %v2054
        %v2390 = vpop.f32.mrf.mxu0
        %v2391 = vadd.f32 0.0, %v2390
        %2392 = vmatmul.f32.gmra.mxu0 %v2056
        %v2393 = vpop.f32.mrf.mxu0
        %v2394 = vadd.f32 0.0, %v2393
        %2395 = vmatmul.f32.gmra.mxu0 %v2058
        %v2396 = vpop.f32.mrf.mxu0
        %v2397 = vadd.f32 0.0, %v2396
        %2398 = vmatmul.f32.gmra.mxu0 %v2060
        %v2399 = vpop.f32.mrf.mxu0
        %v2400 = vadd.f32 0.0, %v2399
        %2401 = vmatmul.f32.gmra.mxu0 %v2062
        %v2402 = vpop.f32.mrf.mxu0
        %v2403 = vadd.f32 0.0, %v2402
        %2404 = vmatmul.f32.gmra.mxu0 %v2064
        %v2405 = vpop.f32.mrf.mxu0
        %v2406 = vadd.f32 0.0, %v2405
        %2407 = vmatmul.f32.gmra.mxu0 %v2066
        %v2408 = vpop.f32.mrf.mxu0
        %v2409 = vadd.f32 0.0, %v2408
        %2410 = vmatmul.f32.gmra.mxu0 %v2068
        %v2411 = vpop.f32.mrf.mxu0
        %v2412 = vadd.f32 0.0, %v2411
        %2413 = vmatmul.f32.gmra.mxu0 %v2070
        %v2414 = vpop.f32.mrf.mxu0
        %v2415 = vadd.f32 0.0, %v2414
        %2416 = vmatmul.f32.gmra.mxu0 %v2072
        %v2417 = vpop.f32.mrf.mxu0
        %v2418 = vadd.f32 0.0, %v2417
        %2419 = vmatmul.f32.gmra.mxu0 %v2074
        %v2420 = vpop.f32.mrf.mxu0
        %v2421 = vadd.f32 0.0, %v2420
        %2422 = vmatmul.f32.gmra.mxu0 %v2076
        %v2423 = vpop.f32.mrf.mxu0
        %v2424 = vadd.f32 0.0, %v2423
        %2425 = vmatmul.f32.gmra.mxu0 %v2078
        %v2426 = vpop.f32.mrf.mxu0
        %v2427 = vadd.f32 0.0, %v2426
        %2428 = vmatmul.f32.gmra.mxu0 %v2080
        %v2429 = vpop.f32.mrf.mxu0
        %v2430 = vadd.f32 0.0, %v2429
        %2431 = vmatmul.f32.gmra.mxu0 %v2082
        %v2432 = vpop.f32.mrf.mxu0
        %v2433 = vadd.f32 0.0, %v2432
        %2434 = vmatmul.f32.gmra.mxu0 %v2084
        %v2435 = vpop.f32.mrf.mxu0
        %v2436 = vadd.f32 0.0, %v2435
        %2437 = vmatmul.f32.gmra.mxu0 %v2086
        %v2438 = vpop.f32.mrf.mxu0
        %v2439 = vadd.f32 0.0, %v2438
        %2440 = vmatmul.f32.gmra.mxu0 %v2088
        %v2441 = vpop.f32.mrf.mxu0
        %v2442 = vadd.f32 0.0, %v2441
        %2443 = vmatmul.f32.gmra.mxu0 %v2090
        %v2444 = vpop.f32.mrf.mxu0
        %v2445 = vadd.f32 0.0, %v2444
        %2446 = vmatmul.f32.gmra.mxu0 %v2092
        %v2447 = vpop.f32.mrf.mxu0
        %v2448 = vadd.f32 0.0, %v2447
        %2449 = vmatmul.f32.gmra.mxu0 %v2094
        %v2450 = vpop.f32.mrf.mxu0
        %v2451 = vadd.f32 0.0, %v2450
        %2452 = vmatmul.f32.gmra.mxu0 %v2096
        %v2453 = vpop.f32.mrf.mxu0
        %v2454 = vadd.f32 0.0, %v2453
        %2455 = vmatmul.f32.gmra.mxu0 %v2098
        %v2456 = vpop.f32.mrf.mxu0
        %v2457 = vadd.f32 0.0, %v2456
        %2458 = vmatmul.f32.gmra.mxu0 %v2100
        %v2459 = vpop.f32.mrf.mxu0
        %v2460 = vadd.f32 0.0, %v2459
        %2461 = vmatmul.f32.gmra.mxu0 %v2102
        %v2462 = vpop.f32.mrf.mxu0
        %v2463 = vadd.f32 0.0, %v2462
        %2464 = vmatmul.f32.gmra.mxu0 %v2104
        %v2465 = vpop.f32.mrf.mxu0
        %v2466 = vadd.f32 0.0, %v2465
        %2467 = vmatmul.f32.gmra.mxu0 %v2106
        %v2468 = vpop.f32.mrf.mxu0
        %v2469 = vadd.f32 0.0, %v2468
        %2470 = vmatmul.f32.gmra.mxu0 %v2108
        %v2471 = vpop.f32.mrf.mxu0
        %v2472 = vadd.f32 0.0, %v2471
        %2473 = vmatmul.f32.gmra.mxu0 %v2110
        %v2474 = vpop.f32.mrf.mxu0
        %v2475 = vadd.f32 0.0, %v2474
        %2476 = vmatmul.f32.gmra.mxu0 %v2112
        %v2477 = vpop.f32.mrf.mxu0
        %v2478 = vadd.f32 0.0, %v2477
        %2479 = vmatmul.f32.gmra.mxu0 %v2114
        %v2480 = vpop.f32.mrf.mxu0
        %v2481 = vadd.f32 0.0, %v2480
        %2482 = vmatmul.f32.gmra.mxu0 %v2116
        %v2483 = vpop.f32.mrf.mxu0
        %v2484 = vadd.f32 0.0, %v2483
        %2485 = vmatmul.f32.gmra.mxu0 %v2118
        %v2486 = vpop.f32.mrf.mxu0
        %v2487 = vadd.f32 0.0, %v2486
        %2488 = vmatmul.f32.gmra.mxu0 %v2120
        %v2489 = vpop.f32.mrf.mxu0
        %v2490 = vadd.f32 0.0, %v2489
        %2491 = vmatmul.f32.gmra.mxu0 %v2122
        %v2492 = vpop.f32.mrf.mxu0
        %v2493 = vadd.f32 0.0, %v2492
        %2494 = vmatmul.f32.gmra.mxu0 %v2124
        %v2495 = vpop.f32.mrf.mxu0
        %v2496 = vadd.f32 0.0, %v2495
        %2497 = vmatmul.f32.gmra.mxu0 %v2126
        %v2498 = vpop.f32.mrf.mxu0
        %v2499 = vadd.f32 0.0, %v2498
        %2500 = vmatmul.f32.gmra.mxu0 %v2128
        %v2501 = vpop.f32.mrf.mxu0
        %v2502 = vadd.f32 0.0, %v2501
        %2503 = vmatmul.f32.gmra.mxu0 %v2130
        %v2504 = vpop.f32.mrf.mxu0
        %v2505 = vadd.f32 0.0, %v2504
        %2506 = vmatmul.f32.gmra.mxu0 %v2132
        %v2507 = vpop.f32.mrf.mxu0
        %v2508 = vadd.f32 0.0, %v2507
        %2509 = vmatmul.f32.gmra.mxu0 %v2134
        %v2510 = vpop.f32.mrf.mxu0
        %v2511 = vadd.f32 0.0, %v2510
        %2512 = vmatmul.f32.gmra.mxu0 %v2136
        %v2513 = vpop.f32.mrf.mxu0
        %v2514 = vadd.f32 0.0, %v2513
        %2515 = vmatmul.f32.gmra.mxu0 %v2138
        %v2516 = vpop.f32.mrf.mxu0
        %v2517 = vadd.f32 0.0, %v2516
        %2518 = vmatmul.f32.gmra.mxu0 %v2140
        %v2519 = vpop.f32.mrf.mxu0
        %v2520 = vadd.f32 0.0, %v2519
        %2521 = vmatmul.f32.gmra.mxu0 %v2142
        %v2522 = vpop.f32.mrf.mxu0
        %v2523 = vadd.f32 0.0, %v2522
        %2524 = vmatmul.f32.gmra.mxu0 %v2144
        %v2525 = vpop.f32.mrf.mxu0
        %v2526 = vadd.f32 0.0, %v2525
        %2527 = vmatmul.f32.gmra.mxu0 %v2366
        %v2528 = vpop.f32.mrf.mxu0
        %v2529 = vadd.f32 0.0, %v2528
        %2530 = vmatmul.f32.gmra.mxu0 %v2368
        %v2531 = vpop.f32.mrf.mxu0
        %v2532 = vadd.f32 0.0, %v2531
        %2533 = vdwg.mxu0
        %v2534 = vadd.f32 %v2310, %v2391
        %v2535 = vadd.f32 %v2311, %v2394
        %v2536 = vadd.f32 %v2312, %v2397
        %v2537 = vadd.f32 %v2313, %v2400
        %v2538 = vadd.f32 %v2314, %v2403
        %v2539 = vadd.f32 %v2315, %v2406
        %v2540 = vadd.f32 %v2316, %v2409
        %v2541 = vadd.f32 %v2317, %v2412
        %v2542 = vadd.f32 %v2318, %v2415
        %v2543 = vadd.f32 %v2319, %v2418
        %v2544 = vadd.f32 %v2320, %v2421
        %v2545 = vadd.f32 %v2321, %v2424
        %v2546 = vadd.f32 %v2322, %v2427
        %v2547 = vadd.f32 %v2323, %v2430
        %v2548 = vadd.f32 %v2324, %v2433
        %v2549 = vadd.f32 %v2325, %v2436
        %v2550 = vadd.f32 %v2326, %v2439
        %v2551 = vadd.f32 %v2327, %v2442
        %v2552 = vadd.f32 %v2328, %v2445
        %v2553 = vadd.f32 %v2329, %v2448
        %v2554 = vadd.f32 %v2330, %v2451
        %v2555 = vadd.f32 %v2331, %v2454
        %v2556 = vadd.f32 %v2332, %v2457
        %v2557 = vadd.f32 %v2333, %v2460
        %v2558 = vadd.f32 %v2334, %v2463
        %v2559 = vadd.f32 %v2335, %v2466
        %v2560 = vadd.f32 %v2336, %v2469
        %v2561 = vadd.f32 %v2337, %v2472
        %v2562 = vadd.f32 %v2338, %v2475
        %v2563 = vadd.f32 %v2339, %v2478
        %v2564 = vadd.f32 %v2340, %v2481
        %v2565 = vadd.f32 %v2341, %v2484
        %v2566 = vadd.f32 %v2342, %v2487
        %v2567 = vadd.f32 %v2343, %v2490
        %v2568 = vadd.f32 %v2344, %v2493
        %v2569 = vadd.f32 %v2345, %v2496
        %v2570 = vadd.f32 %v2346, %v2499
        %v2571 = vadd.f32 %v2347, %v2502
        %v2572 = vadd.f32 %v2348, %v2505
        %v2573 = vadd.f32 %v2349, %v2508
        %v2574 = vadd.f32 %v2350, %v2511
        %v2575 = vadd.f32 %v2351, %v2514
        %v2576 = vadd.f32 %v2352, %v2517
        %v2577 = vadd.f32 %v2353, %v2520
        %v2578 = vadd.f32 %v2354, %v2523
        %v2579 = vadd.f32 %v2355, %v2526
        %v2580 = vadd.f32 %v2356, %v2529
        %v2581 = vadd.f32 %v2357, %v2532
        %s2582 = scalar_lea.vmem %s1, 28
        %v2583 = vld [vmem:[%s2582] sm:$0xf]
        %vm2584 = vcmask 1042432
        %v2585 = vrot.slane %v190, 5
        %v2586 = vrot.slane %v191, 5
        %v2587 = vsel %vm2584, %v2585, %v2586
        %v2588 = vrot.slane %v192, 5
        %v2589 = vsel %vm2584, %v2586, %v2588
        %v2590 = vrot.slane %v193, 5
        %v2591 = vsel %vm2584, %v2588, %v2590
        %v2592 = vrot.slane %v194, 5
        %v2593 = vsel %vm2584, %v2590, %v2592
        %v2594 = vrot.slane %v195, 5
        %v2595 = vsel %vm2584, %v2592, %v2594
        %v2596 = vrot.slane %v196, 5
        %v2597 = vsel %vm2584, %v2594, %v2596
        %v2598 = vrot.slane %v197, 5
        %v2599 = vsel %vm2584, %v2596, %v2598
        %v2600 = vrot.slane %v198, 5
        %v2601 = vsel %vm2584, %v2598, %v2600
        %v2602 = vrot.slane %v199, 5
        %v2603 = vsel %vm2584, %v2600, %v2602
        %v2604 = vrot.slane %v200, 5
        %v2605 = vsel %vm2584, %v2602, %v2604
        %v2606 = vrot.slane %v201, 5
        %v2607 = vsel %vm2584, %v2604, %v2606
        %v2608 = vrot.slane %v202, 5
        %v2609 = vsel %vm2584, %v2606, %v2608
        %v2610 = vrot.slane %v203, 5
        %v2611 = vsel %vm2584, %v2608, %v2610
        %v2612 = vrot.slane %v204, 5
        %v2613 = vsel %vm2584, %v2610, %v2612
        %v2614 = vrot.slane %v205, 5
        %v2615 = vsel %vm2584, %v2612, %v2614
        %v2616 = vrot.slane %v206, 5
        %v2617 = vsel %vm2584, %v2614, %v2616
        %v2618 = vrot.slane %v207, 5
        %v2619 = vsel %vm2584, %v2616, %v2618
        %v2620 = vrot.slane %v208, 5
        %v2621 = vsel %vm2584, %v2618, %v2620
        %v2622 = vrot.slane %v209, 5
        %v2623 = vsel %vm2584, %v2620, %v2622
        %v2624 = vrot.slane %v210, 5
        %v2625 = vsel %vm2584, %v2622, %v2624
        %v2626 = vrot.slane %v211, 5
        %v2627 = vsel %vm2584, %v2624, %v2626
        %v2628 = vrot.slane %v212, 5
        %v2629 = vsel %vm2584, %v2626, %v2628
        %v2630 = vrot.slane %v213, 5
        %v2631 = vsel %vm2584, %v2628, %v2630
        %v2632 = vrot.slane %v214, 5
        %v2633 = vsel %vm2584, %v2630, %v2632
        %v2634 = vrot.slane %v215, 5
        %v2635 = vsel %vm2584, %v2632, %v2634
        %v2636 = vrot.slane %v216, 5
        %v2637 = vsel %vm2584, %v2634, %v2636
        %v2638 = vrot.slane %v217, 5
        %v2639 = vsel %vm2584, %v2636, %v2638
        %v2640 = vrot.slane %v218, 5
        %v2641 = vsel %vm2584, %v2638, %v2640
        %v2642 = vrot.slane %v219, 5
        %v2643 = vsel %vm2584, %v2640, %v2642
        %v2644 = vrot.slane %v220, 5
        %v2645 = vsel %vm2584, %v2642, %v2644
        %v2646 = vrot.slane %v221, 5
        %v2647 = vsel %vm2584, %v2644, %v2646
        %v2648 = vrot.slane %v222, 5
        %v2649 = vsel %vm2584, %v2646, %v2648
        %v2650 = vrot.slane %v223, 5
        %v2651 = vsel %vm2584, %v2648, %v2650
        %v2652 = vrot.slane %v224, 5
        %v2653 = vsel %vm2584, %v2650, %v2652
        %v2654 = vrot.slane %v225, 5
        %v2655 = vsel %vm2584, %v2652, %v2654
        %v2656 = vrot.slane %v226, 5
        %v2657 = vsel %vm2584, %v2654, %v2656
        %v2658 = vrot.slane %v227, 5
        %v2659 = vsel %vm2584, %v2656, %v2658
        %v2660 = vrot.slane %v228, 5
        %v2661 = vsel %vm2584, %v2658, %v2660
        %v2662 = vrot.slane %v229, 5
        %v2663 = vsel %vm2584, %v2660, %v2662
        %v2664 = vrot.slane %v230, 5
        %v2665 = vsel %vm2584, %v2662, %v2664
        %v2666 = vrot.slane %v231, 5
        %v2667 = vsel %vm2584, %v2664, %v2666
        %v2668 = vrot.slane %v232, 5
        %v2669 = vsel %vm2584, %v2666, %v2668
        %v2670 = vrot.slane %v233, 5
        %v2671 = vsel %vm2584, %v2668, %v2670
        %v2672 = vrot.slane %v234, 5
        %v2673 = vsel %vm2584, %v2670, %v2672
        %v2674 = vrot.slane %v235, 5
        %v2675 = vsel %vm2584, %v2672, %v2674
        %v2676 = vrot.slane %v236, 5
        %v2677 = vsel %vm2584, %v2674, %v2676
        %v2678 = vrot.slane %v237, 5
        %v2679 = vsel %vm2584, %v2676, %v2678
        %v2680 = vrot.slane %v238, 5
        %v2681 = vsel %vm2584, %v2678, %v2680
        %v2682 = vsel %vm389, %v2587, 0
        %v2684 = vsel %vm389, %v2589, 0
        %v2686 = vsel %vm389, %v2591, 0
        %v2688 = vsel %vm389, %v2593, 0
        %v2690 = vsel %vm389, %v2595, 0
        %v2692 = vsel %vm389, %v2597, 0
        %v2694 = vsel %vm389, %v2599, 0
        %v2696 = vsel %vm389, %v2601, 0
        %v2698 = vsel %vm389, %v2603, 0
        %v2700 = vsel %vm389, %v2605, 0
        %v2702 = vsel %vm389, %v2607, 0
        %v2704 = vsel %vm389, %v2609, 0
        %v2706 = vsel %vm389, %v2611, 0
        %v2708 = vsel %vm389, %v2613, 0
        %v2710 = vsel %vm389, %v2615, 0
        %v2712 = vsel %vm389, %v2617, 0
        %v2714 = vsel %vm389, %v2619, 0
        %v2716 = vsel %vm389, %v2621, 0
        %v2718 = vsel %vm389, %v2623, 0
        %v2720 = vsel %vm389, %v2625, 0
        %v2722 = vsel %vm389, %v2627, 0
        %v2724 = vsel %vm389, %v2629, 0
        %v2726 = vsel %vm389, %v2631, 0
        %v2728 = vsel %vm389, %v2633, 0
        %v2730 = vsel %vm389, %v2635, 0
        %v2732 = vsel %vm389, %v2637, 0
        %v2734 = vsel %vm389, %v2639, 0
        %v2736 = vsel %vm389, %v2641, 0
        %v2738 = vsel %vm389, %v2643, 0
        %v2740 = vsel %vm389, %v2645, 0
        %v2742 = vsel %vm389, %v2647, 0
        %v2744 = vsel %vm389, %v2649, 0
        %v2746 = vsel %vm389, %v2651, 0
        %v2748 = vsel %vm389, %v2653, 0
        %v2750 = vsel %vm389, %v2655, 0
        %v2752 = vsel %vm389, %v2657, 0
        %v2754 = vsel %vm389, %v2659, 0
        %v2756 = vsel %vm389, %v2661, 0
        %v2758 = vsel %vm389, %v2663, 0
        %v2760 = vsel %vm389, %v2665, 0
        %v2762 = vsel %vm389, %v2667, 0
        %v2764 = vsel %vm389, %v2669, 0
        %v2766 = vsel %vm389, %v2671, 0
        %v2768 = vsel %vm389, %v2673, 0
        %v2770 = vsel %vm389, %v2675, 0
        %v2772 = vsel %vm389, %v2677, 0
        %v2774 = vsel %vm389, %v2679, 0
        %v2776 = vsel %vm389, %v2681, 0
        %v2779 = vsel %vm486, %v2583, 0
        %2781 = vmatpush.msra.mxu0 0.0
        %2782 = vmatpush.msra.mxu0 0.0
        %2783 = vmatpush.msra.mxu0 0.0
        %2784 = vmatpush.msra.mxu0 0.0
        %2785 = vmatpush.msra.mxu0 0.0
        %2786 = vmatpush.msra.mxu0 0.0
        %2787 = vmatpush.msra.mxu0 0.0
        %2788 = vmatpush.msra.mxu0 0.0
        %2789 = vmatpush.msra.mxu0 0.0
        %2790 = vmatpush.msra.mxu0 0.0
        %2791 = vmatpush.msra.mxu0 0.0
        %2792 = vmatpush.msra.mxu0 0.0
        %2793 = vmatpush.msra.mxu0 0.0
        %2794 = vmatpush.msra.mxu0 0.0
        %2795 = vmatpush.msra.mxu0 0.0
        %2796 = vmatpush.msra.mxu0 %v2779
        %2797 = vmatmul.f32.gmra.mxu0 %v2682
        %v2798 = vpop.f32.mrf.mxu0
        %v2799 = vadd.f32 0.0, %v2798
        %2800 = vmatmul.f32.gmra.mxu0 %v2684
        %v2801 = vpop.f32.mrf.mxu0
        %v2802 = vadd.f32 0.0, %v2801
        %2803 = vmatmul.f32.gmra.mxu0 %v2686
        %v2804 = vpop.f32.mrf.mxu0
        %v2805 = vadd.f32 0.0, %v2804
        %2806 = vmatmul.f32.gmra.mxu0 %v2688
        %v2807 = vpop.f32.mrf.mxu0
        %v2808 = vadd.f32 0.0, %v2807
        %2809 = vmatmul.f32.gmra.mxu0 %v2690
        %v2810 = vpop.f32.mrf.mxu0
        %v2811 = vadd.f32 0.0, %v2810
        %2812 = vmatmul.f32.gmra.mxu0 %v2692
        %v2813 = vpop.f32.mrf.mxu0
        %v2814 = vadd.f32 0.0, %v2813
        %2815 = vmatmul.f32.gmra.mxu0 %v2694
        %v2816 = vpop.f32.mrf.mxu0
        %v2817 = vadd.f32 0.0, %v2816
        %2818 = vmatmul.f32.gmra.mxu0 %v2696
        %v2819 = vpop.f32.mrf.mxu0
        %v2820 = vadd.f32 0.0, %v2819
        %2821 = vmatmul.f32.gmra.mxu0 %v2698
        %v2822 = vpop.f32.mrf.mxu0
        %v2823 = vadd.f32 0.0, %v2822
        %2824 = vmatmul.f32.gmra.mxu0 %v2700
        %v2825 = vpop.f32.mrf.mxu0
        %v2826 = vadd.f32 0.0, %v2825
        %2827 = vmatmul.f32.gmra.mxu0 %v2702
        %v2828 = vpop.f32.mrf.mxu0
        %v2829 = vadd.f32 0.0, %v2828
        %2830 = vmatmul.f32.gmra.mxu0 %v2704
        %v2831 = vpop.f32.mrf.mxu0
        %v2832 = vadd.f32 0.0, %v2831
        %2833 = vmatmul.f32.gmra.mxu0 %v2706
        %v2834 = vpop.f32.mrf.mxu0
        %v2835 = vadd.f32 0.0, %v2834
        %2836 = vmatmul.f32.gmra.mxu0 %v2708
        %v2837 = vpop.f32.mrf.mxu0
        %v2838 = vadd.f32 0.0, %v2837
        %2839 = vmatmul.f32.gmra.mxu0 %v2710
        %v2840 = vpop.f32.mrf.mxu0
        %v2841 = vadd.f32 0.0, %v2840
        %2842 = vmatmul.f32.gmra.mxu0 %v2712
        %v2843 = vpop.f32.mrf.mxu0
        %v2844 = vadd.f32 0.0, %v2843
        %2845 = vmatmul.f32.gmra.mxu0 %v2714
        %v2846 = vpop.f32.mrf.mxu0
        %v2847 = vadd.f32 0.0, %v2846
        %2848 = vmatmul.f32.gmra.mxu0 %v2716
        %v2849 = vpop.f32.mrf.mxu0
        %v2850 = vadd.f32 0.0, %v2849
        %2851 = vmatmul.f32.gmra.mxu0 %v2718
        %v2852 = vpop.f32.mrf.mxu0
        %v2853 = vadd.f32 0.0, %v2852
        %2854 = vmatmul.f32.gmra.mxu0 %v2720
        %v2855 = vpop.f32.mrf.mxu0
        %v2856 = vadd.f32 0.0, %v2855
        %2857 = vmatmul.f32.gmra.mxu0 %v2722
        %v2858 = vpop.f32.mrf.mxu0
        %v2859 = vadd.f32 0.0, %v2858
        %2860 = vmatmul.f32.gmra.mxu0 %v2724
        %v2861 = vpop.f32.mrf.mxu0
        %v2862 = vadd.f32 0.0, %v2861
        %2863 = vmatmul.f32.gmra.mxu0 %v2726
        %v2864 = vpop.f32.mrf.mxu0
        %v2865 = vadd.f32 0.0, %v2864
        %2866 = vmatmul.f32.gmra.mxu0 %v2728
        %v2867 = vpop.f32.mrf.mxu0
        %v2868 = vadd.f32 0.0, %v2867
        %2869 = vmatmul.f32.gmra.mxu0 %v2730
        %v2870 = vpop.f32.mrf.mxu0
        %v2871 = vadd.f32 0.0, %v2870
        %2872 = vmatmul.f32.gmra.mxu0 %v2732
        %v2873 = vpop.f32.mrf.mxu0
        %v2874 = vadd.f32 0.0, %v2873
        %2875 = vmatmul.f32.gmra.mxu0 %v2734
        %v2876 = vpop.f32.mrf.mxu0
        %v2877 = vadd.f32 0.0, %v2876
        %2878 = vmatmul.f32.gmra.mxu0 %v2736
        %v2879 = vpop.f32.mrf.mxu0
        %v2880 = vadd.f32 0.0, %v2879
        %2881 = vmatmul.f32.gmra.mxu0 %v2738
        %v2882 = vpop.f32.mrf.mxu0
        %v2883 = vadd.f32 0.0, %v2882
        %2884 = vmatmul.f32.gmra.mxu0 %v2740
        %v2885 = vpop.f32.mrf.mxu0
        %v2886 = vadd.f32 0.0, %v2885
        %2887 = vmatmul.f32.gmra.mxu0 %v2742
        %v2888 = vpop.f32.mrf.mxu0
        %v2889 = vadd.f32 0.0, %v2888
        %2890 = vmatmul.f32.gmra.mxu0 %v2744
        %v2891 = vpop.f32.mrf.mxu0
        %v2892 = vadd.f32 0.0, %v2891
        %2893 = vmatmul.f32.gmra.mxu0 %v2746
        %v2894 = vpop.f32.mrf.mxu0
        %v2895 = vadd.f32 0.0, %v2894
        %2896 = vmatmul.f32.gmra.mxu0 %v2748
        %v2897 = vpop.f32.mrf.mxu0
        %v2898 = vadd.f32 0.0, %v2897
        %2899 = vmatmul.f32.gmra.mxu0 %v2750
        %v2900 = vpop.f32.mrf.mxu0
        %v2901 = vadd.f32 0.0, %v2900
        %2902 = vmatmul.f32.gmra.mxu0 %v2752
        %v2903 = vpop.f32.mrf.mxu0
        %v2904 = vadd.f32 0.0, %v2903
        %2905 = vmatmul.f32.gmra.mxu0 %v2754
        %v2906 = vpop.f32.mrf.mxu0
        %v2907 = vadd.f32 0.0, %v2906
        %2908 = vmatmul.f32.gmra.mxu0 %v2756
        %v2909 = vpop.f32.mrf.mxu0
        %v2910 = vadd.f32 0.0, %v2909
        %2911 = vmatmul.f32.gmra.mxu0 %v2758
        %v2912 = vpop.f32.mrf.mxu0
        %v2913 = vadd.f32 0.0, %v2912
        %2914 = vmatmul.f32.gmra.mxu0 %v2760
        %v2915 = vpop.f32.mrf.mxu0
        %v2916 = vadd.f32 0.0, %v2915
        %2917 = vmatmul.f32.gmra.mxu0 %v2762
        %v2918 = vpop.f32.mrf.mxu0
        %v2919 = vadd.f32 0.0, %v2918
        %2920 = vmatmul.f32.gmra.mxu0 %v2764
        %v2921 = vpop.f32.mrf.mxu0
        %v2922 = vadd.f32 0.0, %v2921
        %2923 = vmatmul.f32.gmra.mxu0 %v2766
        %v2924 = vpop.f32.mrf.mxu0
        %v2925 = vadd.f32 0.0, %v2924
        %2926 = vmatmul.f32.gmra.mxu0 %v2768
        %v2927 = vpop.f32.mrf.mxu0
        %v2928 = vadd.f32 0.0, %v2927
        %2929 = vmatmul.f32.gmra.mxu0 %v2770
        %v2930 = vpop.f32.mrf.mxu0
        %v2931 = vadd.f32 0.0, %v2930
        %2932 = vmatmul.f32.gmra.mxu0 %v2772
        %v2933 = vpop.f32.mrf.mxu0
        %v2934 = vadd.f32 0.0, %v2933
        %2935 = vmatmul.f32.gmra.mxu0 %v2774
        %v2936 = vpop.f32.mrf.mxu0
        %v2937 = vadd.f32 0.0, %v2936
        %2938 = vmatmul.f32.gmra.mxu0 %v2776
        %v2939 = vpop.f32.mrf.mxu0
        %v2940 = vadd.f32 0.0, %v2939
        %2941 = vdwg.mxu0
        %v2942 = vadd.f32 %v2534, %v2799
        %v2943 = vadd.f32 %v2535, %v2802
        %v2944 = vadd.f32 %v2536, %v2805
        %v2945 = vadd.f32 %v2537, %v2808
        %v2946 = vadd.f32 %v2538, %v2811
        %v2947 = vadd.f32 %v2539, %v2814
        %v2948 = vadd.f32 %v2540, %v2817
        %v2949 = vadd.f32 %v2541, %v2820
        %v2950 = vadd.f32 %v2542, %v2823
        %v2951 = vadd.f32 %v2543, %v2826
        %v2952 = vadd.f32 %v2544, %v2829
        %v2953 = vadd.f32 %v2545, %v2832
        %v2954 = vadd.f32 %v2546, %v2835
        %v2955 = vadd.f32 %v2547, %v2838
        %v2956 = vadd.f32 %v2548, %v2841
        %v2957 = vadd.f32 %v2549, %v2844
        %v2958 = vadd.f32 %v2550, %v2847
        %v2959 = vadd.f32 %v2551, %v2850
        %v2960 = vadd.f32 %v2552, %v2853
        %v2961 = vadd.f32 %v2553, %v2856
        %v2962 = vadd.f32 %v2554, %v2859
        %v2963 = vadd.f32 %v2555, %v2862
        %v2964 = vadd.f32 %v2556, %v2865
        %v2965 = vadd.f32 %v2557, %v2868
        %v2966 = vadd.f32 %v2558, %v2871
        %v2967 = vadd.f32 %v2559, %v2874
        %v2968 = vadd.f32 %v2560, %v2877
        %v2969 = vadd.f32 %v2561, %v2880
        %v2970 = vadd.f32 %v2562, %v2883
        %v2971 = vadd.f32 %v2563, %v2886
        %v2972 = vadd.f32 %v2564, %v2889
        %v2973 = vadd.f32 %v2565, %v2892
        %v2974 = vadd.f32 %v2566, %v2895
        %v2975 = vadd.f32 %v2567, %v2898
        %v2976 = vadd.f32 %v2568, %v2901
        %v2977 = vadd.f32 %v2569, %v2904
        %v2978 = vadd.f32 %v2570, %v2907
        %v2979 = vadd.f32 %v2571, %v2910
        %v2980 = vadd.f32 %v2572, %v2913
        %v2981 = vadd.f32 %v2573, %v2916
        %v2982 = vadd.f32 %v2574, %v2919
        %v2983 = vadd.f32 %v2575, %v2922
        %v2984 = vadd.f32 %v2576, %v2925
        %v2985 = vadd.f32 %v2577, %v2928
        %v2986 = vadd.f32 %v2578, %v2931
        %v2987 = vadd.f32 %v2579, %v2934
        %v2988 = vadd.f32 %v2580, %v2937
        %v2989 = vadd.f32 %v2581, %v2940
        %s2990 = scalar_lea.vmem %s1, 32
        %v2991 = vld [vmem:[%s2990] sm:$0xf]
        %vm2992 = vcmask 1041408
        %v2993 = vrot.slane %v190, 6
        %v2994 = vrot.slane %v191, 6
        %v2995 = vsel %vm2992, %v2993, %v2994
        %v2996 = vrot.slane %v192, 6
        %v2997 = vsel %vm2992, %v2994, %v2996
        %v2998 = vrot.slane %v193, 6
        %v2999 = vsel %vm2992, %v2996, %v2998
        %v3000 = vrot.slane %v194, 6
        %v3001 = vsel %vm2992, %v2998, %v3000
        %v3002 = vrot.slane %v195, 6
        %v3003 = vsel %vm2992, %v3000, %v3002
        %v3004 = vrot.slane %v196, 6
        %v3005 = vsel %vm2992, %v3002, %v3004
        %v3006 = vrot.slane %v197, 6
        %v3007 = vsel %vm2992, %v3004, %v3006
        %v3008 = vrot.slane %v198, 6
        %v3009 = vsel %vm2992, %v3006, %v3008
        %v3010 = vrot.slane %v199, 6
        %v3011 = vsel %vm2992, %v3008, %v3010
        %v3012 = vrot.slane %v200, 6
        %v3013 = vsel %vm2992, %v3010, %v3012
        %v3014 = vrot.slane %v201, 6
        %v3015 = vsel %vm2992, %v3012, %v3014
        %v3016 = vrot.slane %v202, 6
        %v3017 = vsel %vm2992, %v3014, %v3016
        %v3018 = vrot.slane %v203, 6
        %v3019 = vsel %vm2992, %v3016, %v3018
        %v3020 = vrot.slane %v204, 6
        %v3021 = vsel %vm2992, %v3018, %v3020
        %v3022 = vrot.slane %v205, 6
        %v3023 = vsel %vm2992, %v3020, %v3022
        %v3024 = vrot.slane %v206, 6
        %v3025 = vsel %vm2992, %v3022, %v3024
        %v3026 = vrot.slane %v207, 6
        %v3027 = vsel %vm2992, %v3024, %v3026
        %v3028 = vrot.slane %v208, 6
        %v3029 = vsel %vm2992, %v3026, %v3028
        %v3030 = vrot.slane %v209, 6
        %v3031 = vsel %vm2992, %v3028, %v3030
        %v3032 = vrot.slane %v210, 6
        %v3033 = vsel %vm2992, %v3030, %v3032
        %v3034 = vrot.slane %v211, 6
        %v3035 = vsel %vm2992, %v3032, %v3034
        %v3036 = vrot.slane %v212, 6
        %v3037 = vsel %vm2992, %v3034, %v3036
        %v3038 = vrot.slane %v213, 6
        %v3039 = vsel %vm2992, %v3036, %v3038
        %v3040 = vrot.slane %v214, 6
        %v3041 = vsel %vm2992, %v3038, %v3040
        %v3042 = vrot.slane %v215, 6
        %v3043 = vsel %vm2992, %v3040, %v3042
        %v3044 = vrot.slane %v216, 6
        %v3045 = vsel %vm2992, %v3042, %v3044
        %v3046 = vrot.slane %v217, 6
        %v3047 = vsel %vm2992, %v3044, %v3046
        %v3048 = vrot.slane %v218, 6
        %v3049 = vsel %vm2992, %v3046, %v3048
        %v3050 = vrot.slane %v219, 6
        %v3051 = vsel %vm2992, %v3048, %v3050
        %v3052 = vrot.slane %v220, 6
        %v3053 = vsel %vm2992, %v3050, %v3052
        %v3054 = vrot.slane %v221, 6
        %v3055 = vsel %vm2992, %v3052, %v3054
        %v3056 = vrot.slane %v222, 6
        %v3057 = vsel %vm2992, %v3054, %v3056
        %v3058 = vrot.slane %v223, 6
        %v3059 = vsel %vm2992, %v3056, %v3058
        %v3060 = vrot.slane %v224, 6
        %v3061 = vsel %vm2992, %v3058, %v3060
        %v3062 = vrot.slane %v225, 6
        %v3063 = vsel %vm2992, %v3060, %v3062
        %v3064 = vrot.slane %v226, 6
        %v3065 = vsel %vm2992, %v3062, %v3064
        %v3066 = vrot.slane %v227, 6
        %v3067 = vsel %vm2992, %v3064, %v3066
        %v3068 = vrot.slane %v228, 6
        %v3069 = vsel %vm2992, %v3066, %v3068
        %v3070 = vrot.slane %v229, 6
        %v3071 = vsel %vm2992, %v3068, %v3070
        %v3072 = vrot.slane %v230, 6
        %v3073 = vsel %vm2992, %v3070, %v3072
        %v3074 = vrot.slane %v231, 6
        %v3075 = vsel %vm2992, %v3072, %v3074
        %v3076 = vrot.slane %v232, 6
        %v3077 = vsel %vm2992, %v3074, %v3076
        %v3078 = vrot.slane %v233, 6
        %v3079 = vsel %vm2992, %v3076, %v3078
        %v3080 = vrot.slane %v234, 6
        %v3081 = vsel %vm2992, %v3078, %v3080
        %v3082 = vrot.slane %v235, 6
        %v3083 = vsel %vm2992, %v3080, %v3082
        %v3084 = vrot.slane %v236, 6
        %v3085 = vsel %vm2992, %v3082, %v3084
        %v3086 = vrot.slane %v237, 6
        %v3087 = vsel %vm2992, %v3084, %v3086
        %v3088 = vrot.slane %v238, 6
        %v3089 = vsel %vm2992, %v3086, %v3088
        %v3090 = vsel %vm389, %v2995, 0
        %v3092 = vsel %vm389, %v2997, 0
        %v3094 = vsel %vm389, %v2999, 0
        %v3096 = vsel %vm389, %v3001, 0
        %v3098 = vsel %vm389, %v3003, 0
        %v3100 = vsel %vm389, %v3005, 0
        %v3102 = vsel %vm389, %v3007, 0
        %v3104 = vsel %vm389, %v3009, 0
        %v3106 = vsel %vm389, %v3011, 0
        %v3108 = vsel %vm389, %v3013, 0
        %v3110 = vsel %vm389, %v3015, 0
        %v3112 = vsel %vm389, %v3017, 0
        %v3114 = vsel %vm389, %v3019, 0
        %v3116 = vsel %vm389, %v3021, 0
        %v3118 = vsel %vm389, %v3023, 0
        %v3120 = vsel %vm389, %v3025, 0
        %v3122 = vsel %vm389, %v3027, 0
        %v3124 = vsel %vm389, %v3029, 0
        %v3126 = vsel %vm389, %v3031, 0
        %v3128 = vsel %vm389, %v3033, 0
        %v3130 = vsel %vm389, %v3035, 0
        %v3132 = vsel %vm389, %v3037, 0
        %v3134 = vsel %vm389, %v3039, 0
        %v3136 = vsel %vm389, %v3041, 0
        %v3138 = vsel %vm389, %v3043, 0
        %v3140 = vsel %vm389, %v3045, 0
        %v3142 = vsel %vm389, %v3047, 0
        %v3144 = vsel %vm389, %v3049, 0
        %v3146 = vsel %vm389, %v3051, 0
        %v3148 = vsel %vm389, %v3053, 0
        %v3150 = vsel %vm389, %v3055, 0
        %v3152 = vsel %vm389, %v3057, 0
        %v3154 = vsel %vm389, %v3059, 0
        %v3156 = vsel %vm389, %v3061, 0
        %v3158 = vsel %vm389, %v3063, 0
        %v3160 = vsel %vm389, %v3065, 0
        %v3162 = vsel %vm389, %v3067, 0
        %v3164 = vsel %vm389, %v3069, 0
        %v3166 = vsel %vm389, %v3071, 0
        %v3168 = vsel %vm389, %v3073, 0
        %v3170 = vsel %vm389, %v3075, 0
        %v3172 = vsel %vm389, %v3077, 0
        %v3174 = vsel %vm389, %v3079, 0
        %v3176 = vsel %vm389, %v3081, 0
        %v3178 = vsel %vm389, %v3083, 0
        %v3180 = vsel %vm389, %v3085, 0
        %v3182 = vsel %vm389, %v3087, 0
        %v3184 = vsel %vm389, %v3089, 0
        %v3187 = vsel %vm486, %v2991, 0
        %3189 = vmatpush.msra.mxu0 0.0
        %3190 = vmatpush.msra.mxu0 0.0
        %3191 = vmatpush.msra.mxu0 0.0
        %3192 = vmatpush.msra.mxu0 0.0
        %3193 = vmatpush.msra.mxu0 0.0
        %3194 = vmatpush.msra.mxu0 0.0
        %3195 = vmatpush.msra.mxu0 0.0
        %3196 = vmatpush.msra.mxu0 0.0
        %3197 = vmatpush.msra.mxu0 0.0
        %3198 = vmatpush.msra.mxu0 0.0
        %3199 = vmatpush.msra.mxu0 0.0
        %3200 = vmatpush.msra.mxu0 0.0
        %3201 = vmatpush.msra.mxu0 0.0
        %3202 = vmatpush.msra.mxu0 0.0
        %3203 = vmatpush.msra.mxu0 0.0
        %3204 = vmatpush.msra.mxu0 %v3187
        %3205 = vmatmul.f32.gmra.mxu0 %v3090
        %v3206 = vpop.f32.mrf.mxu0
        %v3207 = vadd.f32 0.0, %v3206
        %3208 = vmatmul.f32.gmra.mxu0 %v3092
        %v3209 = vpop.f32.mrf.mxu0
        %v3210 = vadd.f32 0.0, %v3209
        %3211 = vmatmul.f32.gmra.mxu0 %v3094
        %v3212 = vpop.f32.mrf.mxu0
        %v3213 = vadd.f32 0.0, %v3212
        %3214 = vmatmul.f32.gmra.mxu0 %v3096
        %v3215 = vpop.f32.mrf.mxu0
        %v3216 = vadd.f32 0.0, %v3215
        %3217 = vmatmul.f32.gmra.mxu0 %v3098
        %v3218 = vpop.f32.mrf.mxu0
        %v3219 = vadd.f32 0.0, %v3218
        %3220 = vmatmul.f32.gmra.mxu0 %v3100
        %v3221 = vpop.f32.mrf.mxu0
        %v3222 = vadd.f32 0.0, %v3221
        %3223 = vmatmul.f32.gmra.mxu0 %v3102
        %v3224 = vpop.f32.mrf.mxu0
        %v3225 = vadd.f32 0.0, %v3224
        %3226 = vmatmul.f32.gmra.mxu0 %v3104
        %v3227 = vpop.f32.mrf.mxu0
        %v3228 = vadd.f32 0.0, %v3227
        %3229 = vmatmul.f32.gmra.mxu0 %v3106
        %v3230 = vpop.f32.mrf.mxu0
        %v3231 = vadd.f32 0.0, %v3230
        %3232 = vmatmul.f32.gmra.mxu0 %v3108
        %v3233 = vpop.f32.mrf.mxu0
        %v3234 = vadd.f32 0.0, %v3233
        %3235 = vmatmul.f32.gmra.mxu0 %v3110
        %v3236 = vpop.f32.mrf.mxu0
        %v3237 = vadd.f32 0.0, %v3236
        %3238 = vmatmul.f32.gmra.mxu0 %v3112
        %v3239 = vpop.f32.mrf.mxu0
        %v3240 = vadd.f32 0.0, %v3239
        %3241 = vmatmul.f32.gmra.mxu0 %v3114
        %v3242 = vpop.f32.mrf.mxu0
        %v3243 = vadd.f32 0.0, %v3242
        %3244 = vmatmul.f32.gmra.mxu0 %v3116
        %v3245 = vpop.f32.mrf.mxu0
        %v3246 = vadd.f32 0.0, %v3245
        %3247 = vmatmul.f32.gmra.mxu0 %v3118
        %v3248 = vpop.f32.mrf.mxu0
        %v3249 = vadd.f32 0.0, %v3248
        %3250 = vmatmul.f32.gmra.mxu0 %v3120
        %v3251 = vpop.f32.mrf.mxu0
        %v3252 = vadd.f32 0.0, %v3251
        %3253 = vmatmul.f32.gmra.mxu0 %v3122
        %v3254 = vpop.f32.mrf.mxu0
        %v3255 = vadd.f32 0.0, %v3254
        %3256 = vmatmul.f32.gmra.mxu0 %v3124
        %v3257 = vpop.f32.mrf.mxu0
        %v3258 = vadd.f32 0.0, %v3257
        %3259 = vmatmul.f32.gmra.mxu0 %v3126
        %v3260 = vpop.f32.mrf.mxu0
        %v3261 = vadd.f32 0.0, %v3260
        %3262 = vmatmul.f32.gmra.mxu0 %v3128
        %v3263 = vpop.f32.mrf.mxu0
        %v3264 = vadd.f32 0.0, %v3263
        %3265 = vmatmul.f32.gmra.mxu0 %v3130
        %v3266 = vpop.f32.mrf.mxu0
        %v3267 = vadd.f32 0.0, %v3266
        %3268 = vmatmul.f32.gmra.mxu0 %v3132
        %v3269 = vpop.f32.mrf.mxu0
        %v3270 = vadd.f32 0.0, %v3269
        %3271 = vmatmul.f32.gmra.mxu0 %v3134
        %v3272 = vpop.f32.mrf.mxu0
        %v3273 = vadd.f32 0.0, %v3272
        %3274 = vmatmul.f32.gmra.mxu0 %v3136
        %v3275 = vpop.f32.mrf.mxu0
        %v3276 = vadd.f32 0.0, %v3275
        %3277 = vmatmul.f32.gmra.mxu0 %v3138
        %v3278 = vpop.f32.mrf.mxu0
        %v3279 = vadd.f32 0.0, %v3278
        %3280 = vmatmul.f32.gmra.mxu0 %v3140
        %v3281 = vpop.f32.mrf.mxu0
        %v3282 = vadd.f32 0.0, %v3281
        %3283 = vmatmul.f32.gmra.mxu0 %v3142
        %v3284 = vpop.f32.mrf.mxu0
        %v3285 = vadd.f32 0.0, %v3284
        %3286 = vmatmul.f32.gmra.mxu0 %v3144
        %v3287 = vpop.f32.mrf.mxu0
        %v3288 = vadd.f32 0.0, %v3287
        %3289 = vmatmul.f32.gmra.mxu0 %v3146
        %v3290 = vpop.f32.mrf.mxu0
        %v3291 = vadd.f32 0.0, %v3290
        %3292 = vmatmul.f32.gmra.mxu0 %v3148
        %v3293 = vpop.f32.mrf.mxu0
        %v3294 = vadd.f32 0.0, %v3293
        %3295 = vmatmul.f32.gmra.mxu0 %v3150
        %v3296 = vpop.f32.mrf.mxu0
        %v3297 = vadd.f32 0.0, %v3296
        %3298 = vmatmul.f32.gmra.mxu0 %v3152
        %v3299 = vpop.f32.mrf.mxu0
        %v3300 = vadd.f32 0.0, %v3299
        %3301 = vmatmul.f32.gmra.mxu0 %v3154
        %v3302 = vpop.f32.mrf.mxu0
        %v3303 = vadd.f32 0.0, %v3302
        %3304 = vmatmul.f32.gmra.mxu0 %v3156
        %v3305 = vpop.f32.mrf.mxu0
        %v3306 = vadd.f32 0.0, %v3305
        %3307 = vmatmul.f32.gmra.mxu0 %v3158
        %v3308 = vpop.f32.mrf.mxu0
        %v3309 = vadd.f32 0.0, %v3308
        %3310 = vmatmul.f32.gmra.mxu0 %v3160
        %v3311 = vpop.f32.mrf.mxu0
        %v3312 = vadd.f32 0.0, %v3311
        %3313 = vmatmul.f32.gmra.mxu0 %v3162
        %v3314 = vpop.f32.mrf.mxu0
        %v3315 = vadd.f32 0.0, %v3314
        %3316 = vmatmul.f32.gmra.mxu0 %v3164
        %v3317 = vpop.f32.mrf.mxu0
        %v3318 = vadd.f32 0.0, %v3317
        %3319 = vmatmul.f32.gmra.mxu0 %v3166
        %v3320 = vpop.f32.mrf.mxu0
        %v3321 = vadd.f32 0.0, %v3320
        %3322 = vmatmul.f32.gmra.mxu0 %v3168
        %v3323 = vpop.f32.mrf.mxu0
        %v3324 = vadd.f32 0.0, %v3323
        %3325 = vmatmul.f32.gmra.mxu0 %v3170
        %v3326 = vpop.f32.mrf.mxu0
        %v3327 = vadd.f32 0.0, %v3326
        %3328 = vmatmul.f32.gmra.mxu0 %v3172
        %v3329 = vpop.f32.mrf.mxu0
        %v3330 = vadd.f32 0.0, %v3329
        %3331 = vmatmul.f32.gmra.mxu0 %v3174
        %v3332 = vpop.f32.mrf.mxu0
        %v3333 = vadd.f32 0.0, %v3332
        %3334 = vmatmul.f32.gmra.mxu0 %v3176
        %v3335 = vpop.f32.mrf.mxu0
        %v3336 = vadd.f32 0.0, %v3335
        %3337 = vmatmul.f32.gmra.mxu0 %v3178
        %v3338 = vpop.f32.mrf.mxu0
        %v3339 = vadd.f32 0.0, %v3338
        %3340 = vmatmul.f32.gmra.mxu0 %v3180
        %v3341 = vpop.f32.mrf.mxu0
        %v3342 = vadd.f32 0.0, %v3341
        %3343 = vmatmul.f32.gmra.mxu0 %v3182
        %v3344 = vpop.f32.mrf.mxu0
        %v3345 = vadd.f32 0.0, %v3344
        %3346 = vmatmul.f32.gmra.mxu0 %v3184
        %v3347 = vpop.f32.mrf.mxu0
        %v3348 = vadd.f32 0.0, %v3347
        %3349 = vdwg.mxu0
        %v3350 = vadd.f32 %v2942, %v3207
        %v3351 = vadd.f32 %v2943, %v3210
        %v3352 = vadd.f32 %v2944, %v3213
        %v3353 = vadd.f32 %v2945, %v3216
        %v3354 = vadd.f32 %v2946, %v3219
        %v3355 = vadd.f32 %v2947, %v3222
        %v3356 = vadd.f32 %v2948, %v3225
        %v3357 = vadd.f32 %v2949, %v3228
        %v3358 = vadd.f32 %v2950, %v3231
        %v3359 = vadd.f32 %v2951, %v3234
        %v3360 = vadd.f32 %v2952, %v3237
        %v3361 = vadd.f32 %v2953, %v3240
        %v3362 = vadd.f32 %v2954, %v3243
        %v3363 = vadd.f32 %v2955, %v3246
        %v3364 = vadd.f32 %v2956, %v3249
        %v3365 = vadd.f32 %v2957, %v3252
        %v3366 = vadd.f32 %v2958, %v3255
        %v3367 = vadd.f32 %v2959, %v3258
        %v3368 = vadd.f32 %v2960, %v3261
        %v3369 = vadd.f32 %v2961, %v3264
        %v3370 = vadd.f32 %v2962, %v3267
        %v3371 = vadd.f32 %v2963, %v3270
        %v3372 = vadd.f32 %v2964, %v3273
        %v3373 = vadd.f32 %v2965, %v3276
        %v3374 = vadd.f32 %v2966, %v3279
        %v3375 = vadd.f32 %v2967, %v3282
        %v3376 = vadd.f32 %v2968, %v3285
        %v3377 = vadd.f32 %v2969, %v3288
        %v3378 = vadd.f32 %v2970, %v3291
        %v3379 = vadd.f32 %v2971, %v3294
        %v3380 = vadd.f32 %v2972, %v3297
        %v3381 = vadd.f32 %v2973, %v3300
        %v3382 = vadd.f32 %v2974, %v3303
        %v3383 = vadd.f32 %v2975, %v3306
        %v3384 = vadd.f32 %v2976, %v3309
        %v3385 = vadd.f32 %v2977, %v3312
        %v3386 = vadd.f32 %v2978, %v3315
        %v3387 = vadd.f32 %v2979, %v3318
        %v3388 = vadd.f32 %v2980, %v3321
        %v3389 = vadd.f32 %v2981, %v3324
        %v3390 = vadd.f32 %v2982, %v3327
        %v3391 = vadd.f32 %v2983, %v3330
        %v3392 = vadd.f32 %v2984, %v3333
        %v3393 = vadd.f32 %v2985, %v3336
        %v3394 = vadd.f32 %v2986, %v3339
        %v3395 = vadd.f32 %v2987, %v3342
        %v3396 = vadd.f32 %v2988, %v3345
        %v3397 = vadd.f32 %v2989, %v3348
        %v3398 = vld [vmem:[%s2] sm:$0x1]
        %v3400 = vperm.slane %v3398, 0
        %v3402 = vadd.f32 %v3350, %v3400
        %v3403 = vadd.f32 %v3351, %v3400
        %v3404 = vadd.f32 %v3352, %v3400
        %v3405 = vadd.f32 %v3353, %v3400
        %v3406 = vadd.f32 %v3354, %v3400
        %v3407 = vadd.f32 %v3355, %v3400
        %v3408 = vadd.f32 %v3356, %v3400
        %v3409 = vadd.f32 %v3357, %v3400
        %v3410 = vadd.f32 %v3358, %v3400
        %v3411 = vadd.f32 %v3359, %v3400
        %v3412 = vadd.f32 %v3360, %v3400
        %v3413 = vadd.f32 %v3361, %v3400
        %v3414 = vadd.f32 %v3362, %v3400
        %v3415 = vadd.f32 %v3363, %v3400
        %v3416 = vadd.f32 %v3364, %v3400
        %v3417 = vadd.f32 %v3365, %v3400
        %v3418 = vadd.f32 %v3366, %v3400
        %v3419 = vadd.f32 %v3367, %v3400
        %v3420 = vadd.f32 %v3368, %v3400
        %v3421 = vadd.f32 %v3369, %v3400
        %v3422 = vadd.f32 %v3370, %v3400
        %v3423 = vadd.f32 %v3371, %v3400
        %v3424 = vadd.f32 %v3372, %v3400
        %v3425 = vadd.f32 %v3373, %v3400
        %v3426 = vadd.f32 %v3374, %v3400
        %v3427 = vadd.f32 %v3375, %v3400
        %v3428 = vadd.f32 %v3376, %v3400
        %v3429 = vadd.f32 %v3377, %v3400
        %v3430 = vadd.f32 %v3378, %v3400
        %v3431 = vadd.f32 %v3379, %v3400
        %v3432 = vadd.f32 %v3380, %v3400
        %v3433 = vadd.f32 %v3381, %v3400
        %v3434 = vadd.f32 %v3382, %v3400
        %v3435 = vadd.f32 %v3383, %v3400
        %v3436 = vadd.f32 %v3384, %v3400
        %v3437 = vadd.f32 %v3385, %v3400
        %v3438 = vadd.f32 %v3386, %v3400
        %v3439 = vadd.f32 %v3387, %v3400
        %v3440 = vadd.f32 %v3388, %v3400
        %v3441 = vadd.f32 %v3389, %v3400
        %v3442 = vadd.f32 %v3390, %v3400
        %v3443 = vadd.f32 %v3391, %v3400
        %v3444 = vadd.f32 %v3392, %v3400
        %v3445 = vadd.f32 %v3393, %v3400
        %v3446 = vadd.f32 %v3394, %v3400
        %v3447 = vadd.f32 %v3395, %v3400
        %v3448 = vadd.f32 %v3396, %v3400
        %v3449 = vadd.f32 %v3397, %v3400
        %v3450 = vxor.u32 %v3402, 2147483648
        %v3451 = vxor.u32 %v3403, 2147483648
        %v3452 = vxor.u32 %v3404, 2147483648
        %v3453 = vxor.u32 %v3405, 2147483648
        %v3454 = vxor.u32 %v3406, 2147483648
        %v3455 = vxor.u32 %v3407, 2147483648
        %v3456 = vxor.u32 %v3408, 2147483648
        %v3457 = vxor.u32 %v3409, 2147483648
        %v3458 = vxor.u32 %v3410, 2147483648
        %v3459 = vxor.u32 %v3411, 2147483648
        %v3460 = vxor.u32 %v3412, 2147483648
        %v3461 = vxor.u32 %v3413, 2147483648
        %v3462 = vxor.u32 %v3414, 2147483648
        %v3463 = vxor.u32 %v3415, 2147483648
        %v3464 = vxor.u32 %v3416, 2147483648
        %v3465 = vxor.u32 %v3417, 2147483648
        %v3466 = vxor.u32 %v3418, 2147483648
        %v3467 = vxor.u32 %v3419, 2147483648
        %v3468 = vxor.u32 %v3420, 2147483648
        %v3469 = vxor.u32 %v3421, 2147483648
        %v3470 = vxor.u32 %v3422, 2147483648
        %v3471 = vxor.u32 %v3423, 2147483648
        %v3472 = vxor.u32 %v3424, 2147483648
        %v3473 = vxor.u32 %v3425, 2147483648
        %v3474 = vxor.u32 %v3426, 2147483648
        %v3475 = vxor.u32 %v3427, 2147483648
        %v3476 = vxor.u32 %v3428, 2147483648
        %v3477 = vxor.u32 %v3429, 2147483648
        %v3478 = vxor.u32 %v3430, 2147483648
        %v3479 = vxor.u32 %v3431, 2147483648
        %v3480 = vxor.u32 %v3432, 2147483648
        %v3481 = vxor.u32 %v3433, 2147483648
        %v3482 = vxor.u32 %v3434, 2147483648
        %v3483 = vxor.u32 %v3435, 2147483648
        %v3484 = vxor.u32 %v3436, 2147483648
        %v3485 = vxor.u32 %v3437, 2147483648
        %v3486 = vxor.u32 %v3438, 2147483648
        %v3487 = vxor.u32 %v3439, 2147483648
        %v3488 = vxor.u32 %v3440, 2147483648
        %v3489 = vxor.u32 %v3441, 2147483648
        %v3490 = vxor.u32 %v3442, 2147483648
        %v3491 = vxor.u32 %v3443, 2147483648
        %v3492 = vxor.u32 %v3444, 2147483648
        %v3493 = vxor.u32 %v3445, 2147483648
        %v3494 = vxor.u32 %v3446, 2147483648
        %v3495 = vxor.u32 %v3447, 2147483648
        %v3496 = vxor.u32 %v3448, 2147483648
        %v3497 = vxor.u32 %v3449, 2147483648
        %v3498 = vmul.f32 %v3450, 1.442695
        %v3499 = vpow.pop %v3498
        %v3500 = vmul.f32 %v3451, 1.442695
        %v3501 = vpow.pop %v3500
        %v3502 = vmul.f32 %v3452, 1.442695
        %v3503 = vpow.pop %v3502
        %v3504 = vmul.f32 %v3453, 1.442695
        %v3505 = vpow.pop %v3504
        %v3506 = vmul.f32 %v3454, 1.442695
        %v3507 = vpow.pop %v3506
        %v3508 = vmul.f32 %v3455, 1.442695
        %v3509 = vpow.pop %v3508
        %v3510 = vmul.f32 %v3456, 1.442695
        %v3511 = vpow.pop %v3510
        %v3512 = vmul.f32 %v3457, 1.442695
        %v3513 = vpow.pop %v3512
        %v3514 = vmul.f32 %v3458, 1.442695
        %v3515 = vpow.pop %v3514
        %v3516 = vmul.f32 %v3459, 1.442695
        %v3517 = vpow.pop %v3516
        %v3518 = vmul.f32 %v3460, 1.442695
        %v3519 = vpow.pop %v3518
        %v3520 = vmul.f32 %v3461, 1.442695
        %v3521 = vpow.pop %v3520
        %v3522 = vmul.f32 %v3462, 1.442695
        %v3523 = vpow.pop %v3522
        %v3524 = vmul.f32 %v3463, 1.442695
        %v3525 = vpow.pop %v3524
        %v3526 = vmul.f32 %v3464, 1.442695
        %v3527 = vpow.pop %v3526
        %v3528 = vmul.f32 %v3465, 1.442695
        %v3529 = vpow.pop %v3528
        %v3530 = vmul.f32 %v3466, 1.442695
        %v3531 = vpow.pop %v3530
        %v3532 = vmul.f32 %v3467, 1.442695
        %v3533 = vpow.pop %v3532
        %v3534 = vmul.f32 %v3468, 1.442695
        %v3535 = vpow.pop %v3534
        %v3536 = vmul.f32 %v3469, 1.442695
        %v3537 = vpow.pop %v3536
        %v3538 = vmul.f32 %v3470, 1.442695
        %v3539 = vpow.pop %v3538
        %v3540 = vmul.f32 %v3471, 1.442695
        %v3541 = vpow.pop %v3540
        %v3542 = vmul.f32 %v3472, 1.442695
        %v3543 = vpow.pop %v3542
        %v3544 = vmul.f32 %v3473, 1.442695
        %v3545 = vpow.pop %v3544
        %v3546 = vmul.f32 %v3474, 1.442695
        %v3547 = vpow.pop %v3546
        %v3548 = vmul.f32 %v3475, 1.442695
        %v3549 = vpow.pop %v3548
        %v3550 = vmul.f32 %v3476, 1.442695
        %v3551 = vpow.pop %v3550
        %v3552 = vmul.f32 %v3477, 1.442695
        %v3553 = vpow.pop %v3552
        %v3554 = vmul.f32 %v3478, 1.442695
        %v3555 = vpow.pop %v3554
        %v3556 = vmul.f32 %v3479, 1.442695
        %v3557 = vpow.pop %v3556
        %v3558 = vmul.f32 %v3480, 1.442695
        %v3559 = vpow.pop %v3558
        %v3560 = vmul.f32 %v3481, 1.442695
        %v3561 = vpow.pop %v3560
        %v3562 = vmul.f32 %v3482, 1.442695
        %v3563 = vpow.pop %v3562
        %v3564 = vmul.f32 %v3483, 1.442695
        %v3565 = vpow.pop %v3564
        %v3566 = vmul.f32 %v3484, 1.442695
        %v3567 = vpow.pop %v3566
        %v3568 = vmul.f32 %v3485, 1.442695
        %v3569 = vpow.pop %v3568
        %v3570 = vmul.f32 %v3486, 1.442695
        %v3571 = vpow.pop %v3570
        %v3572 = vmul.f32 %v3487, 1.442695
        %v3573 = vpow.pop %v3572
        %v3574 = vmul.f32 %v3488, 1.442695
        %v3575 = vpow.pop %v3574
        %v3576 = vmul.f32 %v3489, 1.442695
        %v3577 = vpow.pop %v3576
        %v3578 = vmul.f32 %v3490, 1.442695
        %v3579 = vpow.pop %v3578
        %v3580 = vmul.f32 %v3491, 1.442695
        %v3581 = vpow.pop %v3580
        %v3582 = vmul.f32 %v3492, 1.442695
        %v3583 = vpow.pop %v3582
        %v3584 = vmul.f32 %v3493, 1.442695
        %v3585 = vpow.pop %v3584
        %v3586 = vmul.f32 %v3494, 1.442695
        %v3587 = vpow.pop %v3586
        %v3588 = vmul.f32 %v3495, 1.442695
        %v3589 = vpow.pop %v3588
        %v3590 = vmul.f32 %v3496, 1.442695
        %v3591 = vpow.pop %v3590
        %v3592 = vmul.f32 %v3497, 1.442695
        %v3593 = vpow.pop %v3592
        %v3594 = vadd.f32 %v3499, 1.0
        %v3595 = vadd.f32 %v3501, 1.0
        %v3596 = vadd.f32 %v3503, 1.0
        %v3597 = vadd.f32 %v3505, 1.0
        %v3598 = vadd.f32 %v3507, 1.0
        %v3599 = vadd.f32 %v3509, 1.0
        %v3600 = vadd.f32 %v3511, 1.0
        %v3601 = vadd.f32 %v3513, 1.0
        %v3602 = vadd.f32 %v3515, 1.0
        %v3603 = vadd.f32 %v3517, 1.0
        %v3604 = vadd.f32 %v3519, 1.0
        %v3605 = vadd.f32 %v3521, 1.0
        %v3606 = vadd.f32 %v3523, 1.0
        %v3607 = vadd.f32 %v3525, 1.0
        %v3608 = vadd.f32 %v3527, 1.0
        %v3609 = vadd.f32 %v3529, 1.0
        %v3610 = vadd.f32 %v3531, 1.0
        %v3611 = vadd.f32 %v3533, 1.0
        %v3612 = vadd.f32 %v3535, 1.0
        %v3613 = vadd.f32 %v3537, 1.0
        %v3614 = vadd.f32 %v3539, 1.0
        %v3615 = vadd.f32 %v3541, 1.0
        %v3616 = vadd.f32 %v3543, 1.0
        %v3617 = vadd.f32 %v3545, 1.0
        %v3618 = vadd.f32 %v3547, 1.0
        %v3619 = vadd.f32 %v3549, 1.0
        %v3620 = vadd.f32 %v3551, 1.0
        %v3621 = vadd.f32 %v3553, 1.0
        %v3622 = vadd.f32 %v3555, 1.0
        %v3623 = vadd.f32 %v3557, 1.0
        %v3624 = vadd.f32 %v3559, 1.0
        %v3625 = vadd.f32 %v3561, 1.0
        %v3626 = vadd.f32 %v3563, 1.0
        %v3627 = vadd.f32 %v3565, 1.0
        %v3628 = vadd.f32 %v3567, 1.0
        %v3629 = vadd.f32 %v3569, 1.0
        %v3630 = vadd.f32 %v3571, 1.0
        %v3631 = vadd.f32 %v3573, 1.0
        %v3632 = vadd.f32 %v3575, 1.0
        %v3633 = vadd.f32 %v3577, 1.0
        %v3634 = vadd.f32 %v3579, 1.0
        %v3635 = vadd.f32 %v3581, 1.0
        %v3636 = vadd.f32 %v3583, 1.0
        %v3637 = vadd.f32 %v3585, 1.0
        %v3638 = vadd.f32 %v3587, 1.0
        %v3639 = vadd.f32 %v3589, 1.0
        %v3640 = vadd.f32 %v3591, 1.0
        %v3641 = vadd.f32 %v3593, 1.0
        %v3642 = vrcp.pop %v3594
        %v3643 = vmul.f32 %v3594, %v3642
        %v3644 = vsub.f32 1.0, %v3643
        %v3645 = vmul.f32 %v3642, %v3644
        %v3646 = vadd.f32 %v3642, %v3645
        %vm3647 = vweird.f32 %v3594
        %vm3648 = vweird.f32 %v3642
        %vm3649 = vmor %vm3647, %vm3648
        %v3650 = vsel %vm3649, %v3642, %v3646
        %v3651 = vand.u32 2147483647, %v3594
        %vm3652 = vcmp.eq.f32.partialorder %v3651, 8.507059e+37
        %v3653 = vand.u32 %v3594, 2147483648
        %v3654 = vor.u32 1.1754944e-38, %v3653
        %v3655 = vsel %vm3652, %v3654, %v3650
        %v3656 = vmul.f32 1.0, %v3655
        %v3657 = vrcp.pop %v3595
        %v3658 = vmul.f32 %v3595, %v3657
        %v3659 = vsub.f32 1.0, %v3658
        %v3660 = vmul.f32 %v3657, %v3659
        %v3661 = vadd.f32 %v3657, %v3660
        %vm3662 = vweird.f32 %v3595
        %vm3663 = vweird.f32 %v3657
        %vm3664 = vmor %vm3662, %vm3663
        %v3665 = vsel %vm3664, %v3657, %v3661
        %v3666 = vand.u32 2147483647, %v3595
        %vm3667 = vcmp.eq.f32.partialorder %v3666, 8.507059e+37
        %v3668 = vand.u32 %v3595, 2147483648
        %v3669 = vor.u32 1.1754944e-38, %v3668
        %v3670 = vsel %vm3667, %v3669, %v3665
        %v3671 = vmul.f32 1.0, %v3670
        %v3672 = vrcp.pop %v3596
        %v3673 = vmul.f32 %v3596, %v3672
        %v3674 = vsub.f32 1.0, %v3673
        %v3675 = vmul.f32 %v3672, %v3674
        %v3676 = vadd.f32 %v3672, %v3675
        %vm3677 = vweird.f32 %v3596
        %vm3678 = vweird.f32 %v3672
        %vm3679 = vmor %vm3677, %vm3678
        %v3680 = vsel %vm3679, %v3672, %v3676
        %v3681 = vand.u32 2147483647, %v3596
        %vm3682 = vcmp.eq.f32.partialorder %v3681, 8.507059e+37
        %v3683 = vand.u32 %v3596, 2147483648
        %v3684 = vor.u32 1.1754944e-38, %v3683
        %v3685 = vsel %vm3682, %v3684, %v3680
        %v3686 = vmul.f32 1.0, %v3685
        %v3687 = vrcp.pop %v3597
        %v3688 = vmul.f32 %v3597, %v3687
        %v3689 = vsub.f32 1.0, %v3688
        %v3690 = vmul.f32 %v3687, %v3689
        %v3691 = vadd.f32 %v3687, %v3690
        %vm3692 = vweird.f32 %v3597
        %vm3693 = vweird.f32 %v3687
        %vm3694 = vmor %vm3692, %vm3693
        %v3695 = vsel %vm3694, %v3687, %v3691
        %v3696 = vand.u32 2147483647, %v3597
        %vm3697 = vcmp.eq.f32.partialorder %v3696, 8.507059e+37
        %v3698 = vand.u32 %v3597, 2147483648
        %v3699 = vor.u32 1.1754944e-38, %v3698
        %v3700 = vsel %vm3697, %v3699, %v3695
        %v3701 = vmul.f32 1.0, %v3700
        %v3702 = vrcp.pop %v3598
        %v3703 = vmul.f32 %v3598, %v3702
        %v3704 = vsub.f32 1.0, %v3703
        %v3705 = vmul.f32 %v3702, %v3704
        %v3706 = vadd.f32 %v3702, %v3705
        %vm3707 = vweird.f32 %v3598
        %vm3708 = vweird.f32 %v3702
        %vm3709 = vmor %vm3707, %vm3708
        %v3710 = vsel %vm3709, %v3702, %v3706
        %v3711 = vand.u32 2147483647, %v3598
        %vm3712 = vcmp.eq.f32.partialorder %v3711, 8.507059e+37
        %v3713 = vand.u32 %v3598, 2147483648
        %v3714 = vor.u32 1.1754944e-38, %v3713
        %v3715 = vsel %vm3712, %v3714, %v3710
        %v3716 = vmul.f32 1.0, %v3715
        %v3717 = vrcp.pop %v3599
        %v3718 = vmul.f32 %v3599, %v3717
        %v3719 = vsub.f32 1.0, %v3718
        %v3720 = vmul.f32 %v3717, %v3719
        %v3721 = vadd.f32 %v3717, %v3720
        %vm3722 = vweird.f32 %v3599
        %vm3723 = vweird.f32 %v3717
        %vm3724 = vmor %vm3722, %vm3723
        %v3725 = vsel %vm3724, %v3717, %v3721
        %v3726 = vand.u32 2147483647, %v3599
        %vm3727 = vcmp.eq.f32.partialorder %v3726, 8.507059e+37
        %v3728 = vand.u32 %v3599, 2147483648
        %v3729 = vor.u32 1.1754944e-38, %v3728
        %v3730 = vsel %vm3727, %v3729, %v3725
        %v3731 = vmul.f32 1.0, %v3730
        %v3732 = vrcp.pop %v3600
        %v3733 = vmul.f32 %v3600, %v3732
        %v3734 = vsub.f32 1.0, %v3733
        %v3735 = vmul.f32 %v3732, %v3734
        %v3736 = vadd.f32 %v3732, %v3735
        %vm3737 = vweird.f32 %v3600
        %vm3738 = vweird.f32 %v3732
        %vm3739 = vmor %vm3737, %vm3738
        %v3740 = vsel %vm3739, %v3732, %v3736
        %v3741 = vand.u32 2147483647, %v3600
        %vm3742 = vcmp.eq.f32.partialorder %v3741, 8.507059e+37
        %v3743 = vand.u32 %v3600, 2147483648
        %v3744 = vor.u32 1.1754944e-38, %v3743
        %v3745 = vsel %vm3742, %v3744, %v3740
        %v3746 = vmul.f32 1.0, %v3745
        %v3747 = vrcp.pop %v3601
        %v3748 = vmul.f32 %v3601, %v3747
        %v3749 = vsub.f32 1.0, %v3748
        %v3750 = vmul.f32 %v3747, %v3749
        %v3751 = vadd.f32 %v3747, %v3750
        %vm3752 = vweird.f32 %v3601
        %vm3753 = vweird.f32 %v3747
        %vm3754 = vmor %vm3752, %vm3753
        %v3755 = vsel %vm3754, %v3747, %v3751
        %v3756 = vand.u32 2147483647, %v3601
        %vm3757 = vcmp.eq.f32.partialorder %v3756, 8.507059e+37
        %v3758 = vand.u32 %v3601, 2147483648
        %v3759 = vor.u32 1.1754944e-38, %v3758
        %v3760 = vsel %vm3757, %v3759, %v3755
        %v3761 = vmul.f32 1.0, %v3760
        %v3762 = vrcp.pop %v3602
        %v3763 = vmul.f32 %v3602, %v3762
        %v3764 = vsub.f32 1.0, %v3763
        %v3765 = vmul.f32 %v3762, %v3764
        %v3766 = vadd.f32 %v3762, %v3765
        %vm3767 = vweird.f32 %v3602
        %vm3768 = vweird.f32 %v3762
        %vm3769 = vmor %vm3767, %vm3768
        %v3770 = vsel %vm3769, %v3762, %v3766
        %v3771 = vand.u32 2147483647, %v3602
        %vm3772 = vcmp.eq.f32.partialorder %v3771, 8.507059e+37
        %v3773 = vand.u32 %v3602, 2147483648
        %v3774 = vor.u32 1.1754944e-38, %v3773
        %v3775 = vsel %vm3772, %v3774, %v3770
        %v3776 = vmul.f32 1.0, %v3775
        %v3777 = vrcp.pop %v3603
        %v3778 = vmul.f32 %v3603, %v3777
        %v3779 = vsub.f32 1.0, %v3778
        %v3780 = vmul.f32 %v3777, %v3779
        %v3781 = vadd.f32 %v3777, %v3780
        %vm3782 = vweird.f32 %v3603
        %vm3783 = vweird.f32 %v3777
        %vm3784 = vmor %vm3782, %vm3783
        %v3785 = vsel %vm3784, %v3777, %v3781
        %v3786 = vand.u32 2147483647, %v3603
        %vm3787 = vcmp.eq.f32.partialorder %v3786, 8.507059e+37
        %v3788 = vand.u32 %v3603, 2147483648
        %v3789 = vor.u32 1.1754944e-38, %v3788
        %v3790 = vsel %vm3787, %v3789, %v3785
        %v3791 = vmul.f32 1.0, %v3790
        %v3792 = vrcp.pop %v3604
        %v3793 = vmul.f32 %v3604, %v3792
        %v3794 = vsub.f32 1.0, %v3793
        %v3795 = vmul.f32 %v3792, %v3794
        %v3796 = vadd.f32 %v3792, %v3795
        %vm3797 = vweird.f32 %v3604
        %vm3798 = vweird.f32 %v3792
        %vm3799 = vmor %vm3797, %vm3798
        %v3800 = vsel %vm3799, %v3792, %v3796
        %v3801 = vand.u32 2147483647, %v3604
        %vm3802 = vcmp.eq.f32.partialorder %v3801, 8.507059e+37
        %v3803 = vand.u32 %v3604, 2147483648
        %v3804 = vor.u32 1.1754944e-38, %v3803
        %v3805 = vsel %vm3802, %v3804, %v3800
        %v3806 = vmul.f32 1.0, %v3805
        %v3807 = vrcp.pop %v3605
        %v3808 = vmul.f32 %v3605, %v3807
        %v3809 = vsub.f32 1.0, %v3808
        %v3810 = vmul.f32 %v3807, %v3809
        %v3811 = vadd.f32 %v3807, %v3810
        %vm3812 = vweird.f32 %v3605
        %vm3813 = vweird.f32 %v3807
        %vm3814 = vmor %vm3812, %vm3813
        %v3815 = vsel %vm3814, %v3807, %v3811
        %v3816 = vand.u32 2147483647, %v3605
        %vm3817 = vcmp.eq.f32.partialorder %v3816, 8.507059e+37
        %v3818 = vand.u32 %v3605, 2147483648
        %v3819 = vor.u32 1.1754944e-38, %v3818
        %v3820 = vsel %vm3817, %v3819, %v3815
        %v3821 = vmul.f32 1.0, %v3820
        %v3822 = vrcp.pop %v3606
        %v3823 = vmul.f32 %v3606, %v3822
        %v3824 = vsub.f32 1.0, %v3823
        %v3825 = vmul.f32 %v3822, %v3824
        %v3826 = vadd.f32 %v3822, %v3825
        %vm3827 = vweird.f32 %v3606
        %vm3828 = vweird.f32 %v3822
        %vm3829 = vmor %vm3827, %vm3828
        %v3830 = vsel %vm3829, %v3822, %v3826
        %v3831 = vand.u32 2147483647, %v3606
        %vm3832 = vcmp.eq.f32.partialorder %v3831, 8.507059e+37
        %v3833 = vand.u32 %v3606, 2147483648
        %v3834 = vor.u32 1.1754944e-38, %v3833
        %v3835 = vsel %vm3832, %v3834, %v3830
        %v3836 = vmul.f32 1.0, %v3835
        %v3837 = vrcp.pop %v3607
        %v3838 = vmul.f32 %v3607, %v3837
        %v3839 = vsub.f32 1.0, %v3838
        %v3840 = vmul.f32 %v3837, %v3839
        %v3841 = vadd.f32 %v3837, %v3840
        %vm3842 = vweird.f32 %v3607
        %vm3843 = vweird.f32 %v3837
        %vm3844 = vmor %vm3842, %vm3843
        %v3845 = vsel %vm3844, %v3837, %v3841
        %v3846 = vand.u32 2147483647, %v3607
        %vm3847 = vcmp.eq.f32.partialorder %v3846, 8.507059e+37
        %v3848 = vand.u32 %v3607, 2147483648
        %v3849 = vor.u32 1.1754944e-38, %v3848
        %v3850 = vsel %vm3847, %v3849, %v3845
        %v3851 = vmul.f32 1.0, %v3850
        %v3852 = vrcp.pop %v3608
        %v3853 = vmul.f32 %v3608, %v3852
        %v3854 = vsub.f32 1.0, %v3853
        %v3855 = vmul.f32 %v3852, %v3854
        %v3856 = vadd.f32 %v3852, %v3855
        %vm3857 = vweird.f32 %v3608
        %vm3858 = vweird.f32 %v3852
        %vm3859 = vmor %vm3857, %vm3858
        %v3860 = vsel %vm3859, %v3852, %v3856
        %v3861 = vand.u32 2147483647, %v3608
        %vm3862 = vcmp.eq.f32.partialorder %v3861, 8.507059e+37
        %v3863 = vand.u32 %v3608, 2147483648
        %v3864 = vor.u32 1.1754944e-38, %v3863
        %v3865 = vsel %vm3862, %v3864, %v3860
        %v3866 = vmul.f32 1.0, %v3865
        %v3867 = vrcp.pop %v3609
        %v3868 = vmul.f32 %v3609, %v3867
        %v3869 = vsub.f32 1.0, %v3868
        %v3870 = vmul.f32 %v3867, %v3869
        %v3871 = vadd.f32 %v3867, %v3870
        %vm3872 = vweird.f32 %v3609
        %vm3873 = vweird.f32 %v3867
        %vm3874 = vmor %vm3872, %vm3873
        %v3875 = vsel %vm3874, %v3867, %v3871
        %v3876 = vand.u32 2147483647, %v3609
        %vm3877 = vcmp.eq.f32.partialorder %v3876, 8.507059e+37
        %v3878 = vand.u32 %v3609, 2147483648
        %v3879 = vor.u32 1.1754944e-38, %v3878
        %v3880 = vsel %vm3877, %v3879, %v3875
        %v3881 = vmul.f32 1.0, %v3880
        %v3882 = vrcp.pop %v3610
        %v3883 = vmul.f32 %v3610, %v3882
        %v3884 = vsub.f32 1.0, %v3883
        %v3885 = vmul.f32 %v3882, %v3884
        %v3886 = vadd.f32 %v3882, %v3885
        %vm3887 = vweird.f32 %v3610
        %vm3888 = vweird.f32 %v3882
        %vm3889 = vmor %vm3887, %vm3888
        %v3890 = vsel %vm3889, %v3882, %v3886
        %v3891 = vand.u32 2147483647, %v3610
        %vm3892 = vcmp.eq.f32.partialorder %v3891, 8.507059e+37
        %v3893 = vand.u32 %v3610, 2147483648
        %v3894 = vor.u32 1.1754944e-38, %v3893
        %v3895 = vsel %vm3892, %v3894, %v3890
        %v3896 = vmul.f32 1.0, %v3895
        %v3897 = vrcp.pop %v3611
        %v3898 = vmul.f32 %v3611, %v3897
        %v3899 = vsub.f32 1.0, %v3898
        %v3900 = vmul.f32 %v3897, %v3899
        %v3901 = vadd.f32 %v3897, %v3900
        %vm3902 = vweird.f32 %v3611
        %vm3903 = vweird.f32 %v3897
        %vm3904 = vmor %vm3902, %vm3903
        %v3905 = vsel %vm3904, %v3897, %v3901
        %v3906 = vand.u32 2147483647, %v3611
        %vm3907 = vcmp.eq.f32.partialorder %v3906, 8.507059e+37
        %v3908 = vand.u32 %v3611, 2147483648
        %v3909 = vor.u32 1.1754944e-38, %v3908
        %v3910 = vsel %vm3907, %v3909, %v3905
        %v3911 = vmul.f32 1.0, %v3910
        %v3912 = vrcp.pop %v3612
        %v3913 = vmul.f32 %v3612, %v3912
        %v3914 = vsub.f32 1.0, %v3913
        %v3915 = vmul.f32 %v3912, %v3914
        %v3916 = vadd.f32 %v3912, %v3915
        %vm3917 = vweird.f32 %v3612
        %vm3918 = vweird.f32 %v3912
        %vm3919 = vmor %vm3917, %vm3918
        %v3920 = vsel %vm3919, %v3912, %v3916
        %v3921 = vand.u32 2147483647, %v3612
        %vm3922 = vcmp.eq.f32.partialorder %v3921, 8.507059e+37
        %v3923 = vand.u32 %v3612, 2147483648
        %v3924 = vor.u32 1.1754944e-38, %v3923
        %v3925 = vsel %vm3922, %v3924, %v3920
        %v3926 = vmul.f32 1.0, %v3925
        %v3927 = vrcp.pop %v3613
        %v3928 = vmul.f32 %v3613, %v3927
        %v3929 = vsub.f32 1.0, %v3928
        %v3930 = vmul.f32 %v3927, %v3929
        %v3931 = vadd.f32 %v3927, %v3930
        %vm3932 = vweird.f32 %v3613
        %vm3933 = vweird.f32 %v3927
        %vm3934 = vmor %vm3932, %vm3933
        %v3935 = vsel %vm3934, %v3927, %v3931
        %v3936 = vand.u32 2147483647, %v3613
        %vm3937 = vcmp.eq.f32.partialorder %v3936, 8.507059e+37
        %v3938 = vand.u32 %v3613, 2147483648
        %v3939 = vor.u32 1.1754944e-38, %v3938
        %v3940 = vsel %vm3937, %v3939, %v3935
        %v3941 = vmul.f32 1.0, %v3940
        %v3942 = vrcp.pop %v3614
        %v3943 = vmul.f32 %v3614, %v3942
        %v3944 = vsub.f32 1.0, %v3943
        %v3945 = vmul.f32 %v3942, %v3944
        %v3946 = vadd.f32 %v3942, %v3945
        %vm3947 = vweird.f32 %v3614
        %vm3948 = vweird.f32 %v3942
        %vm3949 = vmor %vm3947, %vm3948
        %v3950 = vsel %vm3949, %v3942, %v3946
        %v3951 = vand.u32 2147483647, %v3614
        %vm3952 = vcmp.eq.f32.partialorder %v3951, 8.507059e+37
        %v3953 = vand.u32 %v3614, 2147483648
        %v3954 = vor.u32 1.1754944e-38, %v3953
        %v3955 = vsel %vm3952, %v3954, %v3950
        %v3956 = vmul.f32 1.0, %v3955
        %v3957 = vrcp.pop %v3615
        %v3958 = vmul.f32 %v3615, %v3957
        %v3959 = vsub.f32 1.0, %v3958
        %v3960 = vmul.f32 %v3957, %v3959
        %v3961 = vadd.f32 %v3957, %v3960
        %vm3962 = vweird.f32 %v3615
        %vm3963 = vweird.f32 %v3957
        %vm3964 = vmor %vm3962, %vm3963
        %v3965 = vsel %vm3964, %v3957, %v3961
        %v3966 = vand.u32 2147483647, %v3615
        %vm3967 = vcmp.eq.f32.partialorder %v3966, 8.507059e+37
        %v3968 = vand.u32 %v3615, 2147483648
        %v3969 = vor.u32 1.1754944e-38, %v3968
        %v3970 = vsel %vm3967, %v3969, %v3965
        %v3971 = vmul.f32 1.0, %v3970
        %v3972 = vrcp.pop %v3616
        %v3973 = vmul.f32 %v3616, %v3972
        %v3974 = vsub.f32 1.0, %v3973
        %v3975 = vmul.f32 %v3972, %v3974
        %v3976 = vadd.f32 %v3972, %v3975
        %vm3977 = vweird.f32 %v3616
        %vm3978 = vweird.f32 %v3972
        %vm3979 = vmor %vm3977, %vm3978
        %v3980 = vsel %vm3979, %v3972, %v3976
        %v3981 = vand.u32 2147483647, %v3616
        %vm3982 = vcmp.eq.f32.partialorder %v3981, 8.507059e+37
        %v3983 = vand.u32 %v3616, 2147483648
        %v3984 = vor.u32 1.1754944e-38, %v3983
        %v3985 = vsel %vm3982, %v3984, %v3980
        %v3986 = vmul.f32 1.0, %v3985
        %v3987 = vrcp.pop %v3617
        %v3988 = vmul.f32 %v3617, %v3987
        %v3989 = vsub.f32 1.0, %v3988
        %v3990 = vmul.f32 %v3987, %v3989
        %v3991 = vadd.f32 %v3987, %v3990
        %vm3992 = vweird.f32 %v3617
        %vm3993 = vweird.f32 %v3987
        %vm3994 = vmor %vm3992, %vm3993
        %v3995 = vsel %vm3994, %v3987, %v3991
        %v3996 = vand.u32 2147483647, %v3617
        %vm3997 = vcmp.eq.f32.partialorder %v3996, 8.507059e+37
        %v3998 = vand.u32 %v3617, 2147483648
        %v3999 = vor.u32 1.1754944e-38, %v3998
        %v4000 = vsel %vm3997, %v3999, %v3995
        %v4001 = vmul.f32 1.0, %v4000
        %v4002 = vrcp.pop %v3618
        %v4003 = vmul.f32 %v3618, %v4002
        %v4004 = vsub.f32 1.0, %v4003
        %v4005 = vmul.f32 %v4002, %v4004
        %v4006 = vadd.f32 %v4002, %v4005
        %vm4007 = vweird.f32 %v3618
        %vm4008 = vweird.f32 %v4002
        %vm4009 = vmor %vm4007, %vm4008
        %v4010 = vsel %vm4009, %v4002, %v4006
        %v4011 = vand.u32 2147483647, %v3618
        %vm4012 = vcmp.eq.f32.partialorder %v4011, 8.507059e+37
        %v4013 = vand.u32 %v3618, 2147483648
        %v4014 = vor.u32 1.1754944e-38, %v4013
        %v4015 = vsel %vm4012, %v4014, %v4010
        %v4016 = vmul.f32 1.0, %v4015
        %v4017 = vrcp.pop %v3619
        %v4018 = vmul.f32 %v3619, %v4017
        %v4019 = vsub.f32 1.0, %v4018
        %v4020 = vmul.f32 %v4017, %v4019
        %v4021 = vadd.f32 %v4017, %v4020
        %vm4022 = vweird.f32 %v3619
        %vm4023 = vweird.f32 %v4017
        %vm4024 = vmor %vm4022, %vm4023
        %v4025 = vsel %vm4024, %v4017, %v4021
        %v4026 = vand.u32 2147483647, %v3619
        %vm4027 = vcmp.eq.f32.partialorder %v4026, 8.507059e+37
        %v4028 = vand.u32 %v3619, 2147483648
        %v4029 = vor.u32 1.1754944e-38, %v4028
        %v4030 = vsel %vm4027, %v4029, %v4025
        %v4031 = vmul.f32 1.0, %v4030
        %v4032 = vrcp.pop %v3620
        %v4033 = vmul.f32 %v3620, %v4032
        %v4034 = vsub.f32 1.0, %v4033
        %v4035 = vmul.f32 %v4032, %v4034
        %v4036 = vadd.f32 %v4032, %v4035
        %vm4037 = vweird.f32 %v3620
        %vm4038 = vweird.f32 %v4032
        %vm4039 = vmor %vm4037, %vm4038
        %v4040 = vsel %vm4039, %v4032, %v4036
        %v4041 = vand.u32 2147483647, %v3620
        %vm4042 = vcmp.eq.f32.partialorder %v4041, 8.507059e+37
        %v4043 = vand.u32 %v3620, 2147483648
        %v4044 = vor.u32 1.1754944e-38, %v4043
        %v4045 = vsel %vm4042, %v4044, %v4040
        %v4046 = vmul.f32 1.0, %v4045
        %v4047 = vrcp.pop %v3621
        %v4048 = vmul.f32 %v3621, %v4047
        %v4049 = vsub.f32 1.0, %v4048
        %v4050 = vmul.f32 %v4047, %v4049
        %v4051 = vadd.f32 %v4047, %v4050
        %vm4052 = vweird.f32 %v3621
        %vm4053 = vweird.f32 %v4047
        %vm4054 = vmor %vm4052, %vm4053
        %v4055 = vsel %vm4054, %v4047, %v4051
        %v4056 = vand.u32 2147483647, %v3621
        %vm4057 = vcmp.eq.f32.partialorder %v4056, 8.507059e+37
        %v4058 = vand.u32 %v3621, 2147483648
        %v4059 = vor.u32 1.1754944e-38, %v4058
        %v4060 = vsel %vm4057, %v4059, %v4055
        %v4061 = vmul.f32 1.0, %v4060
        %v4062 = vrcp.pop %v3622
        %v4063 = vmul.f32 %v3622, %v4062
        %v4064 = vsub.f32 1.0, %v4063
        %v4065 = vmul.f32 %v4062, %v4064
        %v4066 = vadd.f32 %v4062, %v4065
        %vm4067 = vweird.f32 %v3622
        %vm4068 = vweird.f32 %v4062
        %vm4069 = vmor %vm4067, %vm4068
        %v4070 = vsel %vm4069, %v4062, %v4066
        %v4071 = vand.u32 2147483647, %v3622
        %vm4072 = vcmp.eq.f32.partialorder %v4071, 8.507059e+37
        %v4073 = vand.u32 %v3622, 2147483648
        %v4074 = vor.u32 1.1754944e-38, %v4073
        %v4075 = vsel %vm4072, %v4074, %v4070
        %v4076 = vmul.f32 1.0, %v4075
        %v4077 = vrcp.pop %v3623
        %v4078 = vmul.f32 %v3623, %v4077
        %v4079 = vsub.f32 1.0, %v4078
        %v4080 = vmul.f32 %v4077, %v4079
        %v4081 = vadd.f32 %v4077, %v4080
        %vm4082 = vweird.f32 %v3623
        %vm4083 = vweird.f32 %v4077
        %vm4084 = vmor %vm4082, %vm4083
        %v4085 = vsel %vm4084, %v4077, %v4081
        %v4086 = vand.u32 2147483647, %v3623
        %vm4087 = vcmp.eq.f32.partialorder %v4086, 8.507059e+37
        %v4088 = vand.u32 %v3623, 2147483648
        %v4089 = vor.u32 1.1754944e-38, %v4088
        %v4090 = vsel %vm4087, %v4089, %v4085
        %v4091 = vmul.f32 1.0, %v4090
        %v4092 = vrcp.pop %v3624
        %v4093 = vmul.f32 %v3624, %v4092
        %v4094 = vsub.f32 1.0, %v4093
        %v4095 = vmul.f32 %v4092, %v4094
        %v4096 = vadd.f32 %v4092, %v4095
        %vm4097 = vweird.f32 %v3624
        %vm4098 = vweird.f32 %v4092
        %vm4099 = vmor %vm4097, %vm4098
        %v4100 = vsel %vm4099, %v4092, %v4096
        %v4101 = vand.u32 2147483647, %v3624
        %vm4102 = vcmp.eq.f32.partialorder %v4101, 8.507059e+37
        %v4103 = vand.u32 %v3624, 2147483648
        %v4104 = vor.u32 1.1754944e-38, %v4103
        %v4105 = vsel %vm4102, %v4104, %v4100
        %v4106 = vmul.f32 1.0, %v4105
        %v4107 = vrcp.pop %v3625
        %v4108 = vmul.f32 %v3625, %v4107
        %v4109 = vsub.f32 1.0, %v4108
        %v4110 = vmul.f32 %v4107, %v4109
        %v4111 = vadd.f32 %v4107, %v4110
        %vm4112 = vweird.f32 %v3625
        %vm4113 = vweird.f32 %v4107
        %vm4114 = vmor %vm4112, %vm4113
        %v4115 = vsel %vm4114, %v4107, %v4111
        %v4116 = vand.u32 2147483647, %v3625
        %vm4117 = vcmp.eq.f32.partialorder %v4116, 8.507059e+37
        %v4118 = vand.u32 %v3625, 2147483648
        %v4119 = vor.u32 1.1754944e-38, %v4118
        %v4120 = vsel %vm4117, %v4119, %v4115
        %v4121 = vmul.f32 1.0, %v4120
        %v4122 = vrcp.pop %v3626
        %v4123 = vmul.f32 %v3626, %v4122
        %v4124 = vsub.f32 1.0, %v4123
        %v4125 = vmul.f32 %v4122, %v4124
        %v4126 = vadd.f32 %v4122, %v4125
        %vm4127 = vweird.f32 %v3626
        %vm4128 = vweird.f32 %v4122
        %vm4129 = vmor %vm4127, %vm4128
        %v4130 = vsel %vm4129, %v4122, %v4126
        %v4131 = vand.u32 2147483647, %v3626
        %vm4132 = vcmp.eq.f32.partialorder %v4131, 8.507059e+37
        %v4133 = vand.u32 %v3626, 2147483648
        %v4134 = vor.u32 1.1754944e-38, %v4133
        %v4135 = vsel %vm4132, %v4134, %v4130
        %v4136 = vmul.f32 1.0, %v4135
        %v4137 = vrcp.pop %v3627
        %v4138 = vmul.f32 %v3627, %v4137
        %v4139 = vsub.f32 1.0, %v4138
        %v4140 = vmul.f32 %v4137, %v4139
        %v4141 = vadd.f32 %v4137, %v4140
        %vm4142 = vweird.f32 %v3627
        %vm4143 = vweird.f32 %v4137
        %vm4144 = vmor %vm4142, %vm4143
        %v4145 = vsel %vm4144, %v4137, %v4141
        %v4146 = vand.u32 2147483647, %v3627
        %vm4147 = vcmp.eq.f32.partialorder %v4146, 8.507059e+37
        %v4148 = vand.u32 %v3627, 2147483648
        %v4149 = vor.u32 1.1754944e-38, %v4148
        %v4150 = vsel %vm4147, %v4149, %v4145
        %v4151 = vmul.f32 1.0, %v4150
        %v4152 = vrcp.pop %v3628
        %v4153 = vmul.f32 %v3628, %v4152
        %v4154 = vsub.f32 1.0, %v4153
        %v4155 = vmul.f32 %v4152, %v4154
        %v4156 = vadd.f32 %v4152, %v4155
        %vm4157 = vweird.f32 %v3628
        %vm4158 = vweird.f32 %v4152
        %vm4159 = vmor %vm4157, %vm4158
        %v4160 = vsel %vm4159, %v4152, %v4156
        %v4161 = vand.u32 2147483647, %v3628
        %vm4162 = vcmp.eq.f32.partialorder %v4161, 8.507059e+37
        %v4163 = vand.u32 %v3628, 2147483648
        %v4164 = vor.u32 1.1754944e-38, %v4163
        %v4165 = vsel %vm4162, %v4164, %v4160
        %v4166 = vmul.f32 1.0, %v4165
        %v4167 = vrcp.pop %v3629
        %v4168 = vmul.f32 %v3629, %v4167
        %v4169 = vsub.f32 1.0, %v4168
        %v4170 = vmul.f32 %v4167, %v4169
        %v4171 = vadd.f32 %v4167, %v4170
        %vm4172 = vweird.f32 %v3629
        %vm4173 = vweird.f32 %v4167
        %vm4174 = vmor %vm4172, %vm4173
        %v4175 = vsel %vm4174, %v4167, %v4171
        %v4176 = vand.u32 2147483647, %v3629
        %vm4177 = vcmp.eq.f32.partialorder %v4176, 8.507059e+37
        %v4178 = vand.u32 %v3629, 2147483648
        %v4179 = vor.u32 1.1754944e-38, %v4178
        %v4180 = vsel %vm4177, %v4179, %v4175
        %v4181 = vmul.f32 1.0, %v4180
        %v4182 = vrcp.pop %v3630
        %v4183 = vmul.f32 %v3630, %v4182
        %v4184 = vsub.f32 1.0, %v4183
        %v4185 = vmul.f32 %v4182, %v4184
        %v4186 = vadd.f32 %v4182, %v4185
        %vm4187 = vweird.f32 %v3630
        %vm4188 = vweird.f32 %v4182
        %vm4189 = vmor %vm4187, %vm4188
        %v4190 = vsel %vm4189, %v4182, %v4186
        %v4191 = vand.u32 2147483647, %v3630
        %vm4192 = vcmp.eq.f32.partialorder %v4191, 8.507059e+37
        %v4193 = vand.u32 %v3630, 2147483648
        %v4194 = vor.u32 1.1754944e-38, %v4193
        %v4195 = vsel %vm4192, %v4194, %v4190
        %v4196 = vmul.f32 1.0, %v4195
        %v4197 = vrcp.pop %v3631
        %v4198 = vmul.f32 %v3631, %v4197
        %v4199 = vsub.f32 1.0, %v4198
        %v4200 = vmul.f32 %v4197, %v4199
        %v4201 = vadd.f32 %v4197, %v4200
        %vm4202 = vweird.f32 %v3631
        %vm4203 = vweird.f32 %v4197
        %vm4204 = vmor %vm4202, %vm4203
        %v4205 = vsel %vm4204, %v4197, %v4201
        %v4206 = vand.u32 2147483647, %v3631
        %vm4207 = vcmp.eq.f32.partialorder %v4206, 8.507059e+37
        %v4208 = vand.u32 %v3631, 2147483648
        %v4209 = vor.u32 1.1754944e-38, %v4208
        %v4210 = vsel %vm4207, %v4209, %v4205
        %v4211 = vmul.f32 1.0, %v4210
        %v4212 = vrcp.pop %v3632
        %v4213 = vmul.f32 %v3632, %v4212
        %v4214 = vsub.f32 1.0, %v4213
        %v4215 = vmul.f32 %v4212, %v4214
        %v4216 = vadd.f32 %v4212, %v4215
        %vm4217 = vweird.f32 %v3632
        %vm4218 = vweird.f32 %v4212
        %vm4219 = vmor %vm4217, %vm4218
        %v4220 = vsel %vm4219, %v4212, %v4216
        %v4221 = vand.u32 2147483647, %v3632
        %vm4222 = vcmp.eq.f32.partialorder %v4221, 8.507059e+37
        %v4223 = vand.u32 %v3632, 2147483648
        %v4224 = vor.u32 1.1754944e-38, %v4223
        %v4225 = vsel %vm4222, %v4224, %v4220
        %v4226 = vmul.f32 1.0, %v4225
        %v4227 = vrcp.pop %v3633
        %v4228 = vmul.f32 %v3633, %v4227
        %v4229 = vsub.f32 1.0, %v4228
        %v4230 = vmul.f32 %v4227, %v4229
        %v4231 = vadd.f32 %v4227, %v4230
        %vm4232 = vweird.f32 %v3633
        %vm4233 = vweird.f32 %v4227
        %vm4234 = vmor %vm4232, %vm4233
        %v4235 = vsel %vm4234, %v4227, %v4231
        %v4236 = vand.u32 2147483647, %v3633
        %vm4237 = vcmp.eq.f32.partialorder %v4236, 8.507059e+37
        %v4238 = vand.u32 %v3633, 2147483648
        %v4239 = vor.u32 1.1754944e-38, %v4238
        %v4240 = vsel %vm4237, %v4239, %v4235
        %v4241 = vmul.f32 1.0, %v4240
        %v4242 = vrcp.pop %v3634
        %v4243 = vmul.f32 %v3634, %v4242
        %v4244 = vsub.f32 1.0, %v4243
        %v4245 = vmul.f32 %v4242, %v4244
        %v4246 = vadd.f32 %v4242, %v4245
        %vm4247 = vweird.f32 %v3634
        %vm4248 = vweird.f32 %v4242
        %vm4249 = vmor %vm4247, %vm4248
        %v4250 = vsel %vm4249, %v4242, %v4246
        %v4251 = vand.u32 2147483647, %v3634
        %vm4252 = vcmp.eq.f32.partialorder %v4251, 8.507059e+37
        %v4253 = vand.u32 %v3634, 2147483648
        %v4254 = vor.u32 1.1754944e-38, %v4253
        %v4255 = vsel %vm4252, %v4254, %v4250
        %v4256 = vmul.f32 1.0, %v4255
        %v4257 = vrcp.pop %v3635
        %v4258 = vmul.f32 %v3635, %v4257
        %v4259 = vsub.f32 1.0, %v4258
        %v4260 = vmul.f32 %v4257, %v4259
        %v4261 = vadd.f32 %v4257, %v4260
        %vm4262 = vweird.f32 %v3635
        %vm4263 = vweird.f32 %v4257
        %vm4264 = vmor %vm4262, %vm4263
        %v4265 = vsel %vm4264, %v4257, %v4261
        %v4266 = vand.u32 2147483647, %v3635
        %vm4267 = vcmp.eq.f32.partialorder %v4266, 8.507059e+37
        %v4268 = vand.u32 %v3635, 2147483648
        %v4269 = vor.u32 1.1754944e-38, %v4268
        %v4270 = vsel %vm4267, %v4269, %v4265
        %v4271 = vmul.f32 1.0, %v4270
        %v4272 = vrcp.pop %v3636
        %v4273 = vmul.f32 %v3636, %v4272
        %v4274 = vsub.f32 1.0, %v4273
        %v4275 = vmul.f32 %v4272, %v4274
        %v4276 = vadd.f32 %v4272, %v4275
        %vm4277 = vweird.f32 %v3636
        %vm4278 = vweird.f32 %v4272
        %vm4279 = vmor %vm4277, %vm4278
        %v4280 = vsel %vm4279, %v4272, %v4276
        %v4281 = vand.u32 2147483647, %v3636
        %vm4282 = vcmp.eq.f32.partialorder %v4281, 8.507059e+37
        %v4283 = vand.u32 %v3636, 2147483648
        %v4284 = vor.u32 1.1754944e-38, %v4283
        %v4285 = vsel %vm4282, %v4284, %v4280
        %v4286 = vmul.f32 1.0, %v4285
        %v4287 = vrcp.pop %v3637
        %v4288 = vmul.f32 %v3637, %v4287
        %v4289 = vsub.f32 1.0, %v4288
        %v4290 = vmul.f32 %v4287, %v4289
        %v4291 = vadd.f32 %v4287, %v4290
        %vm4292 = vweird.f32 %v3637
        %vm4293 = vweird.f32 %v4287
        %vm4294 = vmor %vm4292, %vm4293
        %v4295 = vsel %vm4294, %v4287, %v4291
        %v4296 = vand.u32 2147483647, %v3637
        %vm4297 = vcmp.eq.f32.partialorder %v4296, 8.507059e+37
        %v4298 = vand.u32 %v3637, 2147483648
        %v4299 = vor.u32 1.1754944e-38, %v4298
        %v4300 = vsel %vm4297, %v4299, %v4295
        %v4301 = vmul.f32 1.0, %v4300
        %v4302 = vrcp.pop %v3638
        %v4303 = vmul.f32 %v3638, %v4302
        %v4304 = vsub.f32 1.0, %v4303
        %v4305 = vmul.f32 %v4302, %v4304
        %v4306 = vadd.f32 %v4302, %v4305
        %vm4307 = vweird.f32 %v3638
        %vm4308 = vweird.f32 %v4302
        %vm4309 = vmor %vm4307, %vm4308
        %v4310 = vsel %vm4309, %v4302, %v4306
        %v4311 = vand.u32 2147483647, %v3638
        %vm4312 = vcmp.eq.f32.partialorder %v4311, 8.507059e+37
        %v4313 = vand.u32 %v3638, 2147483648
        %v4314 = vor.u32 1.1754944e-38, %v4313
        %v4315 = vsel %vm4312, %v4314, %v4310
        %v4316 = vmul.f32 1.0, %v4315
        %v4317 = vrcp.pop %v3639
        %v4318 = vmul.f32 %v3639, %v4317
        %v4319 = vsub.f32 1.0, %v4318
        %v4320 = vmul.f32 %v4317, %v4319
        %v4321 = vadd.f32 %v4317, %v4320
        %vm4322 = vweird.f32 %v3639
        %vm4323 = vweird.f32 %v4317
        %vm4324 = vmor %vm4322, %vm4323
        %v4325 = vsel %vm4324, %v4317, %v4321
        %v4326 = vand.u32 2147483647, %v3639
        %vm4327 = vcmp.eq.f32.partialorder %v4326, 8.507059e+37
        %v4328 = vand.u32 %v3639, 2147483648
        %v4329 = vor.u32 1.1754944e-38, %v4328
        %v4330 = vsel %vm4327, %v4329, %v4325
        %v4331 = vmul.f32 1.0, %v4330
        %v4332 = vrcp.pop %v3640
        %v4333 = vmul.f32 %v3640, %v4332
        %v4334 = vsub.f32 1.0, %v4333
        %v4335 = vmul.f32 %v4332, %v4334
        %v4336 = vadd.f32 %v4332, %v4335
        %vm4337 = vweird.f32 %v3640
        %vm4338 = vweird.f32 %v4332
        %vm4339 = vmor %vm4337, %vm4338
        %v4340 = vsel %vm4339, %v4332, %v4336
        %v4341 = vand.u32 2147483647, %v3640
        %vm4342 = vcmp.eq.f32.partialorder %v4341, 8.507059e+37
        %v4343 = vand.u32 %v3640, 2147483648
        %v4344 = vor.u32 1.1754944e-38, %v4343
        %v4345 = vsel %vm4342, %v4344, %v4340
        %v4346 = vmul.f32 1.0, %v4345
        %v4347 = vrcp.pop %v3641
        %v4348 = vmul.f32 %v3641, %v4347
        %v4349 = vsub.f32 1.0, %v4348
        %v4350 = vmul.f32 %v4347, %v4349
        %v4351 = vadd.f32 %v4347, %v4350
        %vm4352 = vweird.f32 %v3641
        %vm4353 = vweird.f32 %v4347
        %vm4354 = vmor %vm4352, %vm4353
        %v4355 = vsel %vm4354, %v4347, %v4351
        %v4356 = vand.u32 2147483647, %v3641
        %vm4357 = vcmp.eq.f32.partialorder %v4356, 8.507059e+37
        %v4358 = vand.u32 %v3641, 2147483648
        %v4359 = vor.u32 1.1754944e-38, %v4358
        %v4360 = vsel %vm4357, %v4359, %v4355
        %v4361 = vmul.f32 1.0, %v4360
        %v4362 = vmul.f32 %v3402, %v3656
        %v4363 = vmul.f32 %v3403, %v3671
        %v4364 = vmul.f32 %v3404, %v3686
        %v4365 = vmul.f32 %v3405, %v3701
        %v4366 = vmul.f32 %v3406, %v3716
        %v4367 = vmul.f32 %v3407, %v3731
        %v4368 = vmul.f32 %v3408, %v3746
        %v4369 = vmul.f32 %v3409, %v3761
        %v4370 = vmul.f32 %v3410, %v3776
        %v4371 = vmul.f32 %v3411, %v3791
        %v4372 = vmul.f32 %v3412, %v3806
        %v4373 = vmul.f32 %v3413, %v3821
        %v4374 = vmul.f32 %v3414, %v3836
        %v4375 = vmul.f32 %v3415, %v3851
        %v4376 = vmul.f32 %v3416, %v3866
        %v4377 = vmul.f32 %v3417, %v3881
        %v4378 = vmul.f32 %v3418, %v3896
        %v4379 = vmul.f32 %v3419, %v3911
        %v4380 = vmul.f32 %v3420, %v3926
        %v4381 = vmul.f32 %v3421, %v3941
        %v4382 = vmul.f32 %v3422, %v3956
        %v4383 = vmul.f32 %v3423, %v3971
        %v4384 = vmul.f32 %v3424, %v3986
        %v4385 = vmul.f32 %v3425, %v4001
        %v4386 = vmul.f32 %v3426, %v4016
        %v4387 = vmul.f32 %v3427, %v4031
        %v4388 = vmul.f32 %v3428, %v4046
        %v4389 = vmul.f32 %v3429, %v4061
        %v4390 = vmul.f32 %v3430, %v4076
        %v4391 = vmul.f32 %v3431, %v4091
        %v4392 = vmul.f32 %v3432, %v4106
        %v4393 = vmul.f32 %v3433, %v4121
        %v4394 = vmul.f32 %v3434, %v4136
        %v4395 = vmul.f32 %v3435, %v4151
        %v4396 = vmul.f32 %v3436, %v4166
        %v4397 = vmul.f32 %v3437, %v4181
        %v4398 = vmul.f32 %v3438, %v4196
        %v4399 = vmul.f32 %v3439, %v4211
        %v4400 = vmul.f32 %v3440, %v4226
        %v4401 = vmul.f32 %v3441, %v4241
        %v4402 = vmul.f32 %v3442, %v4256
        %v4403 = vmul.f32 %v3443, %v4271
        %v4404 = vmul.f32 %v3444, %v4286
        %v4405 = vmul.f32 %v3445, %v4301
        %v4406 = vmul.f32 %v3446, %v4316
        %v4407 = vmul.f32 %v3447, %v4331
        %v4408 = vmul.f32 %v3448, %v4346
        %v4409 = vmul.f32 %v3449, %v4361
        %4410 = vxpose.xlu0.b32.start [1/16] %v4362, 128
        %4411 = vxpose.xlu0.b32.cont [2/16] %v4363, 128
        %4412 = vxpose.xlu0.b32.cont [3/16] %v4364, 128
        %4413 = vxpose.xlu0.b32.cont [4/16] %v4365, 128
        %4414 = vxpose.xlu0.b32.cont [5/16] %v4366, 128
        %4415 = vxpose.xlu0.b32.cont [6/16] %v4367, 128
        %4416 = vxpose.xlu0.b32.cont [7/16] %v4368, 128
        %4417 = vxpose.xlu0.b32.cont [8/16] %v4369, 128
        %4418 = vxpose.xlu0.b32.cont [9/16] %v4370, 128
        %4419 = vxpose.xlu0.b32.cont [10/16] %v4371, 128
        %4420 = vxpose.xlu0.b32.cont [11/16] %v4372, 128
        %4421 = vxpose.xlu0.b32.cont [12/16] %v4373, 128
        %4422 = vxpose.xlu0.b32.cont [13/16] %v4374, 128
        %4423 = vxpose.xlu0.b32.cont [14/16] %v4375, 128
        %4424 = vxpose.xlu0.b32.cont [15/16] %v4376, 128
        %4425 = vxpose.xlu0.b32.end [16/16] %v4377, 128
        %v4426 = vpop.trf.xlu0
        %v4427 = vpop.trf.xlu0
        %v4428 = vpop.trf.xlu0
        %v4429 = vpop.trf.xlu0
        %v4430 = vpop.trf.xlu0
        %v4431 = vpop.trf.xlu0
        %v4432 = vpop.trf.xlu0
        %v4433 = vpop.trf.xlu0
        %v4434 = vpop.trf.xlu0
        %v4435 = vpop.trf.xlu0
        %v4436 = vpop.trf.xlu0
        %v4437 = vpop.trf.xlu0
        %v4438 = vpop.trf.xlu0
        %v4439 = vpop.trf.xlu0
        %v4440 = vpop.trf.xlu0
        %v4441 = vpop.trf.xlu0
        %4442 = vxpose.xlu0.b32.start [1/16] %v4378, 128
        %4443 = vxpose.xlu0.b32.cont [2/16] %v4379, 128
        %4444 = vxpose.xlu0.b32.cont [3/16] %v4380, 128
        %4445 = vxpose.xlu0.b32.cont [4/16] %v4381, 128
        %4446 = vxpose.xlu0.b32.cont [5/16] %v4382, 128
        %4447 = vxpose.xlu0.b32.cont [6/16] %v4383, 128
        %4448 = vxpose.xlu0.b32.cont [7/16] %v4384, 128
        %4449 = vxpose.xlu0.b32.cont [8/16] %v4385, 128
        %4450 = vxpose.xlu0.b32.cont [9/16] %v4386, 128
        %4451 = vxpose.xlu0.b32.cont [10/16] %v4387, 128
        %4452 = vxpose.xlu0.b32.cont [11/16] %v4388, 128
        %4453 = vxpose.xlu0.b32.cont [12/16] %v4389, 128
        %4454 = vxpose.xlu0.b32.cont [13/16] %v4390, 128
        %4455 = vxpose.xlu0.b32.cont [14/16] %v4391, 128
        %4456 = vxpose.xlu0.b32.cont [15/16] %v4392, 128
        %4457 = vxpose.xlu0.b32.end [16/16] %v4393, 128
        %v4458 = vpop.trf.xlu0
        %v4459 = vpop.trf.xlu0
        %v4460 = vpop.trf.xlu0
        %v4461 = vpop.trf.xlu0
        %v4462 = vpop.trf.xlu0
        %v4463 = vpop.trf.xlu0
        %v4464 = vpop.trf.xlu0
        %v4465 = vpop.trf.xlu0
        %v4466 = vpop.trf.xlu0
        %v4467 = vpop.trf.xlu0
        %v4468 = vpop.trf.xlu0
        %v4469 = vpop.trf.xlu0
        %v4470 = vpop.trf.xlu0
        %v4471 = vpop.trf.xlu0
        %v4472 = vpop.trf.xlu0
        %v4473 = vpop.trf.xlu0
        %4474 = vxpose.xlu0.b32.start [1/16] %v4394, 128
        %4475 = vxpose.xlu0.b32.cont [2/16] %v4395, 128
        %4476 = vxpose.xlu0.b32.cont [3/16] %v4396, 128
        %4477 = vxpose.xlu0.b32.cont [4/16] %v4397, 128
        %4478 = vxpose.xlu0.b32.cont [5/16] %v4398, 128
        %4479 = vxpose.xlu0.b32.cont [6/16] %v4399, 128
        %4480 = vxpose.xlu0.b32.cont [7/16] %v4400, 128
        %4481 = vxpose.xlu0.b32.cont [8/16] %v4401, 128
        %4482 = vxpose.xlu0.b32.cont [9/16] %v4402, 128
        %4483 = vxpose.xlu0.b32.cont [10/16] %v4403, 128
        %4484 = vxpose.xlu0.b32.cont [11/16] %v4404, 128
        %4485 = vxpose.xlu0.b32.cont [12/16] %v4405, 128
        %4486 = vxpose.xlu0.b32.cont [13/16] %v4406, 128
        %4487 = vxpose.xlu0.b32.cont [14/16] %v4407, 128
        %4488 = vxpose.xlu0.b32.cont [15/16] %v4408, 128
        %4489 = vxpose.xlu0.b32.end [16/16] %v4409, 128
        %v4490 = vpop.trf.xlu0
        %v4491 = vpop.trf.xlu0
        %v4492 = vpop.trf.xlu0
        %v4493 = vpop.trf.xlu0
        %v4494 = vpop.trf.xlu0
        %v4495 = vpop.trf.xlu0
        %v4496 = vpop.trf.xlu0
        %v4497 = vpop.trf.xlu0
        %v4498 = vpop.trf.xlu0
        %v4499 = vpop.trf.xlu0
        %v4500 = vpop.trf.xlu0
        %v4501 = vpop.trf.xlu0
        %v4502 = vpop.trf.xlu0
        %v4503 = vpop.trf.xlu0
        %v4504 = vpop.trf.xlu0
        %v4505 = vpop.trf.xlu0
        %4506 = vst [vmem:[%s177] sm:$0xff] %v4426
        %4507 = vst [vmem:[%s177 + $0x8] sm:$0xff] %v4458
        %4508 = vst [vmem:[%s177 + $0x10] sm:$0xff] %v4490
        %s4509 = sand.u32 %s107, 1
        %s4510 = scalar_lea.sflag [#allocation3], %s4509
        %s4511 = sand.u32 %s107, 1
        %s4512 = smul.addr %s4511, 24
        %s4513 = scalar_lea.vmem [#allocation2], %s4512
        // Predicated region
        $region33: #{tpu_custom_call.1} parent=31 // pred_check
          %p4514 = pneg %p117
        $region34: #{tpu_custom_call.1} parent=31 // pred_check_branch
          %4516 = sbr.rel (%p4514) target = $region36
        $region35: #{tpu_custom_call.1} parent=31 // pred_region
          %s4517 = smul.u32 3, %s22
          %4519 = vsyncadd %s4510, 0
          %s4520 = smul.addr %s21, 3
          %s4521 = sadd.s32 %s4517, %s4520
          %s4522 = smul.addr %s4521, 8
          %s4523 = scalar_lea.hbm %s3, %s4522
          %s4525 = sshll.u32 %s4513, 4
          %s4526 = int_to_ptr.vmem [resolvable:$true] %s4525
          %s4527 = sshll.u32 %s4523, 4
          %s4528 = int_to_ptr.hbm [resolvable:$true] %s4527
          %4530 = dma.vmem_to_hbm [thread:$0]  %s4526, 384, %s4528, %s4510
        $region36: #{tpu_custom_call.1} parent=31 // pred_fallthru
          _
      $region32: #{tpu_custom_call.1} parent=5 // pred_fallthru
        _
      %p4531 = scmp.le.s32.totalorder 2, %s12
      // Predicated region
      $region37: #{tpu_custom_call.1} parent=5 // pred_check
        %p4532 = pneg %p4531
      $region38: #{tpu_custom_call.1} parent=5 // pred_check_branch
        %4534 = sbr.rel (%p4532) target = $region40
      $region39: #{tpu_custom_call.1} parent=5 // pred_region
        %s4535 = ssub.s32 %s12, 2
        // Predicated region
        $region41: #{tpu_custom_call.1} parent=39 // pred_check
          %p4536 = pneg %p123
        $region42: #{tpu_custom_call.1} parent=39 // pred_check_branch
          %4538 = sbr.rel (%p4536) target = $region44
        $region43: #{tpu_custom_call.1} parent=39 // pred_region
          %s4539 = sand.u32 %s108, 1
          %s4540 = scalar_lea.sflag [#allocation3], %s4539
          %s4541 = sand.u32 %s108, 1
          %s4542 = smul.addr %s4541, 24
          %s4543 = scalar_lea.vmem [#allocation2], %s4542
          %4545 = dma.done %s4540, 384
        $region44: #{tpu_custom_call.1} parent=39 // pred_fallthru
          _
      $region40: #{tpu_custom_call.1} parent=5 // pred_fallthru
        _
    $region6: #{tpu_custom_call.1} parent=1 // loop_footer
      %s16 = sadd.s32 1, %s12
    $region7: #{tpu_custom_call.1} parent=1 // loop_footer_branch
      %11 = sbr.rel target = $region3
    $region8: #{tpu_custom_call.1} parent=1 // loop_exit
      _
    %4546 = vsyncpa [#allocation3], 1
    %s4547 = scalar_lea.sflag [#allocation3], 1
    %4548 = vsyncpa %s4547, 1

</llo_original>
